<compile_context>
chip_gen: v7x
topology: tpu7x:2x2x1
jax: 0.10.0
libtpu: 0.0.40
codegen_flags: <defaults>
</compile_context>

<pallas_src>
import functools

import jax
import jax.numpy as jnp
from jax import lax
from jax.experimental import pallas as pl
from jax.experimental.pallas import tpu as pltpu

_LANES = 128                      # f32 lane width of a vreg
_SUBLANES = 8                     # f32 sublane count of a vreg
_TIME_CHUNK = 16                  # target timesteps resident per GRU grid step


def _round_up(x, m):
    return (x + m - 1) // m * m


def _vmem_limit_bytes():
    """Generation-aware VMEM budget (v5e/v6e: 128 MiB physical, v7x: 64 MiB)."""
    try:
        cap = getattr(pltpu.get_tpu_info(), "vmem_capacity_bytes", None)
        if cap:
            return int(min(cap * 2 // 3, 96 * 1024 * 1024))
    except Exception:
        pass
    return 32 * 1024 * 1024


_VMEM_LIMIT = _vmem_limit_bytes()


def _batch_tiling(B):
    """Padded batch size and batch tile; >=2 tiles when possible (v7x megacore)."""
    if B <= _LANES:
        Bp = _round_up(B, _SUBLANES)
        if Bp >= 2 * _SUBLANES and Bp % (2 * _SUBLANES) == 0:
            return Bp, Bp // 2
        return Bp, Bp
    Bp = _round_up(B, _LANES)
    return Bp, _LANES


def _time_tiling(T):
    Tc = min(_TIME_CHUNK, T)
    return _round_up(T, Tc), Tc


# -----------------------------------------------------------------------------
# Fused GRU layer kernel: one (batch-tile, time-chunk) grid step.  The x-side
# gate projection for the chunk and the recurrence over the chunk both run in
# the same kernel; the hidden state is resident in VMEM across time chunks.
# -----------------------------------------------------------------------------
def _gru_layer_kernel(x_ref, wxzr_ref, bxzr_ref, wxn_ref, bxn_ref,
                      wzr_ref, wn_ref, out_ref, h_scr, gzr_scr, gn_scr):
    """x_ref   : (Tc, bt, Inp)  bf16  layer input chunk
       wxzr_ref: (Inp, 2*Hp)    bf16  x-side weights for [z | r]
       bxzr_ref: (1, 2*Hp)      f32   x-side biases   for [z | r]
       wxn_ref : (Inp, Hp)      bf16  x-side weight for the candidate gate
       bxn_ref : (1, Hp)        f32
       wzr_ref : (Hp, 2*Hp)     bf16  fused hidden-side weights for [z | r]
       wn_ref  : (Hp, Hp)       bf16  hidden-side weight for the candidate gate
       out_ref : (Tc, bt, Hp)   bf16  hidden state at every timestep of the chunk
       h_scr   : (bt, Hp)       f32   hidden state, resident across time chunks
       gzr_scr : (Tc, bt, 2*Hp) f32   chunk x-side pre-activations for z, r
       gn_scr  : (Tc, bt, Hp)   f32   chunk x-side pre-activations for n
    """
    Tc, bt, Inp = x_ref.shape
    Hp = wn_ref.shape[0]

    # hidden = None at the start of the sequence (per batch tile).
    @pl.when(pl.program_id(1) == 0)
    def _():
        h_scr[...] = jnp.zeros_like(h_scr)

    # Hoisted x-side gate projections for the whole chunk: two chunk-wide MXU
    # matmuls whose results stay in VMEM (no HBM round trip).  The reshape only
    # collapses leading dims (bt is a multiple of 8) so it is layout-preserving.
    xb = x_ref[...].reshape(Tc * bt, Inp)
    gzr_scr[...] = (
        jnp.dot(xb, wxzr_ref[...], preferred_element_type=jnp.float32)
        + bxzr_ref[...]).reshape(Tc, bt, 2 * Hp)
    gn_scr[...] = (
        jnp.dot(xb, wxn_ref[...], preferred_element_type=jnp.float32)
        + bxn_ref[...]).reshape(Tc, bt, Hp)

    def step(t, carry):
        h = h_scr[...]                                       # (bt, Hp) f32
        # z_t, r_t = sigmoid(x W{z,r}x + b{z,r} + h W{z,r}h)  -- one fused matmul
        zr = jax.nn.sigmoid(
            gzr_scr[t]
            + jnp.dot(h.astype(wzr_ref.dtype), wzr_ref[...],
                      preferred_element_type=jnp.float32))
        z = zr[:, :Hp]
        r = zr[:, Hp:]
        # h_c = tanh(x Wnx + bn + (r*h) Wnh)   (n slab read only after sigmoid)
        n = jnp.tanh(
            gn_scr[t]
            + jnp.dot((r * h).astype(wn_ref.dtype), wn_ref[...],
                      preferred_element_type=jnp.float32))
        # h_t = (1 - z) * h + z * h_c          (matches the reference GRUCell)
        h_new = h + z * (n - h)
        h_scr[...] = h_new
        out_ref[t] = h_new.astype(out_ref.dtype)
        return carry

    lax.fori_loop(0, Tc, step, 0, unroll=True if Tc <= 8 else 4)


def gru_layer(x, layer, *, block_b, block_t):
    """x: (Tp, Bp, Inp) bf16 -> (Tp, Bp, Hp) bf16; time loop lives in-kernel."""
    Tp, Bp, Inp = x.shape
    Hp = layer["w_n_h"].shape[0]
    assert Bp % block_b == 0 and Tp % block_t == 0
    assert layer["wx_zr"].shape[0] == Inp

    return pl.pallas_call(
        _gru_layer_kernel,
        out_shape=jax.ShapeDtypeStruct((Tp, Bp, Hp), jnp.bfloat16),
        grid_spec=pltpu.PrefetchScalarGridSpec(
            num_scalar_prefetch=0,
            grid=(Bp // block_b, Tp // block_t),   # batch parallel, time carried
            in_specs=[
                pl.BlockSpec((block_t, block_b, Inp), lambda b, t: (t, b, 0)),
                pl.BlockSpec((Inp, 2 * Hp), lambda b, t: (0, 0)),
                pl.BlockSpec((1, 2 * Hp), lambda b, t: (0, 0)),
                pl.BlockSpec((Inp, Hp), lambda b, t: (0, 0)),
                pl.BlockSpec((1, Hp), lambda b, t: (0, 0)),
                pl.BlockSpec((Hp, 2 * Hp), lambda b, t: (0, 0)),
                pl.BlockSpec((Hp, Hp), lambda b, t: (0, 0)),
            ],
            out_specs=pl.BlockSpec((block_t, block_b, Hp), lambda b, t: (t, b, 0)),
            scratch_shapes=[
                pltpu.VMEM((block_b, Hp), jnp.float32),              # h
                pltpu.VMEM((block_t, block_b, 2 * Hp), jnp.float32),  # z/r pre-act
                pltpu.VMEM((block_t, block_b, Hp), jnp.float32),      # n pre-act
            ],
        ),
        compiler_params=pltpu.CompilerParams(
            dimension_semantics=("parallel", "arbitrary"),
            vmem_limit_bytes=_VMEM_LIMIT),
    )(x, layer["wx_zr"], layer["bx_zr"], layer["wx_n"], layer["bx_n"],
      layer["w_zr_h"], layer["w_n_h"])


# -----------------------------------------------------------------------------
# Output projection: (N, K) @ (K, M) + b, rows tiled on a parallel grid.  The
# row tile always divides N exactly (no XLA pad round trip).
# -----------------------------------------------------------------------------
def _linear_bias_kernel(x_ref, w_ref, b_ref, o_ref):
    x = x_ref[...].astype(w_ref.dtype)                   # bf16 into the MXU
    acc = jnp.dot(x, w_ref[...], preferred_element_type=jnp.float32)
    o_ref[...] = (acc + b_ref[...]).astype(o_ref.dtype)


def _row_tile(N, row_div, target):
    reps = N // row_div
    best = row_div
    for d in range(1, reps + 1):
        if reps % d == 0 and row_div * d <= target:
            best = row_div * d
    return best


def linear_bias(x2d, w, b, *, row_div, target_rows=512):
    N, K = x2d.shape
    M = w.shape[1]
    tn = _row_tile(N, row_div, max(target_rows, row_div))
    assert N % tn == 0 and tn % _SUBLANES == 0

    return pl.pallas_call(
        _linear_bias_kernel,
        out_shape=jax.ShapeDtypeStruct((N, M), jnp.float32),
        grid=(N // tn,),
        in_specs=[
            pl.BlockSpec((tn, K), lambda i: (i, 0)),
            pl.BlockSpec((K, M), lambda i: (0, 0)),
            pl.BlockSpec((1, M), lambda i: (0, 0)),
        ],
        out_specs=pl.BlockSpec((tn, M), lambda i: (i, 0)),
        compiler_params=pltpu.CompilerParams(
            dimension_semantics=("parallel",),
            vmem_limit_bytes=_VMEM_LIMIT),
    )(x2d, w, b)


# -----------------------------------------------------------------------------
# Parameters: module-shaped init + packing into the fused/padded kernel layout.
# -----------------------------------------------------------------------------
def init_char_gru_params(key, vocab_size, embedding_dim, hidden_size, num_layers):
    """Per gate one Linear(in+H -> H), stored transposed as (in+H, H) + (H,) bias."""
    params = {}
    key, k_emb = jax.random.split(key)
    params["embedding"] = jax.random.normal(
        k_emb, (vocab_size, embedding_dim), jnp.float32)

    stdv = 1.0 / float(hidden_size) ** 0.5
    layers = []
    for i in range(num_layers):
        in_size = embedding_dim if i == 0 else hidden_size
        gates = {}
        for g in ("z", "r", "n"):
            key, kw, kb = jax.random.split(key, 3)
            gates[f"w_{g}"] = jax.random.uniform(
                kw, (in_size + hidden_size, hidden_size), jnp.float32, -stdv, stdv)
            gates[f"b_{g}"] = jax.random.uniform(
                kb, (hidden_size,), jnp.float32, -stdv, stdv)
        layers.append(gates)
    params["layers"] = layers

    key, kw, kb = jax.random.split(key, 3)
    params["w_out"] = jax.random.uniform(
        kw, (hidden_size, vocab_size), jnp.float32, -stdv, stdv)
    params["b_out"] = jax.random.uniform(
        kb, (vocab_size,), jnp.float32, -stdv, stdv)
    return params


def pack_params(params, *, weight_dtype=jnp.bfloat16):
    """Split each concat-Linear into x/h parts, fuse the z/r gates, zero-pad to
    lane/sublane multiples, and cast weights to bf16 (biases stay f32)."""
    emb = params["embedding"]
    H, V = params["w_out"].shape
    Hp = _round_up(H, _LANES)
    Vp = _round_up(V, _LANES)
    Ep = _round_up(emb.shape[1], _LANES)

    def pad2(w, rows, cols):
        return jnp.pad(w, ((0, rows - w.shape[0]), (0, cols - w.shape[1])))

    def pad1(v, n):
        return jnp.pad(v, (0, n - v.shape[0]))

    packed = {"embedding": pad2(emb, emb.shape[0], Ep).astype(weight_dtype)}

    layers = []
    for gates in params["layers"]:
        In = gates["w_z"].shape[0] - H
        Inp = _round_up(In, _LANES)
        wzx, wzh = gates["w_z"][:In], gates["w_z"][In:]
        wrx, wrh = gates["w_r"][:In], gates["w_r"][In:]
        wnx, wnh = gates["w_n"][:In], gates["w_n"][In:]

        layers.append({
            # x-side projections (consumed in the chunk prologue of the kernel)
            "wx_zr": jnp.concatenate(
                [pad2(wzx, Inp, Hp), pad2(wrx, Inp, Hp)], axis=1
            ).astype(weight_dtype),                              # (Inp, 2*Hp)
            "bx_zr": jnp.concatenate(
                [pad1(gates["b_z"], Hp), pad1(gates["b_r"], Hp)])[None, :],
            "wx_n": pad2(wnx, Inp, Hp).astype(weight_dtype),     # (Inp, Hp)
            "bx_n": pad1(gates["b_n"], Hp)[None, :],
            # hidden-side recurrence weights
            "w_zr_h": jnp.concatenate(
                [pad2(wzh, Hp, Hp), pad2(wrh, Hp, Hp)], axis=1
            ).astype(weight_dtype),                              # (Hp, 2*Hp)
            "w_n_h": pad2(wnh, Hp, Hp).astype(weight_dtype),     # (Hp, Hp)
        })
    packed["layers"] = layers
    packed["w_out"] = pad2(params["w_out"], Hp, Vp).astype(weight_dtype)
    packed["b_out"] = pad1(params["b_out"], Vp)[None, :]
    return packed


# -----------------------------------------------------------------------------
# Full forward pass (dropout=0.0 in the reference config -> identity, omitted).
# -----------------------------------------------------------------------------
@functools.partial(jax.jit, static_argnames=("vocab_size",))
def char_gru_forward(packed, tokens, *, vocab_size):
    B, T = tokens.shape
    Bp, bt = _batch_tiling(B)
    Tp, Tc = _time_tiling(T)
    Hp = packed["layers"][0]["w_n_h"].shape[0]

    # Embedding lookup directly in time-major layout: transpose the tiny int
    # token matrix instead of the (B, T, C) activation tensor.  Inter-layer
    # activations are bf16.
    x = jnp.take(packed["embedding"], tokens.T, axis=0)        # (T, B, Ep) bf16
    x = jnp.pad(x, ((0, Tp - T), (0, Bp - B), (0, 0)))         # zero-pad t & b

    cur = x                                                    # (Tp, Bp, *)
    for layer in packed["layers"]:
        # One fused kernel per layer: x-projection + full recurrence, streamed
        # over time chunks with the hidden state resident in VMEM.
        cur = gru_layer(cur, layer, block_b=bt, block_t=Tc)    # (Tp, Bp, Hp) bf16

    logits = linear_bias(cur.reshape(Tp * Bp, Hp),
                         packed["w_out"], packed["b_out"],
                         row_div=Bp)                           # (Tp*Bp, Vp) f32
    logits = logits.reshape(Tp, Bp, -1)[:T, :B, :vocab_size]
    # TODO(synk): the final (T,B,V)->(B,T,V) transpose stays in plain XLA;
    # folding it into the projection's out BlockSpec would need sub-8-sublane
    # output blocks (or an in-kernel transpose), not worth it at these sizes.
    return jnp.transpose(logits, (1, 0, 2))                    # (B, T, V)


# -----------------------------------------------------------------------------
# Pure-JAX f32 reference (literal port of the PyTorch module) for verification.
# -----------------------------------------------------------------------------
def _reference_forward(params, tokens):
    x = jnp.take(params["embedding"], tokens, axis=0).transpose(1, 0, 2)  # (T,B,E)
    T, B, _ = x.shape
    H = params["w_out"].shape[0]
    cur = x
    for gates in params["layers"]:
        h = jnp.zeros((B, H), jnp.float32)
        outs = []
        for t in range(T):
            comb = jnp.concatenate([cur[t], h], axis=-1)
            z = jax.nn.sigmoid(comb @ gates["w_z"] + gates["b_z"])
            r = jax.nn.sigmoid(comb @ gates["w_r"] + gates["b_r"])
            comb_n = jnp.concatenate([cur[t], r * h], axis=-1)
            n = jnp.tanh(comb_n @ gates["w_n"] + gates["b_n"])
            h = (1.0 - z) * h + z * n
            outs.append(h)
        cur = jnp.stack(outs, axis=0)
    logits = cur @ params["w_out"] + params["b_out"]
    return logits.transpose(1, 0, 2)


if __name__ == "__main__":
    vocab_size = 16
    embedding_dim = 32
    hidden_size = 64          # module default
    num_layers = 3
    B, T = 2, 8

    key = jax.random.PRNGKey(0)
    key, k_tok = jax.random.split(key)
    params = init_char_gru_params(key, vocab_size, embedding_dim,
                                  hidden_size, num_layers)
    packed = pack_params(params)
    tokens = jax.random.randint(k_tok, (B, T), 0, vocab_size, dtype=jnp.int32)

    out = char_gru_forward(packed, tokens, vocab_size=vocab_size)
    jax.block_until_ready(out)
    assert out.shape == (B, T, vocab_size), out.shape

    ref = _reference_forward(params, tokens)
    max_err = float(jnp.max(jnp.abs(out - ref)))
    assert max_err < 5e-2, f"max abs error vs reference: {max_err}"

    print("KERNEL_OK")
</pallas_src>

<mosaic_0001>
module attributes {stable_mosaic.version = 11 : i64} {
  func.func @_linear_bias_kernel(%arg0: i32, %arg1: memref<64x128xbf16, #tpu.memory_space<vmem>>, %arg2: memref<128x128xbf16, #tpu.memory_space<vmem>>, %arg3: memref<1x128xf32, #tpu.memory_space<vmem>>, %arg4: memref<64x128xf32, #tpu.memory_space<vmem>>) attributes {dimension_semantics = [#tpu.dimension_semantics<parallel>], iteration_bounds = array<i64: 1>, scalar_prefetch = 0 : i64, scratch_operands = 0 : i64, tpu.core_type = #tpu.core_type<tc>, window_params = [{transform_indices = @transform_0, window_bounds = array<i64: 64, 128>}, {pipeline_mode = #tpu.pipeline_mode<synchronous>, transform_indices = @transform_1, window_bounds = array<i64: 128, 128>}, {pipeline_mode = #tpu.pipeline_mode<synchronous>, transform_indices = @transform_2, window_bounds = array<i64: 1, 128>}, {transform_indices = @transform_3, window_bounds = array<i64: 64, 128>}]} {
    %c0 = arith.constant 0 : index
    %c0_0 = arith.constant 0 : index
    %0 = vector.load %arg1[%c0, %c0_0] : memref<64x128xbf16, #tpu.memory_space<vmem>>, vector<64x128xbf16>
    %c0_1 = arith.constant 0 : index
    %c0_2 = arith.constant 0 : index
    %1 = vector.load %arg2[%c0_1, %c0_2] : memref<128x128xbf16, #tpu.memory_space<vmem>>, vector<128x128xbf16>
    %cst = arith.constant dense<0.000000e+00> : vector<64x128xf32>
    %2 = tpu.matmul %0, %1, %cst {dimension_numbers = #tpu.dot_dimension_numbers<[1], [0], [0], [1], [0, 0, 1, 1], [], []>} : vector<64x128xbf16>, vector<128x128xbf16>, vector<64x128xf32> -> vector<64x128xf32>
    %c0_3 = arith.constant 0 : index
    %c0_4 = arith.constant 0 : index
    %3 = vector.load %arg3[%c0_3, %c0_4] : memref<1x128xf32, #tpu.memory_space<vmem>>, vector<1x128xf32>
    %4 = vector.broadcast %3 : vector<1x128xf32> to vector<64x128xf32>
    %5 = arith.addf %2, %4 : vector<64x128xf32>
    %c0_5 = arith.constant 0 : index
    %c0_6 = arith.constant 0 : index
    %6 = vector.load %arg4[%c0_5, %c0_6] : memref<64x128xf32, #tpu.memory_space<vmem>>, vector<64x128xf32>
    tpu.vector_store %arg4[%c0_5, %c0_6], %5 {strides = array<i32>} : memref<64x128xf32, #tpu.memory_space<vmem>>, vector<64x128xf32>,
    return
  }
  func.func @transform_0(%arg0: i32) -> (i32, i32) {
    %c0_i32 = arith.constant 0 : i32
    %c0_i32_0 = arith.constant 0 : i32
    return %arg0, %c0_i32 : i32, i32
  }
  func.func @transform_1(%arg0: i32) -> (i32, i32) {
    %c0_i32 = arith.constant 0 : i32
    %c0_i32_0 = arith.constant 0 : i32
    %c0_i32_1 = arith.constant 0 : i32
    return %c0_i32, %c0_i32_0 : i32, i32
  }
  func.func @transform_2(%arg0: i32) -> (i32, i32) {
    %c0_i32 = arith.constant 0 : i32
    %c0_i32_0 = arith.constant 0 : i32
    %c0_i32_1 = arith.constant 0 : i32
    return %c0_i32, %c0_i32_0 : i32, i32
  }
  func.func @transform_3(%arg0: i32) -> (i32, i32) {
    %c0_i32 = arith.constant 0 : i32
    %c0_i32_0 = arith.constant 0 : i32
    return %arg0, %c0_i32 : i32, i32
  }
}

module attributes {stable_mosaic.version = 11 : i64} {
  func.func @_gru_layer_kernel(%arg0: i32, %arg1: i32, %arg2: memref<8x8x128xbf16, #tpu.memory_space<vmem>>, %arg3: memref<128x256xbf16, #tpu.memory_space<vmem>>, %arg4: memref<1x256xf32, #tpu.memory_space<vmem>>, %arg5: memref<128x128xbf16, #tpu.memory_space<vmem>>, %arg6: memref<1x128xf32, #tpu.memory_space<vmem>>, %arg7: memref<128x256xbf16, #tpu.memory_space<vmem>>, %arg8: memref<128x128xbf16, #tpu.memory_space<vmem>>, %arg9: memref<8x8x128xbf16, #tpu.memory_space<vmem>>, %arg10: memref<8x128xf32, #tpu.memory_space<vmem>>, %arg11: memref<8x8x256xf32, #tpu.memory_space<vmem>>, %arg12: memref<8x8x128xf32, #tpu.memory_space<vmem>>) attributes {dimension_semantics = [#tpu.dimension_semantics<parallel>, #tpu.dimension_semantics<arbitrary>], iteration_bounds = array<i64: 1, 1>, scalar_prefetch = 0 : i64, scratch_operands = 3 : i64, tpu.core_type = #tpu.core_type<tc>, window_params = [{transform_indices = @transform_0, window_bounds = array<i64: 8, 8, 128>}, {pipeline_mode = #tpu.pipeline_mode<synchronous>, transform_indices = @transform_1, window_bounds = array<i64: 128, 256>}, {pipeline_mode = #tpu.pipeline_mode<synchronous>, transform_indices = @transform_2, window_bounds = array<i64: 1, 256>}, {pipeline_mode = #tpu.pipeline_mode<synchronous>, transform_indices = @transform_3, window_bounds = array<i64: 128, 128>}, {pipeline_mode = #tpu.pipeline_mode<synchronous>, transform_indices = @transform_4, window_bounds = array<i64: 1, 128>}, {pipeline_mode = #tpu.pipeline_mode<synchronous>, transform_indices = @transform_5, window_bounds = array<i64: 128, 256>}, {pipeline_mode = #tpu.pipeline_mode<synchronous>, transform_indices = @transform_6, window_bounds = array<i64: 128, 128>}, {transform_indices = @transform_7, window_bounds = array<i64: 8, 8, 128>}]} {
    %c0_i32 = arith.constant 0 : i32
    %0 = arith.cmpi eq, %arg1, %c0_i32 : i32
    %1 = arith.extui %0 : i1 to i32
    %c0_i32_0 = arith.constant 0 : i32
    %2 = arith.cmpi ne, %1, %c0_i32_0 : i32
    scf.if %2 {
      %cst_155 = arith.constant 0.000000e+00 : f32
      %283 = vector.broadcast %cst_155 : f32 to vector<8x128xf32>
      %c0_156 = arith.constant 0 : index
      %c0_157 = arith.constant 0 : index
      %284 = vector.load %arg10[%c0_156, %c0_157] : memref<8x128xf32, #tpu.memory_space<vmem>>, vector<8x128xf32>
      tpu.vector_store %arg10[%c0_156, %c0_157], %283 {strides = array<i32>} : memref<8x128xf32, #tpu.memory_space<vmem>>, vector<8x128xf32>,
    } else {
    }
    %c0 = arith.constant 0 : index
    %c0_1 = arith.constant 0 : index
    %c0_2 = arith.constant 0 : index
    %3 = vector.load %arg2[%c0, %c0_1, %c0_2] : memref<8x8x128xbf16, #tpu.memory_space<vmem>>, vector<8x8x128xbf16>
    %4 = vector.shape_cast %3 : vector<8x8x128xbf16> to vector<64x128xbf16>
    %c0_3 = arith.constant 0 : index
    %c0_4 = arith.constant 0 : index
    %5 = vector.load %arg3[%c0_3, %c0_4] : memref<128x256xbf16, #tpu.memory_space<vmem>>, vector<128x256xbf16>
    %cst = arith.constant dense<0.000000e+00> : vector<64x256xf32>
    %6 = tpu.matmul %4, %5, %cst {dimension_numbers = #tpu.dot_dimension_numbers<[1], [0], [0], [1], [0, 0, 1, 1], [], []>} : vector<64x128xbf16>, vector<128x256xbf16>, vector<64x256xf32> -> vector<64x256xf32>
    %c0_5 = arith.constant 0 : index
    %c0_6 = arith.constant 0 : index
    %7 = vector.load %arg4[%c0_5, %c0_6] : memref<1x256xf32, #tpu.memory_space<vmem>>, vector<1x256xf32>
    %8 = vector.broadcast %7 : vector<1x256xf32> to vector<64x256xf32>
    %9 = arith.addf %6, %8 : vector<64x256xf32>
    %10 = vector.shape_cast %9 : vector<64x256xf32> to vector<8x8x256xf32>
    %c0_7 = arith.constant 0 : index
    %c0_8 = arith.constant 0 : index
    %c0_9 = arith.constant 0 : index
    %11 = vector.load %arg11[%c0_7, %c0_8, %c0_9] : memref<8x8x256xf32, #tpu.memory_space<vmem>>, vector<8x8x256xf32>
    tpu.vector_store %arg11[%c0_7, %c0_8, %c0_9], %10 {strides = array<i32>} : memref<8x8x256xf32, #tpu.memory_space<vmem>>, vector<8x8x256xf32>,
    %c0_10 = arith.constant 0 : index
    %c0_11 = arith.constant 0 : index
    %12 = vector.load %arg5[%c0_10, %c0_11] : memref<128x128xbf16, #tpu.memory_space<vmem>>, vector<128x128xbf16>
    %cst_12 = arith.constant dense<0.000000e+00> : vector<64x128xf32>
    %13 = tpu.matmul %4, %12, %cst_12 {dimension_numbers = #tpu.dot_dimension_numbers<[1], [0], [0], [1], [0, 0, 1, 1], [], []>} : vector<64x128xbf16>, vector<128x128xbf16>, vector<64x128xf32> -> vector<64x128xf32>
    %c0_13 = arith.constant 0 : index
    %c0_14 = arith.constant 0 : index
    %14 = vector.load %arg6[%c0_13, %c0_14] : memref<1x128xf32, #tpu.memory_space<vmem>>, vector<1x128xf32>
    %15 = vector.broadcast %14 : vector<1x128xf32> to vector<64x128xf32>
    %16 = arith.addf %13, %15 : vector<64x128xf32>
    %17 = vector.shape_cast %16 : vector<64x128xf32> to vector<8x8x128xf32>
    %c0_15 = arith.constant 0 : index
    %c0_16 = arith.constant 0 : index
    %c0_17 = arith.constant 0 : index
    %18 = vector.load %arg12[%c0_15, %c0_16, %c0_17] : memref<8x8x128xf32, #tpu.memory_space<vmem>>, vector<8x8x128xf32>
    tpu.vector_store %arg12[%c0_15, %c0_16, %c0_17], %17 {strides = array<i32>} : memref<8x8x128xf32, #tpu.memory_space<vmem>>, vector<8x8x128xf32>,
    %c0_i32_18 = arith.constant 0 : i32
    %c0_19 = arith.constant 0 : index
    %c0_20 = arith.constant 0 : index
    %19 = vector.load %arg10[%c0_19, %c0_20] : memref<8x128xf32, #tpu.memory_space<vmem>>, vector<8x128xf32>
    %20 = arith.index_cast %c0_i32_18 : i32 to index
    %c0_21 = arith.constant 0 : index
    %c0_22 = arith.constant 0 : index
    %21 = vector.load %arg11[%20, %c0_21, %c0_22] : memref<8x8x256xf32, #tpu.memory_space<vmem>>, vector<1x8x256xf32>
    %22 = vector.shape_cast %21 : vector<1x8x256xf32> to vector<8x256xf32>
    %23 = arith.truncf %19 : vector<8x128xf32> to vector<8x128xbf16>
    %c0_23 = arith.constant 0 : index
    %c0_24 = arith.constant 0 : index
    %24 = vector.load %arg7[%c0_23, %c0_24] : memref<128x256xbf16, #tpu.memory_space<vmem>>, vector<128x256xbf16>
    %cst_25 = arith.constant dense<0.000000e+00> : vector<8x256xf32>
    %25 = tpu.matmul %23, %24, %cst_25 {dimension_numbers = #tpu.dot_dimension_numbers<[1], [0], [0], [1], [0, 0, 1, 1], [], []>} : vector<8x128xbf16>, vector<128x256xbf16>, vector<8x256xf32> -> vector<8x256xf32>
    %26 = arith.addf %22, %25 : vector<8x256xf32>
    %27 = arith.negf %26 : vector<8x256xf32>
    %28 = math.exp %27 : vector<8x256xf32>
    %cst_26 = arith.constant 1.000000e+00 : f32
    %29 = vector.broadcast %cst_26 : f32 to vector<8x256xf32>
    %30 = arith.addf %29, %28 : vector<8x256xf32>
    %31 = arith.divf %29, %30 : vector<8x256xf32>
    %32 = vector.extract_strided_slice %31 {offsets = [0, 0], sizes = [8, 128], strides = [1, 1]} : vector<8x256xf32> to vector<8x128xf32>
    %33 = vector.extract_strided_slice %31 {offsets = [0, 128], sizes = [8, 128], strides = [1, 1]} : vector<8x256xf32> to vector<8x128xf32>
    %34 = arith.index_cast %c0_i32_18 : i32 to index
    %c0_27 = arith.constant 0 : index
    %c0_28 = arith.constant 0 : index
    %35 = vector.load %arg12[%34, %c0_27, %c0_28] : memref<8x8x128xf32, #tpu.memory_space<vmem>>, vector<1x8x128xf32>
    %36 = vector.shape_cast %35 : vector<1x8x128xf32> to vector<8x128xf32>
    %37 = arith.mulf %33, %19 : vector<8x128xf32>
    %38 = arith.truncf %37 : vector<8x128xf32> to vector<8x128xbf16>
    %c0_29 = arith.constant 0 : index
    %c0_30 = arith.constant 0 : index
    %39 = vector.load %arg8[%c0_29, %c0_30] : memref<128x128xbf16, #tpu.memory_space<vmem>>, vector<128x128xbf16>
    %cst_31 = arith.constant dense<0.000000e+00> : vector<8x128xf32>
    %40 = tpu.matmul %38, %39, %cst_31 {dimension_numbers = #tpu.dot_dimension_numbers<[1], [0], [0], [1], [0, 0, 1, 1], [], []>} : vector<8x128xbf16>, vector<128x128xbf16>, vector<8x128xf32> -> vector<8x128xf32>
    %41 = arith.addf %36, %40 : vector<8x128xf32>
    %42 = math.tanh %41 : vector<8x128xf32>
    %43 = arith.subf %42, %19 : vector<8x128xf32>
    %44 = arith.mulf %32, %43 : vector<8x128xf32>
    %45 = arith.addf %19, %44 : vector<8x128xf32>
    %c0_32 = arith.constant 0 : index
    %c0_33 = arith.constant 0 : index
    %46 = vector.load %arg10[%c0_32, %c0_33] : memref<8x128xf32, #tpu.memory_space<vmem>>, vector<8x128xf32>
    tpu.vector_store %arg10[%c0_32, %c0_33], %45 {strides = array<i32>} : memref<8x128xf32, #tpu.memory_space<vmem>>, vector<8x128xf32>,
    %47 = arith.truncf %45 : vector<8x128xf32> to vector<8x128xbf16>
    %48 = arith.index_cast %c0_i32_18 : i32 to index
    %c0_34 = arith.constant 0 : index
    %c0_35 = arith.constant 0 : index
    %49 = vector.load %arg9[%48, %c0_34, %c0_35] : memref<8x8x128xbf16, #tpu.memory_space<vmem>>, vector<1x8x128xbf16>
    %50 = vector.shape_cast %49 : vector<1x8x128xbf16> to vector<8x128xbf16>
    %51 = vector.shape_cast %47 : vector<8x128xbf16> to vector<1x8x128xbf16>
    tpu.vector_store %arg9[%48, %c0_34, %c0_35], %51 {strides = array<i32>} : memref<8x8x128xbf16, #tpu.memory_space<vmem>>, vector<1x8x128xbf16>,
    %c1_i32 = arith.constant 1 : i32
    %c0_36 = arith.constant 0 : index
    %c0_37 = arith.constant 0 : index
    %52 = vector.load %arg10[%c0_36, %c0_37] : memref<8x128xf32, #tpu.memory_space<vmem>>, vector<8x128xf32>
    %53 = arith.index_cast %c1_i32 : i32 to index
    %c0_38 = arith.constant 0 : index
    %c0_39 = arith.constant 0 : index
    %54 = vector.load %arg11[%53, %c0_38, %c0_39] : memref<8x8x256xf32, #tpu.memory_space<vmem>>, vector<1x8x256xf32>
    %55 = vector.shape_cast %54 : vector<1x8x256xf32> to vector<8x256xf32>
    %56 = arith.truncf %52 : vector<8x128xf32> to vector<8x128xbf16>
    %c0_40 = arith.constant 0 : index
    %c0_41 = arith.constant 0 : index
    %57 = vector.load %arg7[%c0_40, %c0_41] : memref<128x256xbf16, #tpu.memory_space<vmem>>, vector<128x256xbf16>
    %cst_42 = arith.constant dense<0.000000e+00> : vector<8x256xf32>
    %58 = tpu.matmul %56, %57, %cst_42 {dimension_numbers = #tpu.dot_dimension_numbers<[1], [0], [0], [1], [0, 0, 1, 1], [], []>} : vector<8x128xbf16>, vector<128x256xbf16>, vector<8x256xf32> -> vector<8x256xf32>
    %59 = arith.addf %55, %58 : vector<8x256xf32>
    %60 = arith.negf %59 : vector<8x256xf32>
    %61 = math.exp %60 : vector<8x256xf32>
    %cst_43 = arith.constant 1.000000e+00 : f32
    %62 = vector.broadcast %cst_43 : f32 to vector<8x256xf32>
    %63 = arith.addf %62, %61 : vector<8x256xf32>
    %64 = arith.divf %62, %63 : vector<8x256xf32>
    %65 = vector.extract_strided_slice %64 {offsets = [0, 0], sizes = [8, 128], strides = [1, 1]} : vector<8x256xf32> to vector<8x128xf32>
    %66 = vector.extract_strided_slice %64 {offsets = [0, 128], sizes = [8, 128], strides = [1, 1]} : vector<8x256xf32> to vector<8x128xf32>
    %67 = arith.index_cast %c1_i32 : i32 to index
    %c0_44 = arith.constant 0 : index
    %c0_45 = arith.constant 0 : index
    %68 = vector.load %arg12[%67, %c0_44, %c0_45] : memref<8x8x128xf32, #tpu.memory_space<vmem>>, vector<1x8x128xf32>
    %69 = vector.shape_cast %68 : vector<1x8x128xf32> to vector<8x128xf32>
    %70 = arith.mulf %66, %52 : vector<8x128xf32>
    %71 = arith.truncf %70 : vector<8x128xf32> to vector<8x128xbf16>
    %c0_46 = arith.constant 0 : index
    %c0_47 = arith.constant 0 : index
    %72 = vector.load %arg8[%c0_46, %c0_47] : memref<128x128xbf16, #tpu.memory_space<vmem>>, vector<128x128xbf16>
    %cst_48 = arith.constant dense<0.000000e+00> : vector<8x128xf32>
    %73 = tpu.matmul %71, %72, %cst_48 {dimension_numbers = #tpu.dot_dimension_numbers<[1], [0], [0], [1], [0, 0, 1, 1], [], []>} : vector<8x128xbf16>, vector<128x128xbf16>, vector<8x128xf32> -> vector<8x128xf32>
    %74 = arith.addf %69, %73 : vector<8x128xf32>
    %75 = math.tanh %74 : vector<8x128xf32>
    %76 = arith.subf %75, %52 : vector<8x128xf32>
    %77 = arith.mulf %65, %76 : vector<8x128xf32>
    %78 = arith.addf %52, %77 : vector<8x128xf32>
    %c0_49 = arith.constant 0 : index
    %c0_50 = arith.constant 0 : index
    %79 = vector.load %arg10[%c0_49, %c0_50] : memref<8x128xf32, #tpu.memory_space<vmem>>, vector<8x128xf32>
    tpu.vector_store %arg10[%c0_49, %c0_50], %78 {strides = array<i32>} : memref<8x128xf32, #tpu.memory_space<vmem>>, vector<8x128xf32>,
    %80 = arith.truncf %78 : vector<8x128xf32> to vector<8x128xbf16>
    %81 = arith.index_cast %c1_i32 : i32 to index
    %c0_51 = arith.constant 0 : index
    %c0_52 = arith.constant 0 : index
    %82 = vector.load %arg9[%81, %c0_51, %c0_52] : memref<8x8x128xbf16, #tpu.memory_space<vmem>>, vector<1x8x128xbf16>
    %83 = vector.shape_cast %82 : vector<1x8x128xbf16> to vector<8x128xbf16>
    %84 = vector.shape_cast %80 : vector<8x128xbf16> to vector<1x8x128xbf16>
    tpu.vector_store %arg9[%81, %c0_51, %c0_52], %84 {strides = array<i32>} : memref<8x8x128xbf16, #tpu.memory_space<vmem>>, vector<1x8x128xbf16>,
    %c2_i32 = arith.constant 2 : i32
    %c0_53 = arith.constant 0 : index
    %c0_54 = arith.constant 0 : index
    %85 = vector.load %arg10[%c0_53, %c0_54] : memref<8x128xf32, #tpu.memory_space<vmem>>, vector<8x128xf32>
    %86 = arith.index_cast %c2_i32 : i32 to index
    %c0_55 = arith.constant 0 : index
    %c0_56 = arith.constant 0 : index
    %87 = vector.load %arg11[%86, %c0_55, %c0_56] : memref<8x8x256xf32, #tpu.memory_space<vmem>>, vector<1x8x256xf32>
    %88 = vector.shape_cast %87 : vector<1x8x256xf32> to vector<8x256xf32>
    %89 = arith.truncf %85 : vector<8x128xf32> to vector<8x128xbf16>
    %c0_57 = arith.constant 0 : index
    %c0_58 = arith.constant 0 : index
    %90 = vector.load %arg7[%c0_57, %c0_58] : memref<128x256xbf16, #tpu.memory_space<vmem>>, vector<128x256xbf16>
    %cst_59 = arith.constant dense<0.000000e+00> : vector<8x256xf32>
    %91 = tpu.matmul %89, %90, %cst_59 {dimension_numbers = #tpu.dot_dimension_numbers<[1], [0], [0], [1], [0, 0, 1, 1], [], []>} : vector<8x128xbf16>, vector<128x256xbf16>, vector<8x256xf32> -> vector<8x256xf32>
    %92 = arith.addf %88, %91 : vector<8x256xf32>
    %93 = arith.negf %92 : vector<8x256xf32>
    %94 = math.exp %93 : vector<8x256xf32>
    %cst_60 = arith.constant 1.000000e+00 : f32
    %95 = vector.broadcast %cst_60 : f32 to vector<8x256xf32>
    %96 = arith.addf %95, %94 : vector<8x256xf32>
    %97 = arith.divf %95, %96 : vector<8x256xf32>
    %98 = vector.extract_strided_slice %97 {offsets = [0, 0], sizes = [8, 128], strides = [1, 1]} : vector<8x256xf32> to vector<8x128xf32>
    %99 = vector.extract_strided_slice %97 {offsets = [0, 128], sizes = [8, 128], strides = [1, 1]} : vector<8x256xf32> to vector<8x128xf32>
    %100 = arith.index_cast %c2_i32 : i32 to index
    %c0_61 = arith.constant 0 : index
    %c0_62 = arith.constant 0 : index
    %101 = vector.load %arg12[%100, %c0_61, %c0_62] : memref<8x8x128xf32, #tpu.memory_space<vmem>>, vector<1x8x128xf32>
    %102 = vector.shape_cast %101 : vector<1x8x128xf32> to vector<8x128xf32>
    %103 = arith.mulf %99, %85 : vector<8x128xf32>
    %104 = arith.truncf %103 : vector<8x128xf32> to vector<8x128xbf16>
    %c0_63 = arith.constant 0 : index
    %c0_64 = arith.constant 0 : index
    %105 = vector.load %arg8[%c0_63, %c0_64] : memref<128x128xbf16, #tpu.memory_space<vmem>>, vector<128x128xbf16>
    %cst_65 = arith.constant dense<0.000000e+00> : vector<8x128xf32>
    %106 = tpu.matmul %104, %105, %cst_65 {dimension_numbers = #tpu.dot_dimension_numbers<[1], [0], [0], [1], [0, 0, 1, 1], [], []>} : vector<8x128xbf16>, vector<128x128xbf16>, vector<8x128xf32> -> vector<8x128xf32>
    %107 = arith.addf %102, %106 : vector<8x128xf32>
    %108 = math.tanh %107 : vector<8x128xf32>
    %109 = arith.subf %108, %85 : vector<8x128xf32>
    %110 = arith.mulf %98, %109 : vector<8x128xf32>
    %111 = arith.addf %85, %110 : vector<8x128xf32>
    %c0_66 = arith.constant 0 : index
    %c0_67 = arith.constant 0 : index
    %112 = vector.load %arg10[%c0_66, %c0_67] : memref<8x128xf32, #tpu.memory_space<vmem>>, vector<8x128xf32>
    tpu.vector_store %arg10[%c0_66, %c0_67], %111 {strides = array<i32>} : memref<8x128xf32, #tpu.memory_space<vmem>>, vector<8x128xf32>,
    %113 = arith.truncf %111 : vector<8x128xf32> to vector<8x128xbf16>
    %114 = arith.index_cast %c2_i32 : i32 to index
    %c0_68 = arith.constant 0 : index
    %c0_69 = arith.constant 0 : index
    %115 = vector.load %arg9[%114, %c0_68, %c0_69] : memref<8x8x128xbf16, #tpu.memory_space<vmem>>, vector<1x8x128xbf16>
    %116 = vector.shape_cast %115 : vector<1x8x128xbf16> to vector<8x128xbf16>
    %117 = vector.shape_cast %113 : vector<8x128xbf16> to vector<1x8x128xbf16>
    tpu.vector_store %arg9[%114, %c0_68, %c0_69], %117 {strides = array<i32>} : memref<8x8x128xbf16, #tpu.memory_space<vmem>>, vector<1x8x128xbf16>,
    %c3_i32 = arith.constant 3 : i32
    %c0_70 = arith.constant 0 : index
    %c0_71 = arith.constant 0 : index
    %118 = vector.load %arg10[%c0_70, %c0_71] : memref<8x128xf32, #tpu.memory_space<vmem>>, vector<8x128xf32>
    %119 = arith.index_cast %c3_i32 : i32 to index
    %c0_72 = arith.constant 0 : index
    %c0_73 = arith.constant 0 : index
    %120 = vector.load %arg11[%119, %c0_72, %c0_73] : memref<8x8x256xf32, #tpu.memory_space<vmem>>, vector<1x8x256xf32>
    %121 = vector.shape_cast %120 : vector<1x8x256xf32> to vector<8x256xf32>
    %122 = arith.truncf %118 : vector<8x128xf32> to vector<8x128xbf16>
    %c0_74 = arith.constant 0 : index
    %c0_75 = arith.constant 0 : index
    %123 = vector.load %arg7[%c0_74, %c0_75] : memref<128x256xbf16, #tpu.memory_space<vmem>>, vector<128x256xbf16>
    %cst_76 = arith.constant dense<0.000000e+00> : vector<8x256xf32>
    %124 = tpu.matmul %122, %123, %cst_76 {dimension_numbers = #tpu.dot_dimension_numbers<[1], [0], [0], [1], [0, 0, 1, 1], [], []>} : vector<8x128xbf16>, vector<128x256xbf16>, vector<8x256xf32> -> vector<8x256xf32>
    %125 = arith.addf %121, %124 : vector<8x256xf32>
    %126 = arith.negf %125 : vector<8x256xf32>
    %127 = math.exp %126 : vector<8x256xf32>
    %cst_77 = arith.constant 1.000000e+00 : f32
    %128 = vector.broadcast %cst_77 : f32 to vector<8x256xf32>
    %129 = arith.addf %128, %127 : vector<8x256xf32>
    %130 = arith.divf %128, %129 : vector<8x256xf32>
    %131 = vector.extract_strided_slice %130 {offsets = [0, 0], sizes = [8, 128], strides = [1, 1]} : vector<8x256xf32> to vector<8x128xf32>
    %132 = vector.extract_strided_slice %130 {offsets = [0, 128], sizes = [8, 128], strides = [1, 1]} : vector<8x256xf32> to vector<8x128xf32>
    %133 = arith.index_cast %c3_i32 : i32 to index
    %c0_78 = arith.constant 0 : index
    %c0_79 = arith.constant 0 : index
    %134 = vector.load %arg12[%133, %c0_78, %c0_79] : memref<8x8x128xf32, #tpu.memory_space<vmem>>, vector<1x8x128xf32>
    %135 = vector.shape_cast %134 : vector<1x8x128xf32> to vector<8x128xf32>
    %136 = arith.mulf %132, %118 : vector<8x128xf32>
    %137 = arith.truncf %136 : vector<8x128xf32> to vector<8x128xbf16>
    %c0_80 = arith.constant 0 : index
    %c0_81 = arith.constant 0 : index
    %138 = vector.load %arg8[%c0_80, %c0_81] : memref<128x128xbf16, #tpu.memory_space<vmem>>, vector<128x128xbf16>
    %cst_82 = arith.constant dense<0.000000e+00> : vector<8x128xf32>
    %139 = tpu.matmul %137, %138, %cst_82 {dimension_numbers = #tpu.dot_dimension_numbers<[1], [0], [0], [1], [0, 0, 1, 1], [], []>} : vector<8x128xbf16>, vector<128x128xbf16>, vector<8x128xf32> -> vector<8x128xf32>
    %140 = arith.addf %135, %139 : vector<8x128xf32>
    %141 = math.tanh %140 : vector<8x128xf32>
    %142 = arith.subf %141, %118 : vector<8x128xf32>
    %143 = arith.mulf %131, %142 : vector<8x128xf32>
    %144 = arith.addf %118, %143 : vector<8x128xf32>
    %c0_83 = arith.constant 0 : index
    %c0_84 = arith.constant 0 : index
    %145 = vector.load %arg10[%c0_83, %c0_84] : memref<8x128xf32, #tpu.memory_space<vmem>>, vector<8x128xf32>
    tpu.vector_store %arg10[%c0_83, %c0_84], %144 {strides = array<i32>} : memref<8x128xf32, #tpu.memory_space<vmem>>, vector<8x128xf32>,
    %146 = arith.truncf %144 : vector<8x128xf32> to vector<8x128xbf16>
    %147 = arith.index_cast %c3_i32 : i32 to index
    %c0_85 = arith.constant 0 : index
    %c0_86 = arith.constant 0 : index
    %148 = vector.load %arg9[%147, %c0_85, %c0_86] : memref<8x8x128xbf16, #tpu.memory_space<vmem>>, vector<1x8x128xbf16>
    %149 = vector.shape_cast %148 : vector<1x8x128xbf16> to vector<8x128xbf16>
    %150 = vector.shape_cast %146 : vector<8x128xbf16> to vector<1x8x128xbf16>
    tpu.vector_store %arg9[%147, %c0_85, %c0_86], %150 {strides = array<i32>} : memref<8x8x128xbf16, #tpu.memory_space<vmem>>, vector<1x8x128xbf16>,
    %c4_i32 = arith.constant 4 : i32
    %c0_87 = arith.constant 0 : index
    %c0_88 = arith.constant 0 : index
    %151 = vector.load %arg10[%c0_87, %c0_88] : memref<8x128xf32, #tpu.memory_space<vmem>>, vector<8x128xf32>
    %152 = arith.index_cast %c4_i32 : i32 to index
    %c0_89 = arith.constant 0 : index
    %c0_90 = arith.constant 0 : index
    %153 = vector.load %arg11[%152, %c0_89, %c0_90] : memref<8x8x256xf32, #tpu.memory_space<vmem>>, vector<1x8x256xf32>
    %154 = vector.shape_cast %153 : vector<1x8x256xf32> to vector<8x256xf32>
    %155 = arith.truncf %151 : vector<8x128xf32> to vector<8x128xbf16>
    %c0_91 = arith.constant 0 : index
    %c0_92 = arith.constant 0 : index
    %156 = vector.load %arg7[%c0_91, %c0_92] : memref<128x256xbf16, #tpu.memory_space<vmem>>, vector<128x256xbf16>
    %cst_93 = arith.constant dense<0.000000e+00> : vector<8x256xf32>
    %157 = tpu.matmul %155, %156, %cst_93 {dimension_numbers = #tpu.dot_dimension_numbers<[1], [0], [0], [1], [0, 0, 1, 1], [], []>} : vector<8x128xbf16>, vector<128x256xbf16>, vector<8x256xf32> -> vector<8x256xf32>
    %158 = arith.addf %154, %157 : vector<8x256xf32>
    %159 = arith.negf %158 : vector<8x256xf32>
    %160 = math.exp %159 : vector<8x256xf32>
    %cst_94 = arith.constant 1.000000e+00 : f32
    %161 = vector.broadcast %cst_94 : f32 to vector<8x256xf32>
    %162 = arith.addf %161, %160 : vector<8x256xf32>
    %163 = arith.divf %161, %162 : vector<8x256xf32>
    %164 = vector.extract_strided_slice %163 {offsets = [0, 0], sizes = [8, 128], strides = [1, 1]} : vector<8x256xf32> to vector<8x128xf32>
    %165 = vector.extract_strided_slice %163 {offsets = [0, 128], sizes = [8, 128], strides = [1, 1]} : vector<8x256xf32> to vector<8x128xf32>
    %166 = arith.index_cast %c4_i32 : i32 to index
    %c0_95 = arith.constant 0 : index
    %c0_96 = arith.constant 0 : index
    %167 = vector.load %arg12[%166, %c0_95, %c0_96] : memref<8x8x128xf32, #tpu.memory_space<vmem>>, vector<1x8x128xf32>
    %168 = vector.shape_cast %167 : vector<1x8x128xf32> to vector<8x128xf32>
    %169 = arith.mulf %165, %151 : vector<8x128xf32>
    %170 = arith.truncf %169 : vector<8x128xf32> to vector<8x128xbf16>
    %c0_97 = arith.constant 0 : index
    %c0_98 = arith.constant 0 : index
    %171 = vector.load %arg8[%c0_97, %c0_98] : memref<128x128xbf16, #tpu.memory_space<vmem>>, vector<128x128xbf16>
    %cst_99 = arith.constant dense<0.000000e+00> : vector<8x128xf32>
    %172 = tpu.matmul %170, %171, %cst_99 {dimension_numbers = #tpu.dot_dimension_numbers<[1], [0], [0], [1], [0, 0, 1, 1], [], []>} : vector<8x128xbf16>, vector<128x128xbf16>, vector<8x128xf32> -> vector<8x128xf32>
    %173 = arith.addf %168, %172 : vector<8x128xf32>
    %174 = math.tanh %173 : vector<8x128xf32>
    %175 = arith.subf %174, %151 : vector<8x128xf32>
    %176 = arith.mulf %164, %175 : vector<8x128xf32>
    %177 = arith.addf %151, %176 : vector<8x128xf32>
    %c0_100 = arith.constant 0 : index
    %c0_101 = arith.constant 0 : index
    %178 = vector.load %arg10[%c0_100, %c0_101] : memref<8x128xf32, #tpu.memory_space<vmem>>, vector<8x128xf32>
    tpu.vector_store %arg10[%c0_100, %c0_101], %177 {strides = array<i32>} : memref<8x128xf32, #tpu.memory_space<vmem>>, vector<8x128xf32>,
    %179 = arith.truncf %177 : vector<8x128xf32> to vector<8x128xbf16>
    %180 = arith.index_cast %c4_i32 : i32 to index
    %c0_102 = arith.constant 0 : index
    %c0_103 = arith.constant 0 : index
    %181 = vector.load %arg9[%180, %c0_102, %c0_103] : memref<8x8x128xbf16, #tpu.memory_space<vmem>>, vector<1x8x128xbf16>
    %182 = vector.shape_cast %181 : vector<1x8x128xbf16> to vector<8x128xbf16>
    %183 = vector.shape_cast %179 : vector<8x128xbf16> to vector<1x8x128xbf16>
    tpu.vector_store %arg9[%180, %c0_102, %c0_103], %183 {strides = array<i32>} : memref<8x8x128xbf16, #tpu.memory_space<vmem>>, vector<1x8x128xbf16>,
    %c5_i32 = arith.constant 5 : i32
    %c0_104 = arith.constant 0 : index
    %c0_105 = arith.constant 0 : index
    %184 = vector.load %arg10[%c0_104, %c0_105] : memref<8x128xf32, #tpu.memory_space<vmem>>, vector<8x128xf32>
    %185 = arith.index_cast %c5_i32 : i32 to index
    %c0_106 = arith.constant 0 : index
    %c0_107 = arith.constant 0 : index
    %186 = vector.load %arg11[%185, %c0_106, %c0_107] : memref<8x8x256xf32, #tpu.memory_space<vmem>>, vector<1x8x256xf32>
    %187 = vector.shape_cast %186 : vector<1x8x256xf32> to vector<8x256xf32>
    %188 = arith.truncf %184 : vector<8x128xf32> to vector<8x128xbf16>
    %c0_108 = arith.constant 0 : index
    %c0_109 = arith.constant 0 : index
    %189 = vector.load %arg7[%c0_108, %c0_109] : memref<128x256xbf16, #tpu.memory_space<vmem>>, vector<128x256xbf16>
    %cst_110 = arith.constant dense<0.000000e+00> : vector<8x256xf32>
    %190 = tpu.matmul %188, %189, %cst_110 {dimension_numbers = #tpu.dot_dimension_numbers<[1], [0], [0], [1], [0, 0, 1, 1], [], []>} : vector<8x128xbf16>, vector<128x256xbf16>, vector<8x256xf32> -> vector<8x256xf32>
    %191 = arith.addf %187, %190 : vector<8x256xf32>
    %192 = arith.negf %191 : vector<8x256xf32>
    %193 = math.exp %192 : vector<8x256xf32>
    %cst_111 = arith.constant 1.000000e+00 : f32
    %194 = vector.broadcast %cst_111 : f32 to vector<8x256xf32>
    %195 = arith.addf %194, %193 : vector<8x256xf32>
    %196 = arith.divf %194, %195 : vector<8x256xf32>
    %197 = vector.extract_strided_slice %196 {offsets = [0, 0], sizes = [8, 128], strides = [1, 1]} : vector<8x256xf32> to vector<8x128xf32>
    %198 = vector.extract_strided_slice %196 {offsets = [0, 128], sizes = [8, 128], strides = [1, 1]} : vector<8x256xf32> to vector<8x128xf32>
    %199 = arith.index_cast %c5_i32 : i32 to index
    %c0_112 = arith.constant 0 : index
    %c0_113 = arith.constant 0 : index
    %200 = vector.load %arg12[%199, %c0_112, %c0_113] : memref<8x8x128xf32, #tpu.memory_space<vmem>>, vector<1x8x128xf32>
    %201 = vector.shape_cast %200 : vector<1x8x128xf32> to vector<8x128xf32>
    %202 = arith.mulf %198, %184 : vector<8x128xf32>
    %203 = arith.truncf %202 : vector<8x128xf32> to vector<8x128xbf16>
    %c0_114 = arith.constant 0 : index
    %c0_115 = arith.constant 0 : index
    %204 = vector.load %arg8[%c0_114, %c0_115] : memref<128x128xbf16, #tpu.memory_space<vmem>>, vector<128x128xbf16>
    %cst_116 = arith.constant dense<0.000000e+00> : vector<8x128xf32>
    %205 = tpu.matmul %203, %204, %cst_116 {dimension_numbers = #tpu.dot_dimension_numbers<[1], [0], [0], [1], [0, 0, 1, 1], [], []>} : vector<8x128xbf16>, vector<128x128xbf16>, vector<8x128xf32> -> vector<8x128xf32>
    %206 = arith.addf %201, %205 : vector<8x128xf32>
    %207 = math.tanh %206 : vector<8x128xf32>
    %208 = arith.subf %207, %184 : vector<8x128xf32>
    %209 = arith.mulf %197, %208 : vector<8x128xf32>
    %210 = arith.addf %184, %209 : vector<8x128xf32>
    %c0_117 = arith.constant 0 : index
    %c0_118 = arith.constant 0 : index
    %211 = vector.load %arg10[%c0_117, %c0_118] : memref<8x128xf32, #tpu.memory_space<vmem>>, vector<8x128xf32>
    tpu.vector_store %arg10[%c0_117, %c0_118], %210 {strides = array<i32>} : memref<8x128xf32, #tpu.memory_space<vmem>>, vector<8x128xf32>,
    %212 = arith.truncf %210 : vector<8x128xf32> to vector<8x128xbf16>
    %213 = arith.index_cast %c5_i32 : i32 to index
    %c0_119 = arith.constant 0 : index
    %c0_120 = arith.constant 0 : index
    %214 = vector.load %arg9[%213, %c0_119, %c0_120] : memref<8x8x128xbf16, #tpu.memory_space<vmem>>, vector<1x8x128xbf16>
    %215 = vector.shape_cast %214 : vector<1x8x128xbf16> to vector<8x128xbf16>
    %216 = vector.shape_cast %212 : vector<8x128xbf16> to vector<1x8x128xbf16>
    tpu.vector_store %arg9[%213, %c0_119, %c0_120], %216 {strides = array<i32>} : memref<8x8x128xbf16, #tpu.memory_space<vmem>>, vector<1x8x128xbf16>,
    %c6_i32 = arith.constant 6 : i32
    %c0_121 = arith.constant 0 : index
    %c0_122 = arith.constant 0 : index
    %217 = vector.load %arg10[%c0_121, %c0_122] : memref<8x128xf32, #tpu.memory_space<vmem>>, vector<8x128xf32>
    %218 = arith.index_cast %c6_i32 : i32 to index
    %c0_123 = arith.constant 0 : index
    %c0_124 = arith.constant 0 : index
    %219 = vector.load %arg11[%218, %c0_123, %c0_124] : memref<8x8x256xf32, #tpu.memory_space<vmem>>, vector<1x8x256xf32>
    %220 = vector.shape_cast %219 : vector<1x8x256xf32> to vector<8x256xf32>
    %221 = arith.truncf %217 : vector<8x128xf32> to vector<8x128xbf16>
    %c0_125 = arith.constant 0 : index
    %c0_126 = arith.constant 0 : index
    %222 = vector.load %arg7[%c0_125, %c0_126] : memref<128x256xbf16, #tpu.memory_space<vmem>>, vector<128x256xbf16>
    %cst_127 = arith.constant dense<0.000000e+00> : vector<8x256xf32>
    %223 = tpu.matmul %221, %222, %cst_127 {dimension_numbers = #tpu.dot_dimension_numbers<[1], [0], [0], [1], [0, 0, 1, 1], [], []>} : vector<8x128xbf16>, vector<128x256xbf16>, vector<8x256xf32> -> vector<8x256xf32>
    %224 = arith.addf %220, %223 : vector<8x256xf32>
    %225 = arith.negf %224 : vector<8x256xf32>
    %226 = math.exp %225 : vector<8x256xf32>
    %cst_128 = arith.constant 1.000000e+00 : f32
    %227 = vector.broadcast %cst_128 : f32 to vector<8x256xf32>
    %228 = arith.addf %227, %226 : vector<8x256xf32>
    %229 = arith.divf %227, %228 : vector<8x256xf32>
    %230 = vector.extract_strided_slice %229 {offsets = [0, 0], sizes = [8, 128], strides = [1, 1]} : vector<8x256xf32> to vector<8x128xf32>
    %231 = vector.extract_strided_slice %229 {offsets = [0, 128], sizes = [8, 128], strides = [1, 1]} : vector<8x256xf32> to vector<8x128xf32>
    %232 = arith.index_cast %c6_i32 : i32 to index
    %c0_129 = arith.constant 0 : index
    %c0_130 = arith.constant 0 : index
    %233 = vector.load %arg12[%232, %c0_129, %c0_130] : memref<8x8x128xf32, #tpu.memory_space<vmem>>, vector<1x8x128xf32>
    %234 = vector.shape_cast %233 : vector<1x8x128xf32> to vector<8x128xf32>
    %235 = arith.mulf %231, %217 : vector<8x128xf32>
    %236 = arith.truncf %235 : vector<8x128xf32> to vector<8x128xbf16>
    %c0_131 = arith.constant 0 : index
    %c0_132 = arith.constant 0 : index
    %237 = vector.load %arg8[%c0_131, %c0_132] : memref<128x128xbf16, #tpu.memory_space<vmem>>, vector<128x128xbf16>
    %cst_133 = arith.constant dense<0.000000e+00> : vector<8x128xf32>
    %238 = tpu.matmul %236, %237, %cst_133 {dimension_numbers = #tpu.dot_dimension_numbers<[1], [0], [0], [1], [0, 0, 1, 1], [], []>} : vector<8x128xbf16>, vector<128x128xbf16>, vector<8x128xf32> -> vector<8x128xf32>
    %239 = arith.addf %234, %238 : vector<8x128xf32>
    %240 = math.tanh %239 : vector<8x128xf32>
    %241 = arith.subf %240, %217 : vector<8x128xf32>
    %242 = arith.mulf %230, %241 : vector<8x128xf32>
    %243 = arith.addf %217, %242 : vector<8x128xf32>
    %c0_134 = arith.constant 0 : index
    %c0_135 = arith.constant 0 : index
    %244 = vector.load %arg10[%c0_134, %c0_135] : memref<8x128xf32, #tpu.memory_space<vmem>>, vector<8x128xf32>
    tpu.vector_store %arg10[%c0_134, %c0_135], %243 {strides = array<i32>} : memref<8x128xf32, #tpu.memory_space<vmem>>, vector<8x128xf32>,
    %245 = arith.truncf %243 : vector<8x128xf32> to vector<8x128xbf16>
    %246 = arith.index_cast %c6_i32 : i32 to index
    %c0_136 = arith.constant 0 : index
    %c0_137 = arith.constant 0 : index
    %247 = vector.load %arg9[%246, %c0_136, %c0_137] : memref<8x8x128xbf16, #tpu.memory_space<vmem>>, vector<1x8x128xbf16>
    %248 = vector.shape_cast %247 : vector<1x8x128xbf16> to vector<8x128xbf16>
    %249 = vector.shape_cast %245 : vector<8x128xbf16> to vector<1x8x128xbf16>
    tpu.vector_store %arg9[%246, %c0_136, %c0_137], %249 {strides = array<i32>} : memref<8x8x128xbf16, #tpu.memory_space<vmem>>, vector<1x8x128xbf16>,
    %c7_i32 = arith.constant 7 : i32
    %c0_138 = arith.constant 0 : index
    %c0_139 = arith.constant 0 : index
    %250 = vector.load %arg10[%c0_138, %c0_139] : memref<8x128xf32, #tpu.memory_space<vmem>>, vector<8x128xf32>
    %251 = arith.index_cast %c7_i32 : i32 to index
    %c0_140 = arith.constant 0 : index
    %c0_141 = arith.constant 0 : index
    %252 = vector.load %arg11[%251, %c0_140, %c0_141] : memref<8x8x256xf32, #tpu.memory_space<vmem>>, vector<1x8x256xf32>
    %253 = vector.shape_cast %252 : vector<1x8x256xf32> to vector<8x256xf32>
    %254 = arith.truncf %250 : vector<8x128xf32> to vector<8x128xbf16>
    %c0_142 = arith.constant 0 : index
    %c0_143 = arith.constant 0 : index
    %255 = vector.load %arg7[%c0_142, %c0_143] : memref<128x256xbf16, #tpu.memory_space<vmem>>, vector<128x256xbf16>
    %cst_144 = arith.constant dense<0.000000e+00> : vector<8x256xf32>
    %256 = tpu.matmul %254, %255, %cst_144 {dimension_numbers = #tpu.dot_dimension_numbers<[1], [0], [0], [1], [0, 0, 1, 1], [], []>} : vector<8x128xbf16>, vector<128x256xbf16>, vector<8x256xf32> -> vector<8x256xf32>
    %257 = arith.addf %253, %256 : vector<8x256xf32>
    %258 = arith.negf %257 : vector<8x256xf32>
    %259 = math.exp %258 : vector<8x256xf32>
    %cst_145 = arith.constant 1.000000e+00 : f32
    %260 = vector.broadcast %cst_145 : f32 to vector<8x256xf32>
    %261 = arith.addf %260, %259 : vector<8x256xf32>
    %262 = arith.divf %260, %261 : vector<8x256xf32>
    %263 = vector.extract_strided_slice %262 {offsets = [0, 0], sizes = [8, 128], strides = [1, 1]} : vector<8x256xf32> to vector<8x128xf32>
    %264 = vector.extract_strided_slice %262 {offsets = [0, 128], sizes = [8, 128], strides = [1, 1]} : vector<8x256xf32> to vector<8x128xf32>
    %265 = arith.index_cast %c7_i32 : i32 to index
    %c0_146 = arith.constant 0 : index
    %c0_147 = arith.constant 0 : index
    %266 = vector.load %arg12[%265, %c0_146, %c0_147] : memref<8x8x128xf32, #tpu.memory_space<vmem>>, vector<1x8x128xf32>
    %267 = vector.shape_cast %266 : vector<1x8x128xf32> to vector<8x128xf32>
    %268 = arith.mulf %264, %250 : vector<8x128xf32>
    %269 = arith.truncf %268 : vector<8x128xf32> to vector<8x128xbf16>
    %c0_148 = arith.constant 0 : index
    %c0_149 = arith.constant 0 : index
    %270 = vector.load %arg8[%c0_148, %c0_149] : memref<128x128xbf16, #tpu.memory_space<vmem>>, vector<128x128xbf16>
    %cst_150 = arith.constant dense<0.000000e+00> : vector<8x128xf32>
    %271 = tpu.matmul %269, %270, %cst_150 {dimension_numbers = #tpu.dot_dimension_numbers<[1], [0], [0], [1], [0, 0, 1, 1], [], []>} : vector<8x128xbf16>, vector<128x128xbf16>, vector<8x128xf32> -> vector<8x128xf32>
    %272 = arith.addf %267, %271 : vector<8x128xf32>
    %273 = math.tanh %272 : vector<8x128xf32>
    %274 = arith.subf %273, %250 : vector<8x128xf32>
    %275 = arith.mulf %263, %274 : vector<8x128xf32>
    %276 = arith.addf %250, %275 : vector<8x128xf32>
    %c0_151 = arith.constant 0 : index
    %c0_152 = arith.constant 0 : index
    %277 = vector.load %arg10[%c0_151, %c0_152] : memref<8x128xf32, #tpu.memory_space<vmem>>, vector<8x128xf32>
    tpu.vector_store %arg10[%c0_151, %c0_152], %276 {strides = array<i32>} : memref<8x128xf32, #tpu.memory_space<vmem>>, vector<8x128xf32>,
    %278 = arith.truncf %276 : vector<8x128xf32> to vector<8x128xbf16>
    %279 = arith.index_cast %c7_i32 : i32 to index
    %c0_153 = arith.constant 0 : index
    %c0_154 = arith.constant 0 : index
    %280 = vector.load %arg9[%279, %c0_153, %c0_154] : memref<8x8x128xbf16, #tpu.memory_space<vmem>>, vector<1x8x128xbf16>
    %281 = vector.shape_cast %280 : vector<1x8x128xbf16> to vector<8x128xbf16>
    %282 = vector.shape_cast %278 : vector<8x128xbf16> to vector<1x8x128xbf16>
    tpu.vector_store %arg9[%279, %c0_153, %c0_154], %282 {strides = array<i32>} : memref<8x8x128xbf16, #tpu.memory_space<vmem>>, vector<1x8x128xbf16>,
    %c8_i32 = arith.constant 8 : i32
    return
  }
  func.func @transform_0(%arg0: i32, %arg1: i32) -> (i32, i32, i32) {
    %c0_i32 = arith.constant 0 : i32
    %c0_i32_0 = arith.constant 0 : i32
    return %arg1, %arg0, %c0_i32 : i32, i32, i32
  }
  func.func @transform_1(%arg0: i32, %arg1: i32) -> (i32, i32) {
    %c0_i32 = arith.constant 0 : i32
    %c0_i32_0 = arith.constant 0 : i32
    %c0_i32_1 = arith.constant 0 : i32
    return %c0_i32, %c0_i32_0 : i32, i32
  }
  func.func @transform_2(%arg0: i32, %arg1: i32) -> (i32, i32) {
    %c0_i32 = arith.constant 0 : i32
    %c0_i32_0 = arith.constant 0 : i32
    %c0_i32_1 = arith.constant 0 : i32
    return %c0_i32, %c0_i32_0 : i32, i32
  }
  func.func @transform_3(%arg0: i32, %arg1: i32) -> (i32, i32) {
    %c0_i32 = arith.constant 0 : i32
    %c0_i32_0 = arith.constant 0 : i32
    %c0_i32_1 = arith.constant 0 : i32
    return %c0_i32, %c0_i32_0 : i32, i32
  }
  func.func @transform_4(%arg0: i32, %arg1: i32) -> (i32, i32) {
    %c0_i32 = arith.constant 0 : i32
    %c0_i32_0 = arith.constant 0 : i32
    %c0_i32_1 = arith.constant 0 : i32
    return %c0_i32, %c0_i32_0 : i32, i32
  }
  func.func @transform_5(%arg0: i32, %arg1: i32) -> (i32, i32) {
    %c0_i32 = arith.constant 0 : i32
    %c0_i32_0 = arith.constant 0 : i32
    %c0_i32_1 = arith.constant 0 : i32
    return %c0_i32, %c0_i32_0 : i32, i32
  }
  func.func @transform_6(%arg0: i32, %arg1: i32) -> (i32, i32) {
    %c0_i32 = arith.constant 0 : i32
    %c0_i32_0 = arith.constant 0 : i32
    %c0_i32_1 = arith.constant 0 : i32
    return %c0_i32, %c0_i32_0 : i32, i32
  }
  func.func @transform_7(%arg0: i32, %arg1: i32) -> (i32, i32, i32) {
    %c0_i32 = arith.constant 0 : i32
    %c0_i32_0 = arith.constant 0 : i32
    return %arg1, %arg0, %c0_i32 : i32, i32, i32
  }
}

module attributes {stable_mosaic.version = 11 : i64} {
  func.func @_gru_layer_kernel(%arg0: i32, %arg1: i32, %arg2: memref<8x8x128xbf16, #tpu.memory_space<vmem>>, %arg3: memref<128x256xbf16, #tpu.memory_space<vmem>>, %arg4: memref<1x256xf32, #tpu.memory_space<vmem>>, %arg5: memref<128x128xbf16, #tpu.memory_space<vmem>>, %arg6: memref<1x128xf32, #tpu.memory_space<vmem>>, %arg7: memref<128x256xbf16, #tpu.memory_space<vmem>>, %arg8: memref<128x128xbf16, #tpu.memory_space<vmem>>, %arg9: memref<8x8x128xbf16, #tpu.memory_space<vmem>>, %arg10: memref<8x128xf32, #tpu.memory_space<vmem>>, %arg11: memref<8x8x256xf32, #tpu.memory_space<vmem>>, %arg12: memref<8x8x128xf32, #tpu.memory_space<vmem>>) attributes {dimension_semantics = [#tpu.dimension_semantics<parallel>, #tpu.dimension_semantics<arbitrary>], iteration_bounds = array<i64: 1, 1>, scalar_prefetch = 0 : i64, scratch_operands = 3 : i64, tpu.core_type = #tpu.core_type<tc>, window_params = [{transform_indices = @transform_0, window_bounds = array<i64: 8, 8, 128>}, {pipeline_mode = #tpu.pipeline_mode<synchronous>, transform_indices = @transform_1, window_bounds = array<i64: 128, 256>}, {pipeline_mode = #tpu.pipeline_mode<synchronous>, transform_indices = @transform_2, window_bounds = array<i64: 1, 256>}, {pipeline_mode = #tpu.pipeline_mode<synchronous>, transform_indices = @transform_3, window_bounds = array<i64: 128, 128>}, {pipeline_mode = #tpu.pipeline_mode<synchronous>, transform_indices = @transform_4, window_bounds = array<i64: 1, 128>}, {pipeline_mode = #tpu.pipeline_mode<synchronous>, transform_indices = @transform_5, window_bounds = array<i64: 128, 256>}, {pipeline_mode = #tpu.pipeline_mode<synchronous>, transform_indices = @transform_6, window_bounds = array<i64: 128, 128>}, {transform_indices = @transform_7, window_bounds = array<i64: 8, 8, 128>}]} {
    %c0_i32 = arith.constant 0 : i32
    %0 = arith.cmpi eq, %arg1, %c0_i32 : i32
    %1 = arith.extui %0 : i1 to i32
    %c0_i32_0 = arith.constant 0 : i32
    %2 = arith.cmpi ne, %1, %c0_i32_0 : i32
    scf.if %2 {
      %cst_155 = arith.constant 0.000000e+00 : f32
      %283 = vector.broadcast %cst_155 : f32 to vector<8x128xf32>
      %c0_156 = arith.constant 0 : index
      %c0_157 = arith.constant 0 : index
      %284 = vector.load %arg10[%c0_156, %c0_157] : memref<8x128xf32, #tpu.memory_space<vmem>>, vector<8x128xf32>
      tpu.vector_store %arg10[%c0_156, %c0_157], %283 {strides = array<i32>} : memref<8x128xf32, #tpu.memory_space<vmem>>, vector<8x128xf32>,
    } else {
    }
    %c0 = arith.constant 0 : index
    %c0_1 = arith.constant 0 : index
    %c0_2 = arith.constant 0 : index
    %3 = vector.load %arg2[%c0, %c0_1, %c0_2] : memref<8x8x128xbf16, #tpu.memory_space<vmem>>, vector<8x8x128xbf16>
    %4 = vector.shape_cast %3 : vector<8x8x128xbf16> to vector<64x128xbf16>
    %c0_3 = arith.constant 0 : index
    %c0_4 = arith.constant 0 : index
    %5 = vector.load %arg3[%c0_3, %c0_4] : memref<128x256xbf16, #tpu.memory_space<vmem>>, vector<128x256xbf16>
    %cst = arith.constant dense<0.000000e+00> : vector<64x256xf32>
    %6 = tpu.matmul %4, %5, %cst {dimension_numbers = #tpu.dot_dimension_numbers<[1], [0], [0], [1], [0, 0, 1, 1], [], []>} : vector<64x128xbf16>, vector<128x256xbf16>, vector<64x256xf32> -> vector<64x256xf32>
    %c0_5 = arith.constant 0 : index
    %c0_6 = arith.constant 0 : index
    %7 = vector.load %arg4[%c0_5, %c0_6] : memref<1x256xf32, #tpu.memory_space<vmem>>, vector<1x256xf32>
    %8 = vector.broadcast %7 : vector<1x256xf32> to vector<64x256xf32>
    %9 = arith.addf %6, %8 : vector<64x256xf32>
    %10 = vector.shape_cast %9 : vector<64x256xf32> to vector<8x8x256xf32>
    %c0_7 = arith.constant 0 : index
    %c0_8 = arith.constant 0 : index
    %c0_9 = arith.constant 0 : index
    %11 = vector.load %arg11[%c0_7, %c0_8, %c0_9] : memref<8x8x256xf32, #tpu.memory_space<vmem>>, vector<8x8x256xf32>
    tpu.vector_store %arg11[%c0_7, %c0_8, %c0_9], %10 {strides = array<i32>} : memref<8x8x256xf32, #tpu.memory_space<vmem>>, vector<8x8x256xf32>,
    %c0_10 = arith.constant 0 : index
    %c0_11 = arith.constant 0 : index
    %12 = vector.load %arg5[%c0_10, %c0_11] : memref<128x128xbf16, #tpu.memory_space<vmem>>, vector<128x128xbf16>
    %cst_12 = arith.constant dense<0.000000e+00> : vector<64x128xf32>
    %13 = tpu.matmul %4, %12, %cst_12 {dimension_numbers = #tpu.dot_dimension_numbers<[1], [0], [0], [1], [0, 0, 1, 1], [], []>} : vector<64x128xbf16>, vector<128x128xbf16>, vector<64x128xf32> -> vector<64x128xf32>
    %c0_13 = arith.constant 0 : index
    %c0_14 = arith.constant 0 : index
    %14 = vector.load %arg6[%c0_13, %c0_14] : memref<1x128xf32, #tpu.memory_space<vmem>>, vector<1x128xf32>
    %15 = vector.broadcast %14 : vector<1x128xf32> to vector<64x128xf32>
    %16 = arith.addf %13, %15 : vector<64x128xf32>
    %17 = vector.shape_cast %16 : vector<64x128xf32> to vector<8x8x128xf32>
    %c0_15 = arith.constant 0 : index
    %c0_16 = arith.constant 0 : index
    %c0_17 = arith.constant 0 : index
    %18 = vector.load %arg12[%c0_15, %c0_16, %c0_17] : memref<8x8x128xf32, #tpu.memory_space<vmem>>, vector<8x8x128xf32>
    tpu.vector_store %arg12[%c0_15, %c0_16, %c0_17], %17 {strides = array<i32>} : memref<8x8x128xf32, #tpu.memory_space<vmem>>, vector<8x8x128xf32>,
    %c0_i32_18 = arith.constant 0 : i32
    %c0_19 = arith.constant 0 : index
    %c0_20 = arith.constant 0 : index
    %19 = vector.load %arg10[%c0_19, %c0_20] : memref<8x128xf32, #tpu.memory_space<vmem>>, vector<8x128xf32>
    %20 = arith.index_cast %c0_i32_18 : i32 to index
    %c0_21 = arith.constant 0 : index
    %c0_22 = arith.constant 0 : index
    %21 = vector.load %arg11[%20, %c0_21, %c0_22] : memref<8x8x256xf32, #tpu.memory_space<vmem>>, vector<1x8x256xf32>
    %22 = vector.shape_cast %21 : vector<1x8x256xf32> to vector<8x256xf32>
    %23 = arith.truncf %19 : vector<8x128xf32> to vector<8x128xbf16>
    %c0_23 = arith.constant 0 : index
    %c0_24 = arith.constant 0 : index
    %24 = vector.load %arg7[%c0_23, %c0_24] : memref<128x256xbf16, #tpu.memory_space<vmem>>, vector<128x256xbf16>
    %cst_25 = arith.constant dense<0.000000e+00> : vector<8x256xf32>
    %25 = tpu.matmul %23, %24, %cst_25 {dimension_numbers = #tpu.dot_dimension_numbers<[1], [0], [0], [1], [0, 0, 1, 1], [], []>} : vector<8x128xbf16>, vector<128x256xbf16>, vector<8x256xf32> -> vector<8x256xf32>
    %26 = arith.addf %22, %25 : vector<8x256xf32>
    %27 = arith.negf %26 : vector<8x256xf32>
    %28 = math.exp %27 : vector<8x256xf32>
    %cst_26 = arith.constant 1.000000e+00 : f32
    %29 = vector.broadcast %cst_26 : f32 to vector<8x256xf32>
    %30 = arith.addf %29, %28 : vector<8x256xf32>
    %31 = arith.divf %29, %30 : vector<8x256xf32>
    %32 = vector.extract_strided_slice %31 {offsets = [0, 0], sizes = [8, 128], strides = [1, 1]} : vector<8x256xf32> to vector<8x128xf32>
    %33 = vector.extract_strided_slice %31 {offsets = [0, 128], sizes = [8, 128], strides = [1, 1]} : vector<8x256xf32> to vector<8x128xf32>
    %34 = arith.index_cast %c0_i32_18 : i32 to index
    %c0_27 = arith.constant 0 : index
    %c0_28 = arith.constant 0 : index
    %35 = vector.load %arg12[%34, %c0_27, %c0_28] : memref<8x8x128xf32, #tpu.memory_space<vmem>>, vector<1x8x128xf32>
    %36 = vector.shape_cast %35 : vector<1x8x128xf32> to vector<8x128xf32>
    %37 = arith.mulf %33, %19 : vector<8x128xf32>
    %38 = arith.truncf %37 : vector<8x128xf32> to vector<8x128xbf16>
    %c0_29 = arith.constant 0 : index
    %c0_30 = arith.constant 0 : index
    %39 = vector.load %arg8[%c0_29, %c0_30] : memref<128x128xbf16, #tpu.memory_space<vmem>>, vector<128x128xbf16>
    %cst_31 = arith.constant dense<0.000000e+00> : vector<8x128xf32>
    %40 = tpu.matmul %38, %39, %cst_31 {dimension_numbers = #tpu.dot_dimension_numbers<[1], [0], [0], [1], [0, 0, 1, 1], [], []>} : vector<8x128xbf16>, vector<128x128xbf16>, vector<8x128xf32> -> vector<8x128xf32>
    %41 = arith.addf %36, %40 : vector<8x128xf32>
    %42 = math.tanh %41 : vector<8x128xf32>
    %43 = arith.subf %42, %19 : vector<8x128xf32>
    %44 = arith.mulf %32, %43 : vector<8x128xf32>
    %45 = arith.addf %19, %44 : vector<8x128xf32>
    %c0_32 = arith.constant 0 : index
    %c0_33 = arith.constant 0 : index
    %46 = vector.load %arg10[%c0_32, %c0_33] : memref<8x128xf32, #tpu.memory_space<vmem>>, vector<8x128xf32>
    tpu.vector_store %arg10[%c0_32, %c0_33], %45 {strides = array<i32>} : memref<8x128xf32, #tpu.memory_space<vmem>>, vector<8x128xf32>,
    %47 = arith.truncf %45 : vector<8x128xf32> to vector<8x128xbf16>
    %48 = arith.index_cast %c0_i32_18 : i32 to index
    %c0_34 = arith.constant 0 : index
    %c0_35 = arith.constant 0 : index
    %49 = vector.load %arg9[%48, %c0_34, %c0_35] : memref<8x8x128xbf16, #tpu.memory_space<vmem>>, vector<1x8x128xbf16>
    %50 = vector.shape_cast %49 : vector<1x8x128xbf16> to vector<8x128xbf16>
    %51 = vector.shape_cast %47 : vector<8x128xbf16> to vector<1x8x128xbf16>
    tpu.vector_store %arg9[%48, %c0_34, %c0_35], %51 {strides = array<i32>} : memref<8x8x128xbf16, #tpu.memory_space<vmem>>, vector<1x8x128xbf16>,
    %c1_i32 = arith.constant 1 : i32
    %c0_36 = arith.constant 0 : index
    %c0_37 = arith.constant 0 : index
    %52 = vector.load %arg10[%c0_36, %c0_37] : memref<8x128xf32, #tpu.memory_space<vmem>>, vector<8x128xf32>
    %53 = arith.index_cast %c1_i32 : i32 to index
    %c0_38 = arith.constant 0 : index
    %c0_39 = arith.constant 0 : index
    %54 = vector.load %arg11[%53, %c0_38, %c0_39] : memref<8x8x256xf32, #tpu.memory_space<vmem>>, vector<1x8x256xf32>
    %55 = vector.shape_cast %54 : vector<1x8x256xf32> to vector<8x256xf32>
    %56 = arith.truncf %52 : vector<8x128xf32> to vector<8x128xbf16>
    %c0_40 = arith.constant 0 : index
    %c0_41 = arith.constant 0 : index
    %57 = vector.load %arg7[%c0_40, %c0_41] : memref<128x256xbf16, #tpu.memory_space<vmem>>, vector<128x256xbf16>
    %cst_42 = arith.constant dense<0.000000e+00> : vector<8x256xf32>
    %58 = tpu.matmul %56, %57, %cst_42 {dimension_numbers = #tpu.dot_dimension_numbers<[1], [0], [0], [1], [0, 0, 1, 1], [], []>} : vector<8x128xbf16>, vector<128x256xbf16>, vector<8x256xf32> -> vector<8x256xf32>
    %59 = arith.addf %55, %58 : vector<8x256xf32>
    %60 = arith.negf %59 : vector<8x256xf32>
    %61 = math.exp %60 : vector<8x256xf32>
    %cst_43 = arith.constant 1.000000e+00 : f32
    %62 = vector.broadcast %cst_43 : f32 to vector<8x256xf32>
    %63 = arith.addf %62, %61 : vector<8x256xf32>
    %64 = arith.divf %62, %63 : vector<8x256xf32>
    %65 = vector.extract_strided_slice %64 {offsets = [0, 0], sizes = [8, 128], strides = [1, 1]} : vector<8x256xf32> to vector<8x128xf32>
    %66 = vector.extract_strided_slice %64 {offsets = [0, 128], sizes = [8, 128], strides = [1, 1]} : vector<8x256xf32> to vector<8x128xf32>
    %67 = arith.index_cast %c1_i32 : i32 to index
    %c0_44 = arith.constant 0 : index
    %c0_45 = arith.constant 0 : index
    %68 = vector.load %arg12[%67, %c0_44, %c0_45] : memref<8x8x128xf32, #tpu.memory_space<vmem>>, vector<1x8x128xf32>
    %69 = vector.shape_cast %68 : vector<1x8x128xf32> to vector<8x128xf32>
    %70 = arith.mulf %66, %52 : vector<8x128xf32>
    %71 = arith.truncf %70 : vector<8x128xf32> to vector<8x128xbf16>
    %c0_46 = arith.constant 0 : index
    %c0_47 = arith.constant 0 : index
    %72 = vector.load %arg8[%c0_46, %c0_47] : memref<128x128xbf16, #tpu.memory_space<vmem>>, vector<128x128xbf16>
    %cst_48 = arith.constant dense<0.000000e+00> : vector<8x128xf32>
    %73 = tpu.matmul %71, %72, %cst_48 {dimension_numbers = #tpu.dot_dimension_numbers<[1], [0], [0], [1], [0, 0, 1, 1], [], []>} : vector<8x128xbf16>, vector<128x128xbf16>, vector<8x128xf32> -> vector<8x128xf32>
    %74 = arith.addf %69, %73 : vector<8x128xf32>
    %75 = math.tanh %74 : vector<8x128xf32>
    %76 = arith.subf %75, %52 : vector<8x128xf32>
    %77 = arith.mulf %65, %76 : vector<8x128xf32>
    %78 = arith.addf %52, %77 : vector<8x128xf32>
    %c0_49 = arith.constant 0 : index
    %c0_50 = arith.constant 0 : index
    %79 = vector.load %arg10[%c0_49, %c0_50] : memref<8x128xf32, #tpu.memory_space<vmem>>, vector<8x128xf32>
    tpu.vector_store %arg10[%c0_49, %c0_50], %78 {strides = array<i32>} : memref<8x128xf32, #tpu.memory_space<vmem>>, vector<8x128xf32>,
    %80 = arith.truncf %78 : vector<8x128xf32> to vector<8x128xbf16>
    %81 = arith.index_cast %c1_i32 : i32 to index
    %c0_51 = arith.constant 0 : index
    %c0_52 = arith.constant 0 : index
    %82 = vector.load %arg9[%81, %c0_51, %c0_52] : memref<8x8x128xbf16, #tpu.memory_space<vmem>>, vector<1x8x128xbf16>
    %83 = vector.shape_cast %82 : vector<1x8x128xbf16> to vector<8x128xbf16>
    %84 = vector.shape_cast %80 : vector<8x128xbf16> to vector<1x8x128xbf16>
    tpu.vector_store %arg9[%81, %c0_51, %c0_52], %84 {strides = array<i32>} : memref<8x8x128xbf16, #tpu.memory_space<vmem>>, vector<1x8x128xbf16>,
    %c2_i32 = arith.constant 2 : i32
    %c0_53 = arith.constant 0 : index
    %c0_54 = arith.constant 0 : index
    %85 = vector.load %arg10[%c0_53, %c0_54] : memref<8x128xf32, #tpu.memory_space<vmem>>, vector<8x128xf32>
    %86 = arith.index_cast %c2_i32 : i32 to index
    %c0_55 = arith.constant 0 : index
    %c0_56 = arith.constant 0 : index
    %87 = vector.load %arg11[%86, %c0_55, %c0_56] : memref<8x8x256xf32, #tpu.memory_space<vmem>>, vector<1x8x256xf32>
    %88 = vector.shape_cast %87 : vector<1x8x256xf32> to vector<8x256xf32>
    %89 = arith.truncf %85 : vector<8x128xf32> to vector<8x128xbf16>
    %c0_57 = arith.constant 0 : index
    %c0_58 = arith.constant 0 : index
    %90 = vector.load %arg7[%c0_57, %c0_58] : memref<128x256xbf16, #tpu.memory_space<vmem>>, vector<128x256xbf16>
    %cst_59 = arith.constant dense<0.000000e+00> : vector<8x256xf32>
    %91 = tpu.matmul %89, %90, %cst_59 {dimension_numbers = #tpu.dot_dimension_numbers<[1], [0], [0], [1], [0, 0, 1, 1], [], []>} : vector<8x128xbf16>, vector<128x256xbf16>, vector<8x256xf32> -> vector<8x256xf32>
    %92 = arith.addf %88, %91 : vector<8x256xf32>
    %93 = arith.negf %92 : vector<8x256xf32>
    %94 = math.exp %93 : vector<8x256xf32>
    %cst_60 = arith.constant 1.000000e+00 : f32
    %95 = vector.broadcast %cst_60 : f32 to vector<8x256xf32>
    %96 = arith.addf %95, %94 : vector<8x256xf32>
    %97 = arith.divf %95, %96 : vector<8x256xf32>
    %98 = vector.extract_strided_slice %97 {offsets = [0, 0], sizes = [8, 128], strides = [1, 1]} : vector<8x256xf32> to vector<8x128xf32>
    %99 = vector.extract_strided_slice %97 {offsets = [0, 128], sizes = [8, 128], strides = [1, 1]} : vector<8x256xf32> to vector<8x128xf32>
    %100 = arith.index_cast %c2_i32 : i32 to index
    %c0_61 = arith.constant 0 : index
    %c0_62 = arith.constant 0 : index
    %101 = vector.load %arg12[%100, %c0_61, %c0_62] : memref<8x8x128xf32, #tpu.memory_space<vmem>>, vector<1x8x128xf32>
    %102 = vector.shape_cast %101 : vector<1x8x128xf32> to vector<8x128xf32>
    %103 = arith.mulf %99, %85 : vector<8x128xf32>
    %104 = arith.truncf %103 : vector<8x128xf32> to vector<8x128xbf16>
    %c0_63 = arith.constant 0 : index
    %c0_64 = arith.constant 0 : index
    %105 = vector.load %arg8[%c0_63, %c0_64] : memref<128x128xbf16, #tpu.memory_space<vmem>>, vector<128x128xbf16>
    %cst_65 = arith.constant dense<0.000000e+00> : vector<8x128xf32>
    %106 = tpu.matmul %104, %105, %cst_65 {dimension_numbers = #tpu.dot_dimension_numbers<[1], [0], [0], [1], [0, 0, 1, 1], [], []>} : vector<8x128xbf16>, vector<128x128xbf16>, vector<8x128xf32> -> vector<8x128xf32>
    %107 = arith.addf %102, %106 : vector<8x128xf32>
    %108 = math.tanh %107 : vector<8x128xf32>
    %109 = arith.subf %108, %85 : vector<8x128xf32>
    %110 = arith.mulf %98, %109 : vector<8x128xf32>
    %111 = arith.addf %85, %110 : vector<8x128xf32>
    %c0_66 = arith.constant 0 : index
    %c0_67 = arith.constant 0 : index
    %112 = vector.load %arg10[%c0_66, %c0_67] : memref<8x128xf32, #tpu.memory_space<vmem>>, vector<8x128xf32>
    tpu.vector_store %arg10[%c0_66, %c0_67], %111 {strides = array<i32>} : memref<8x128xf32, #tpu.memory_space<vmem>>, vector<8x128xf32>,
    %113 = arith.truncf %111 : vector<8x128xf32> to vector<8x128xbf16>
    %114 = arith.index_cast %c2_i32 : i32 to index
    %c0_68 = arith.constant 0 : index
    %c0_69 = arith.constant 0 : index
    %115 = vector.load %arg9[%114, %c0_68, %c0_69] : memref<8x8x128xbf16, #tpu.memory_space<vmem>>, vector<1x8x128xbf16>
    %116 = vector.shape_cast %115 : vector<1x8x128xbf16> to vector<8x128xbf16>
    %117 = vector.shape_cast %113 : vector<8x128xbf16> to vector<1x8x128xbf16>
    tpu.vector_store %arg9[%114, %c0_68, %c0_69], %117 {strides = array<i32>} : memref<8x8x128xbf16, #tpu.memory_space<vmem>>, vector<1x8x128xbf16>,
    %c3_i32 = arith.constant 3 : i32
    %c0_70 = arith.constant 0 : index
    %c0_71 = arith.constant 0 : index
    %118 = vector.load %arg10[%c0_70, %c0_71] : memref<8x128xf32, #tpu.memory_space<vmem>>, vector<8x128xf32>
    %119 = arith.index_cast %c3_i32 : i32 to index
    %c0_72 = arith.constant 0 : index
    %c0_73 = arith.constant 0 : index
    %120 = vector.load %arg11[%119, %c0_72, %c0_73] : memref<8x8x256xf32, #tpu.memory_space<vmem>>, vector<1x8x256xf32>
    %121 = vector.shape_cast %120 : vector<1x8x256xf32> to vector<8x256xf32>
    %122 = arith.truncf %118 : vector<8x128xf32> to vector<8x128xbf16>
    %c0_74 = arith.constant 0 : index
    %c0_75 = arith.constant 0 : index
    %123 = vector.load %arg7[%c0_74, %c0_75] : memref<128x256xbf16, #tpu.memory_space<vmem>>, vector<128x256xbf16>
    %cst_76 = arith.constant dense<0.000000e+00> : vector<8x256xf32>
    %124 = tpu.matmul %122, %123, %cst_76 {dimension_numbers = #tpu.dot_dimension_numbers<[1], [0], [0], [1], [0, 0, 1, 1], [], []>} : vector<8x128xbf16>, vector<128x256xbf16>, vector<8x256xf32> -> vector<8x256xf32>
    %125 = arith.addf %121, %124 : vector<8x256xf32>
    %126 = arith.negf %125 : vector<8x256xf32>
    %127 = math.exp %126 : vector<8x256xf32>
    %cst_77 = arith.constant 1.000000e+00 : f32
    %128 = vector.broadcast %cst_77 : f32 to vector<8x256xf32>
    %129 = arith.addf %128, %127 : vector<8x256xf32>
    %130 = arith.divf %128, %129 : vector<8x256xf32>
    %131 = vector.extract_strided_slice %130 {offsets = [0, 0], sizes = [8, 128], strides = [1, 1]} : vector<8x256xf32> to vector<8x128xf32>
    %132 = vector.extract_strided_slice %130 {offsets = [0, 128], sizes = [8, 128], strides = [1, 1]} : vector<8x256xf32> to vector<8x128xf32>
    %133 = arith.index_cast %c3_i32 : i32 to index
    %c0_78 = arith.constant 0 : index
    %c0_79 = arith.constant 0 : index
    %134 = vector.load %arg12[%133, %c0_78, %c0_79] : memref<8x8x128xf32, #tpu.memory_space<vmem>>, vector<1x8x128xf32>
    %135 = vector.shape_cast %134 : vector<1x8x128xf32> to vector<8x128xf32>
    %136 = arith.mulf %132, %118 : vector<8x128xf32>
    %137 = arith.truncf %136 : vector<8x128xf32> to vector<8x128xbf16>
    %c0_80 = arith.constant 0 : index
    %c0_81 = arith.constant 0 : index
    %138 = vector.load %arg8[%c0_80, %c0_81] : memref<128x128xbf16, #tpu.memory_space<vmem>>, vector<128x128xbf16>
    %cst_82 = arith.constant dense<0.000000e+00> : vector<8x128xf32>
    %139 = tpu.matmul %137, %138, %cst_82 {dimension_numbers = #tpu.dot_dimension_numbers<[1], [0], [0], [1], [0, 0, 1, 1], [], []>} : vector<8x128xbf16>, vector<128x128xbf16>, vector<8x128xf32> -> vector<8x128xf32>
    %140 = arith.addf %135, %139 : vector<8x128xf32>
    %141 = math.tanh %140 : vector<8x128xf32>
    %142 = arith.subf %141, %118 : vector<8x128xf32>
    %143 = arith.mulf %131, %142 : vector<8x128xf32>
    %144 = arith.addf %118, %143 : vector<8x128xf32>
    %c0_83 = arith.constant 0 : index
    %c0_84 = arith.constant 0 : index
    %145 = vector.load %arg10[%c0_83, %c0_84] : memref<8x128xf32, #tpu.memory_space<vmem>>, vector<8x128xf32>
    tpu.vector_store %arg10[%c0_83, %c0_84], %144 {strides = array<i32>} : memref<8x128xf32, #tpu.memory_space<vmem>>, vector<8x128xf32>,
    %146 = arith.truncf %144 : vector<8x128xf32> to vector<8x128xbf16>
    %147 = arith.index_cast %c3_i32 : i32 to index
    %c0_85 = arith.constant 0 : index
    %c0_86 = arith.constant 0 : index
    %148 = vector.load %arg9[%147, %c0_85, %c0_86] : memref<8x8x128xbf16, #tpu.memory_space<vmem>>, vector<1x8x128xbf16>
    %149 = vector.shape_cast %148 : vector<1x8x128xbf16> to vector<8x128xbf16>
    %150 = vector.shape_cast %146 : vector<8x128xbf16> to vector<1x8x128xbf16>
    tpu.vector_store %arg9[%147, %c0_85, %c0_86], %150 {strides = array<i32>} : memref<8x8x128xbf16, #tpu.memory_space<vmem>>, vector<1x8x128xbf16>,
    %c4_i32 = arith.constant 4 : i32
    %c0_87 = arith.constant 0 : index
    %c0_88 = arith.constant 0 : index
    %151 = vector.load %arg10[%c0_87, %c0_88] : memref<8x128xf32, #tpu.memory_space<vmem>>, vector<8x128xf32>
    %152 = arith.index_cast %c4_i32 : i32 to index
    %c0_89 = arith.constant 0 : index
    %c0_90 = arith.constant 0 : index
    %153 = vector.load %arg11[%152, %c0_89, %c0_90] : memref<8x8x256xf32, #tpu.memory_space<vmem>>, vector<1x8x256xf32>
    %154 = vector.shape_cast %153 : vector<1x8x256xf32> to vector<8x256xf32>
    %155 = arith.truncf %151 : vector<8x128xf32> to vector<8x128xbf16>
    %c0_91 = arith.constant 0 : index
    %c0_92 = arith.constant 0 : index
    %156 = vector.load %arg7[%c0_91, %c0_92] : memref<128x256xbf16, #tpu.memory_space<vmem>>, vector<128x256xbf16>
    %cst_93 = arith.constant dense<0.000000e+00> : vector<8x256xf32>
    %157 = tpu.matmul %155, %156, %cst_93 {dimension_numbers = #tpu.dot_dimension_numbers<[1], [0], [0], [1], [0, 0, 1, 1], [], []>} : vector<8x128xbf16>, vector<128x256xbf16>, vector<8x256xf32> -> vector<8x256xf32>
    %158 = arith.addf %154, %157 : vector<8x256xf32>
    %159 = arith.negf %158 : vector<8x256xf32>
    %160 = math.exp %159 : vector<8x256xf32>
    %cst_94 = arith.constant 1.000000e+00 : f32
    %161 = vector.broadcast %cst_94 : f32 to vector<8x256xf32>
    %162 = arith.addf %161, %160 : vector<8x256xf32>
    %163 = arith.divf %161, %162 : vector<8x256xf32>
    %164 = vector.extract_strided_slice %163 {offsets = [0, 0], sizes = [8, 128], strides = [1, 1]} : vector<8x256xf32> to vector<8x128xf32>
    %165 = vector.extract_strided_slice %163 {offsets = [0, 128], sizes = [8, 128], strides = [1, 1]} : vector<8x256xf32> to vector<8x128xf32>
    %166 = arith.index_cast %c4_i32 : i32 to index
    %c0_95 = arith.constant 0 : index
    %c0_96 = arith.constant 0 : index
    %167 = vector.load %arg12[%166, %c0_95, %c0_96] : memref<8x8x128xf32, #tpu.memory_space<vmem>>, vector<1x8x128xf32>
    %168 = vector.shape_cast %167 : vector<1x8x128xf32> to vector<8x128xf32>
    %169 = arith.mulf %165, %151 : vector<8x128xf32>
    %170 = arith.truncf %169 : vector<8x128xf32> to vector<8x128xbf16>
    %c0_97 = arith.constant 0 : index
    %c0_98 = arith.constant 0 : index
    %171 = vector.load %arg8[%c0_97, %c0_98] : memref<128x128xbf16, #tpu.memory_space<vmem>>, vector<128x128xbf16>
    %cst_99 = arith.constant dense<0.000000e+00> : vector<8x128xf32>
    %172 = tpu.matmul %170, %171, %cst_99 {dimension_numbers = #tpu.dot_dimension_numbers<[1], [0], [0], [1], [0, 0, 1, 1], [], []>} : vector<8x128xbf16>, vector<128x128xbf16>, vector<8x128xf32> -> vector<8x128xf32>
    %173 = arith.addf %168, %172 : vector<8x128xf32>
    %174 = math.tanh %173 : vector<8x128xf32>
    %175 = arith.subf %174, %151 : vector<8x128xf32>
    %176 = arith.mulf %164, %175 : vector<8x128xf32>
    %177 = arith.addf %151, %176 : vector<8x128xf32>
    %c0_100 = arith.constant 0 : index
    %c0_101 = arith.constant 0 : index
    %178 = vector.load %arg10[%c0_100, %c0_101] : memref<8x128xf32, #tpu.memory_space<vmem>>, vector<8x128xf32>
    tpu.vector_store %arg10[%c0_100, %c0_101], %177 {strides = array<i32>} : memref<8x128xf32, #tpu.memory_space<vmem>>, vector<8x128xf32>,
    %179 = arith.truncf %177 : vector<8x128xf32> to vector<8x128xbf16>
    %180 = arith.index_cast %c4_i32 : i32 to index
    %c0_102 = arith.constant 0 : index
    %c0_103 = arith.constant 0 : index
    %181 = vector.load %arg9[%180, %c0_102, %c0_103] : memref<8x8x128xbf16, #tpu.memory_space<vmem>>, vector<1x8x128xbf16>
    %182 = vector.shape_cast %181 : vector<1x8x128xbf16> to vector<8x128xbf16>
    %183 = vector.shape_cast %179 : vector<8x128xbf16> to vector<1x8x128xbf16>
    tpu.vector_store %arg9[%180, %c0_102, %c0_103], %183 {strides = array<i32>} : memref<8x8x128xbf16, #tpu.memory_space<vmem>>, vector<1x8x128xbf16>,
    %c5_i32 = arith.constant 5 : i32
    %c0_104 = arith.constant 0 : index
    %c0_105 = arith.constant 0 : index
    %184 = vector.load %arg10[%c0_104, %c0_105] : memref<8x128xf32, #tpu.memory_space<vmem>>, vector<8x128xf32>
    %185 = arith.index_cast %c5_i32 : i32 to index
    %c0_106 = arith.constant 0 : index
    %c0_107 = arith.constant 0 : index
    %186 = vector.load %arg11[%185, %c0_106, %c0_107] : memref<8x8x256xf32, #tpu.memory_space<vmem>>, vector<1x8x256xf32>
    %187 = vector.shape_cast %186 : vector<1x8x256xf32> to vector<8x256xf32>
    %188 = arith.truncf %184 : vector<8x128xf32> to vector<8x128xbf16>
    %c0_108 = arith.constant 0 : index
    %c0_109 = arith.constant 0 : index
    %189 = vector.load %arg7[%c0_108, %c0_109] : memref<128x256xbf16, #tpu.memory_space<vmem>>, vector<128x256xbf16>
    %cst_110 = arith.constant dense<0.000000e+00> : vector<8x256xf32>
    %190 = tpu.matmul %188, %189, %cst_110 {dimension_numbers = #tpu.dot_dimension_numbers<[1], [0], [0], [1], [0, 0, 1, 1], [], []>} : vector<8x128xbf16>, vector<128x256xbf16>, vector<8x256xf32> -> vector<8x256xf32>
    %191 = arith.addf %187, %190 : vector<8x256xf32>
    %192 = arith.negf %191 : vector<8x256xf32>
    %193 = math.exp %192 : vector<8x256xf32>
    %cst_111 = arith.constant 1.000000e+00 : f32
    %194 = vector.broadcast %cst_111 : f32 to vector<8x256xf32>
    %195 = arith.addf %194, %193 : vector<8x256xf32>
    %196 = arith.divf %194, %195 : vector<8x256xf32>
    %197 = vector.extract_strided_slice %196 {offsets = [0, 0], sizes = [8, 128], strides = [1, 1]} : vector<8x256xf32> to vector<8x128xf32>
    %198 = vector.extract_strided_slice %196 {offsets = [0, 128], sizes = [8, 128], strides = [1, 1]} : vector<8x256xf32> to vector<8x128xf32>
    %199 = arith.index_cast %c5_i32 : i32 to index
    %c0_112 = arith.constant 0 : index
    %c0_113 = arith.constant 0 : index
    %200 = vector.load %arg12[%199, %c0_112, %c0_113] : memref<8x8x128xf32, #tpu.memory_space<vmem>>, vector<1x8x128xf32>
    %201 = vector.shape_cast %200 : vector<1x8x128xf32> to vector<8x128xf32>
    %202 = arith.mulf %198, %184 : vector<8x128xf32>
    %203 = arith.truncf %202 : vector<8x128xf32> to vector<8x128xbf16>
    %c0_114 = arith.constant 0 : index
    %c0_115 = arith.constant 0 : index
    %204 = vector.load %arg8[%c0_114, %c0_115] : memref<128x128xbf16, #tpu.memory_space<vmem>>, vector<128x128xbf16>
    %cst_116 = arith.constant dense<0.000000e+00> : vector<8x128xf32>
    %205 = tpu.matmul %203, %204, %cst_116 {dimension_numbers = #tpu.dot_dimension_numbers<[1], [0], [0], [1], [0, 0, 1, 1], [], []>} : vector<8x128xbf16>, vector<128x128xbf16>, vector<8x128xf32> -> vector<8x128xf32>
    %206 = arith.addf %201, %205 : vector<8x128xf32>
    %207 = math.tanh %206 : vector<8x128xf32>
    %208 = arith.subf %207, %184 : vector<8x128xf32>
    %209 = arith.mulf %197, %208 : vector<8x128xf32>
    %210 = arith.addf %184, %209 : vector<8x128xf32>
    %c0_117 = arith.constant 0 : index
    %c0_118 = arith.constant 0 : index
    %211 = vector.load %arg10[%c0_117, %c0_118] : memref<8x128xf32, #tpu.memory_space<vmem>>, vector<8x128xf32>
    tpu.vector_store %arg10[%c0_117, %c0_118], %210 {strides = array<i32>} : memref<8x128xf32, #tpu.memory_space<vmem>>, vector<8x128xf32>,
    %212 = arith.truncf %210 : vector<8x128xf32> to vector<8x128xbf16>
    %213 = arith.index_cast %c5_i32 : i32 to index
    %c0_119 = arith.constant 0 : index
    %c0_120 = arith.constant 0 : index
    %214 = vector.load %arg9[%213, %c0_119, %c0_120] : memref<8x8x128xbf16, #tpu.memory_space<vmem>>, vector<1x8x128xbf16>
    %215 = vector.shape_cast %214 : vector<1x8x128xbf16> to vector<8x128xbf16>
    %216 = vector.shape_cast %212 : vector<8x128xbf16> to vector<1x8x128xbf16>
    tpu.vector_store %arg9[%213, %c0_119, %c0_120], %216 {strides = array<i32>} : memref<8x8x128xbf16, #tpu.memory_space<vmem>>, vector<1x8x128xbf16>,
    %c6_i32 = arith.constant 6 : i32
    %c0_121 = arith.constant 0 : index
    %c0_122 = arith.constant 0 : index
    %217 = vector.load %arg10[%c0_121, %c0_122] : memref<8x128xf32, #tpu.memory_space<vmem>>, vector<8x128xf32>
    %218 = arith.index_cast %c6_i32 : i32 to index
    %c0_123 = arith.constant 0 : index
    %c0_124 = arith.constant 0 : index
    %219 = vector.load %arg11[%218, %c0_123, %c0_124] : memref<8x8x256xf32, #tpu.memory_space<vmem>>, vector<1x8x256xf32>
    %220 = vector.shape_cast %219 : vector<1x8x256xf32> to vector<8x256xf32>
    %221 = arith.truncf %217 : vector<8x128xf32> to vector<8x128xbf16>
    %c0_125 = arith.constant 0 : index
    %c0_126 = arith.constant 0 : index
    %222 = vector.load %arg7[%c0_125, %c0_126] : memref<128x256xbf16, #tpu.memory_space<vmem>>, vector<128x256xbf16>
    %cst_127 = arith.constant dense<0.000000e+00> : vector<8x256xf32>
    %223 = tpu.matmul %221, %222, %cst_127 {dimension_numbers = #tpu.dot_dimension_numbers<[1], [0], [0], [1], [0, 0, 1, 1], [], []>} : vector<8x128xbf16>, vector<128x256xbf16>, vector<8x256xf32> -> vector<8x256xf32>
    %224 = arith.addf %220, %223 : vector<8x256xf32>
    %225 = arith.negf %224 : vector<8x256xf32>
    %226 = math.exp %225 : vector<8x256xf32>
    %cst_128 = arith.constant 1.000000e+00 : f32
    %227 = vector.broadcast %cst_128 : f32 to vector<8x256xf32>
    %228 = arith.addf %227, %226 : vector<8x256xf32>
    %229 = arith.divf %227, %228 : vector<8x256xf32>
    %230 = vector.extract_strided_slice %229 {offsets = [0, 0], sizes = [8, 128], strides = [1, 1]} : vector<8x256xf32> to vector<8x128xf32>
    %231 = vector.extract_strided_slice %229 {offsets = [0, 128], sizes = [8, 128], strides = [1, 1]} : vector<8x256xf32> to vector<8x128xf32>
    %232 = arith.index_cast %c6_i32 : i32 to index
    %c0_129 = arith.constant 0 : index
    %c0_130 = arith.constant 0 : index
    %233 = vector.load %arg12[%232, %c0_129, %c0_130] : memref<8x8x128xf32, #tpu.memory_space<vmem>>, vector<1x8x128xf32>
    %234 = vector.shape_cast %233 : vector<1x8x128xf32> to vector<8x128xf32>
    %235 = arith.mulf %231, %217 : vector<8x128xf32>
    %236 = arith.truncf %235 : vector<8x128xf32> to vector<8x128xbf16>
    %c0_131 = arith.constant 0 : index
    %c0_132 = arith.constant 0 : index
    %237 = vector.load %arg8[%c0_131, %c0_132] : memref<128x128xbf16, #tpu.memory_space<vmem>>, vector<128x128xbf16>
    %cst_133 = arith.constant dense<0.000000e+00> : vector<8x128xf32>
    %238 = tpu.matmul %236, %237, %cst_133 {dimension_numbers = #tpu.dot_dimension_numbers<[1], [0], [0], [1], [0, 0, 1, 1], [], []>} : vector<8x128xbf16>, vector<128x128xbf16>, vector<8x128xf32> -> vector<8x128xf32>
    %239 = arith.addf %234, %238 : vector<8x128xf32>
    %240 = math.tanh %239 : vector<8x128xf32>
    %241 = arith.subf %240, %217 : vector<8x128xf32>
    %242 = arith.mulf %230, %241 : vector<8x128xf32>
    %243 = arith.addf %217, %242 : vector<8x128xf32>
    %c0_134 = arith.constant 0 : index
    %c0_135 = arith.constant 0 : index
    %244 = vector.load %arg10[%c0_134, %c0_135] : memref<8x128xf32, #tpu.memory_space<vmem>>, vector<8x128xf32>
    tpu.vector_store %arg10[%c0_134, %c0_135], %243 {strides = array<i32>} : memref<8x128xf32, #tpu.memory_space<vmem>>, vector<8x128xf32>,
    %245 = arith.truncf %243 : vector<8x128xf32> to vector<8x128xbf16>
    %246 = arith.index_cast %c6_i32 : i32 to index
    %c0_136 = arith.constant 0 : index
    %c0_137 = arith.constant 0 : index
    %247 = vector.load %arg9[%246, %c0_136, %c0_137] : memref<8x8x128xbf16, #tpu.memory_space<vmem>>, vector<1x8x128xbf16>
    %248 = vector.shape_cast %247 : vector<1x8x128xbf16> to vector<8x128xbf16>
    %249 = vector.shape_cast %245 : vector<8x128xbf16> to vector<1x8x128xbf16>
    tpu.vector_store %arg9[%246, %c0_136, %c0_137], %249 {strides = array<i32>} : memref<8x8x128xbf16, #tpu.memory_space<vmem>>, vector<1x8x128xbf16>,
    %c7_i32 = arith.constant 7 : i32
    %c0_138 = arith.constant 0 : index
    %c0_139 = arith.constant 0 : index
    %250 = vector.load %arg10[%c0_138, %c0_139] : memref<8x128xf32, #tpu.memory_space<vmem>>, vector<8x128xf32>
    %251 = arith.index_cast %c7_i32 : i32 to index
    %c0_140 = arith.constant 0 : index
    %c0_141 = arith.constant 0 : index
    %252 = vector.load %arg11[%251, %c0_140, %c0_141] : memref<8x8x256xf32, #tpu.memory_space<vmem>>, vector<1x8x256xf32>
    %253 = vector.shape_cast %252 : vector<1x8x256xf32> to vector<8x256xf32>
    %254 = arith.truncf %250 : vector<8x128xf32> to vector<8x128xbf16>
    %c0_142 = arith.constant 0 : index
    %c0_143 = arith.constant 0 : index
    %255 = vector.load %arg7[%c0_142, %c0_143] : memref<128x256xbf16, #tpu.memory_space<vmem>>, vector<128x256xbf16>
    %cst_144 = arith.constant dense<0.000000e+00> : vector<8x256xf32>
    %256 = tpu.matmul %254, %255, %cst_144 {dimension_numbers = #tpu.dot_dimension_numbers<[1], [0], [0], [1], [0, 0, 1, 1], [], []>} : vector<8x128xbf16>, vector<128x256xbf16>, vector<8x256xf32> -> vector<8x256xf32>
    %257 = arith.addf %253, %256 : vector<8x256xf32>
    %258 = arith.negf %257 : vector<8x256xf32>
    %259 = math.exp %258 : vector<8x256xf32>
    %cst_145 = arith.constant 1.000000e+00 : f32
    %260 = vector.broadcast %cst_145 : f32 to vector<8x256xf32>
    %261 = arith.addf %260, %259 : vector<8x256xf32>
    %262 = arith.divf %260, %261 : vector<8x256xf32>
    %263 = vector.extract_strided_slice %262 {offsets = [0, 0], sizes = [8, 128], strides = [1, 1]} : vector<8x256xf32> to vector<8x128xf32>
    %264 = vector.extract_strided_slice %262 {offsets = [0, 128], sizes = [8, 128], strides = [1, 1]} : vector<8x256xf32> to vector<8x128xf32>
    %265 = arith.index_cast %c7_i32 : i32 to index
    %c0_146 = arith.constant 0 : index
    %c0_147 = arith.constant 0 : index
    %266 = vector.load %arg12[%265, %c0_146, %c0_147] : memref<8x8x128xf32, #tpu.memory_space<vmem>>, vector<1x8x128xf32>
    %267 = vector.shape_cast %266 : vector<1x8x128xf32> to vector<8x128xf32>
    %268 = arith.mulf %264, %250 : vector<8x128xf32>
    %269 = arith.truncf %268 : vector<8x128xf32> to vector<8x128xbf16>
    %c0_148 = arith.constant 0 : index
    %c0_149 = arith.constant 0 : index
    %270 = vector.load %arg8[%c0_148, %c0_149] : memref<128x128xbf16, #tpu.memory_space<vmem>>, vector<128x128xbf16>
    %cst_150 = arith.constant dense<0.000000e+00> : vector<8x128xf32>
    %271 = tpu.matmul %269, %270, %cst_150 {dimension_numbers = #tpu.dot_dimension_numbers<[1], [0], [0], [1], [0, 0, 1, 1], [], []>} : vector<8x128xbf16>, vector<128x128xbf16>, vector<8x128xf32> -> vector<8x128xf32>
    %272 = arith.addf %267, %271 : vector<8x128xf32>
    %273 = math.tanh %272 : vector<8x128xf32>
    %274 = arith.subf %273, %250 : vector<8x128xf32>
    %275 = arith.mulf %263, %274 : vector<8x128xf32>
    %276 = arith.addf %250, %275 : vector<8x128xf32>
    %c0_151 = arith.constant 0 : index
    %c0_152 = arith.constant 0 : index
    %277 = vector.load %arg10[%c0_151, %c0_152] : memref<8x128xf32, #tpu.memory_space<vmem>>, vector<8x128xf32>
    tpu.vector_store %arg10[%c0_151, %c0_152], %276 {strides = array<i32>} : memref<8x128xf32, #tpu.memory_space<vmem>>, vector<8x128xf32>,
    %278 = arith.truncf %276 : vector<8x128xf32> to vector<8x128xbf16>
    %279 = arith.index_cast %c7_i32 : i32 to index
    %c0_153 = arith.constant 0 : index
    %c0_154 = arith.constant 0 : index
    %280 = vector.load %arg9[%279, %c0_153, %c0_154] : memref<8x8x128xbf16, #tpu.memory_space<vmem>>, vector<1x8x128xbf16>
    %281 = vector.shape_cast %280 : vector<1x8x128xbf16> to vector<8x128xbf16>
    %282 = vector.shape_cast %278 : vector<8x128xbf16> to vector<1x8x128xbf16>
    tpu.vector_store %arg9[%279, %c0_153, %c0_154], %282 {strides = array<i32>} : memref<8x8x128xbf16, #tpu.memory_space<vmem>>, vector<1x8x128xbf16>,
    %c8_i32 = arith.constant 8 : i32
    return
  }
  func.func @transform_0(%arg0: i32, %arg1: i32) -> (i32, i32, i32) {
    %c0_i32 = arith.constant 0 : i32
    %c0_i32_0 = arith.constant 0 : i32
    return %arg1, %arg0, %c0_i32 : i32, i32, i32
  }
  func.func @transform_1(%arg0: i32, %arg1: i32) -> (i32, i32) {
    %c0_i32 = arith.constant 0 : i32
    %c0_i32_0 = arith.constant 0 : i32
    %c0_i32_1 = arith.constant 0 : i32
    return %c0_i32, %c0_i32_0 : i32, i32
  }
  func.func @transform_2(%arg0: i32, %arg1: i32) -> (i32, i32) {
    %c0_i32 = arith.constant 0 : i32
    %c0_i32_0 = arith.constant 0 : i32
    %c0_i32_1 = arith.constant 0 : i32
    return %c0_i32, %c0_i32_0 : i32, i32
  }
  func.func @transform_3(%arg0: i32, %arg1: i32) -> (i32, i32) {
    %c0_i32 = arith.constant 0 : i32
    %c0_i32_0 = arith.constant 0 : i32
    %c0_i32_1 = arith.constant 0 : i32
    return %c0_i32, %c0_i32_0 : i32, i32
  }
  func.func @transform_4(%arg0: i32, %arg1: i32) -> (i32, i32) {
    %c0_i32 = arith.constant 0 : i32
    %c0_i32_0 = arith.constant 0 : i32
    %c0_i32_1 = arith.constant 0 : i32
    return %c0_i32, %c0_i32_0 : i32, i32
  }
  func.func @transform_5(%arg0: i32, %arg1: i32) -> (i32, i32) {
    %c0_i32 = arith.constant 0 : i32
    %c0_i32_0 = arith.constant 0 : i32
    %c0_i32_1 = arith.constant 0 : i32
    return %c0_i32, %c0_i32_0 : i32, i32
  }
  func.func @transform_6(%arg0: i32, %arg1: i32) -> (i32, i32) {
    %c0_i32 = arith.constant 0 : i32
    %c0_i32_0 = arith.constant 0 : i32
    %c0_i32_1 = arith.constant 0 : i32
    return %c0_i32, %c0_i32_0 : i32, i32
  }
  func.func @transform_7(%arg0: i32, %arg1: i32) -> (i32, i32, i32) {
    %c0_i32 = arith.constant 0 : i32
    %c0_i32_0 = arith.constant 0 : i32
    return %arg1, %arg0, %c0_i32 : i32, i32, i32
  }
}

</mosaic_0001>

<llo_original>
// kernel: char_gru_forward.7
$region0: #{char_gru_forward.7}
  #allocation0 [shape = 'u32[]', space=smem, size = 0x4, offset = 0x4, fixed_abs, tag = 'smem constant byte address 0x4 - core index']
  #allocation1 [shape = 'u32[144,128]{1,0:T(1,128)}', space=vmem, size = 0x12000, scoped, tag = 'internal scratch']
  %s0 = inlined_call_operand.vmem [shape: bf16[64,128], index: 0, kind: input, shape index: {}]
  %s1 = inlined_call_operand.vmem [shape: bf16[128,128], index: 1, kind: input, shape index: {}]
  %s2 = inlined_call_operand.vmem [shape: f32[1,128], index: 2, kind: input, shape index: {}]
  %s3 = inlined_call_operand.vmem [shape: f32[64,128], index: 3, kind: output, shape index: {}]
  %s4 = sld [smem:[#allocation0]]
  $region22: #{char_gru_forward.7} parent=0
    _
  %s6 = ssub.s32 1, %s4
  %s7 = scalar_select 0, %s6, %s4
  // Predicated region
  $region2: #{char_gru_forward.7} parent=0 // pred_check
    _
  $region3: #{char_gru_forward.7} parent=0 // pred_check_branch
    %9 = sbr.rel (0) target = $region5
  $region4: #{char_gru_forward.7} parent=0 // pred_region
    _
  $region5: #{char_gru_forward.7} parent=0 // pred_fallthru
    _
  // Predicated region
  $region6: #{char_gru_forward.7} parent=0 // pred_check
    _
  $region7: #{char_gru_forward.7} parent=0 // pred_check_branch
    %11 = sbr.rel (0) target = $region9
  $region8: #{char_gru_forward.7} parent=0 // pred_region
    _
  $region9: #{char_gru_forward.7} parent=0 // pred_fallthru
    _
  // Predicated region
  $region10: #{char_gru_forward.7} parent=0 // pred_check
    _
  $region11: #{char_gru_forward.7} parent=0 // pred_check_branch
    %13 = sbr.rel (0) target = $region13
  $region12: #{char_gru_forward.7} parent=0 // pred_region
    _
  $region13: #{char_gru_forward.7} parent=0 // pred_fallthru
    _
  %v15 = vld [vmem:[%s0] sm:$0xf]
  %v16 = vld [vmem:[%s0 + $0x4] sm:$0xf]
  %v17 = vld [vmem:[%s0 + $0x8] sm:$0xf]
  %v18 = vld [vmem:[%s0 + $0xc] sm:$0xf]
  %v19 = vld [vmem:[%s0 + $0x10] sm:$0xf]
  %v20 = vld [vmem:[%s0 + $0x14] sm:$0xf]
  %v21 = vld [vmem:[%s0 + $0x18] sm:$0xf]
  %v22 = vld [vmem:[%s0 + $0x1c] sm:$0xf]
  %v23 = vld [vmem:[%s1] sm:$0xf]
  %v24 = vld [vmem:[%s1 + $0x4] sm:$0xf]
  %v25 = vld [vmem:[%s1 + $0x8] sm:$0xf]
  %v26 = vld [vmem:[%s1 + $0xc] sm:$0xf]
  %v27 = vld [vmem:[%s1 + $0x10] sm:$0xf]
  %v28 = vld [vmem:[%s1 + $0x14] sm:$0xf]
  %v29 = vld [vmem:[%s1 + $0x18] sm:$0xf]
  %v30 = vld [vmem:[%s1 + $0x1c] sm:$0xf]
  %v31 = vld [vmem:[%s1 + $0x20] sm:$0xf]
  %v32 = vld [vmem:[%s1 + $0x24] sm:$0xf]
  %v33 = vld [vmem:[%s1 + $0x28] sm:$0xf]
  %v34 = vld [vmem:[%s1 + $0x2c] sm:$0xf]
  %v35 = vld [vmem:[%s1 + $0x30] sm:$0xf]
  %v36 = vld [vmem:[%s1 + $0x34] sm:$0xf]
  %v37 = vld [vmem:[%s1 + $0x38] sm:$0xf]
  %v38 = vld [vmem:[%s1 + $0x3c] sm:$0xf]
  %v39 = vld [vmem:[%s2] sm:$0x1]
  %v41 = vlaneseq
  %v42 = vshrl.u32 %v41, 7
  %v43 = vsub.s32 0, %v42
  %v44 = vrot.slane %v39, %v43
  %v54 = vunpack.c.l.b16 %v15
  %v55 = vunpack.c.l.b16 %v16
  %v56 = vunpack.c.l.b16 %v17
  %v57 = vunpack.c.l.b16 %v18
  %v58 = vunpack.c.l.b16 %v19
  %v59 = vunpack.c.l.b16 %v20
  %v60 = vunpack.c.l.b16 %v21
  %v61 = vunpack.c.l.b16 %v22
  %v62 = vpack.c.b16 %v55, %v54
  %v63 = vpack.c.b16 %v57, %v56
  %v64 = vpack.c.b16 %v59, %v58
  %v65 = vpack.c.b16 %v61, %v60
  %v86 = vunpack.c.l.b16 %v23
  %v87 = vunpack.c.l.b16 %v24
  %v88 = vunpack.c.l.b16 %v25
  %v89 = vunpack.c.l.b16 %v26
  %v90 = vunpack.c.l.b16 %v27
  %v91 = vunpack.c.l.b16 %v28
  %v92 = vunpack.c.l.b16 %v29
  %v93 = vunpack.c.l.b16 %v30
  %v94 = vunpack.c.l.b16 %v31
  %v95 = vunpack.c.l.b16 %v32
  %v96 = vunpack.c.l.b16 %v33
  %v97 = vunpack.c.l.b16 %v34
  %v98 = vunpack.c.l.b16 %v35
  %v99 = vunpack.c.l.b16 %v36
  %v100 = vunpack.c.l.b16 %v37
  %v101 = vunpack.c.l.b16 %v38
  %v102 = vpack.c.b16 %v87, %v86
  %v103 = vpack.c.b16 %v89, %v88
  %v104 = vpack.c.b16 %v91, %v90
  %v105 = vpack.c.b16 %v93, %v92
  %v106 = vpack.c.b16 %v95, %v94
  %v107 = vpack.c.b16 %v97, %v96
  %v108 = vpack.c.b16 %v99, %v98
  %v109 = vpack.c.b16 %v101, %v100
  %118 = vmatprep.subr.bf16.mxu0 0
  %119 = vmatpush1.bf16.msra.mxu0 %v102
  %120 = vmatprep.subr.bf16.mxu0 0
  %121 = vmatpush1.bf16.msra.mxu0 %v103
  %122 = vmatprep.subr.bf16.mxu0 0
  %123 = vmatpush1.bf16.msra.mxu0 %v104
  %124 = vmatprep.subr.bf16.mxu0 0
  %125 = vmatpush1.bf16.msra.mxu0 %v105
  %126 = vmatprep.subr.bf16.mxu0 0
  %127 = vmatpush1.bf16.msra.mxu0 %v106
  %128 = vmatprep.subr.bf16.mxu0 0
  %129 = vmatpush1.bf16.msra.mxu0 %v107
  %130 = vmatprep.subr.bf16.mxu0 0
  %131 = vmatpush1.bf16.msra.mxu0 %v108
  %132 = vmatprep.subr.bf16.mxu0 0
  %133 = vmatpush1.bf16.msra.mxu0 %v109
  %134 = vmatprep.subr.bf16.mxu0 0
  %135 = vmatpush1.bf16.msra.mxu0 0
  %136 = vmatprep.subr.bf16.mxu0 0
  %137 = vmatpush1.bf16.msra.mxu0 0
  %138 = vmatprep.subr.bf16.mxu0 0
  %139 = vmatpush1.bf16.msra.mxu0 0
  %140 = vmatprep.subr.bf16.mxu0 0
  %141 = vmatpush1.bf16.msra.mxu0 0
  %142 = vmatprep.subr.bf16.mxu0 0
  %143 = vmatpush1.bf16.msra.mxu0 0
  %144 = vmatprep.subr.bf16.mxu0 0
  %145 = vmatpush1.bf16.msra.mxu0 0
  %146 = vmatprep.subr.bf16.mxu0 0
  %147 = vmatpush1.bf16.msra.mxu0 0
  %148 = vmatprep.subr.bf16.mxu0 0
  %149 = vmatpush1.bf16.msra.mxu0 0
  %150 = vmatprep.mubr.bf16.mxu0 0
  %151 = vmatmul.mubr.bf16.gmra.mrb[0].mxu0 %v62
  %v152 = vpop.f32.mrb[0].mxu0
  %v153 = vadd.f32 %v44, %v152
  %v154 = vpop.f32.mrb[0].mxu0
  %v155 = vpop.f32.mrb[0].mxu0
  %v156 = vadd.f32 %v44, %v155
  %v157 = vpop.f32.mrb[0].mxu0
  %158 = vmatprep.mubr.bf16.mxu0 0
  %159 = vmatmul.mubr.bf16.gmra.mrb[0].mxu0 %v63
  %v160 = vpop.f32.mrb[0].mxu0
  %v161 = vadd.f32 %v44, %v160
  %v162 = vpop.f32.mrb[0].mxu0
  %v163 = vpop.f32.mrb[0].mxu0
  %v164 = vadd.f32 %v44, %v163
  %v165 = vpop.f32.mrb[0].mxu0
  %166 = vmatprep.mubr.bf16.mxu0 0
  %167 = vmatmul.mubr.bf16.gmra.mrb[0].mxu0 %v64
  %v168 = vpop.f32.mrb[0].mxu0
  %v169 = vadd.f32 %v44, %v168
  %v170 = vpop.f32.mrb[0].mxu0
  %v171 = vpop.f32.mrb[0].mxu0
  %v172 = vadd.f32 %v44, %v171
  %v173 = vpop.f32.mrb[0].mxu0
  %174 = vmatprep.mubr.bf16.mxu0 0
  %175 = vmatmul.mubr.bf16.gmra.mrb[0].mxu0 %v65
  %v176 = vpop.f32.mrb[0].mxu0
  %v177 = vadd.f32 %v44, %v176
  %v178 = vpop.f32.mrb[0].mxu0
  %v179 = vpop.f32.mrb[0].mxu0
  %v180 = vadd.f32 %v44, %v179
  %v181 = vpop.f32.mrb[0].mxu0
  %182 = vdwg.mxu0
  %183 = vst [vmem:[%s3] sm:$0xff] %v153
  %184 = vst [vmem:[%s3 + $0x8] sm:$0xff] %v156
  %185 = vst [vmem:[%s3 + $0x10] sm:$0xff] %v161
  %186 = vst [vmem:[%s3 + $0x18] sm:$0xff] %v164
  %187 = vst [vmem:[%s3 + $0x20] sm:$0xff] %v169
  %188 = vst [vmem:[%s3 + $0x28] sm:$0xff] %v172
  %189 = vst [vmem:[%s3 + $0x30] sm:$0xff] %v177
  %190 = vst [vmem:[%s3 + $0x38] sm:$0xff] %v180
  // Predicated region
  $region14: #{char_gru_forward.7} parent=0 // pred_check
    _
  $region15: #{char_gru_forward.7} parent=0 // pred_check_branch
    %192 = sbr.rel (0) target = $region17
  $region16: #{char_gru_forward.7} parent=0 // pred_region
    _
  $region17: #{char_gru_forward.7} parent=0 // pred_fallthru
    _
  // Predicated region
  $region18: #{char_gru_forward.7} parent=0 // pred_check
    _
  $region19: #{char_gru_forward.7} parent=0 // pred_check_branch
    %194 = sbr.rel (0) target = $region21
  $region20: #{char_gru_forward.7} parent=0 // pred_region
    _
  $region21: #{char_gru_forward.7} parent=0 // pred_fallthru
    _

// kernel: char_gru_forward.4
$region0: #{char_gru_forward.4}
  #allocation0 [shape = 'u32[]', space=smem, size = 0x4, offset = 0x4, fixed_abs, tag = 'smem constant byte address 0x4 - core index']
  #allocation1 [shape = 'u32[144,128]{1,0:T(1,128)}', space=vmem, size = 0x12000, scoped, tag = 'internal scratch']
  #allocation2 [shape = 'f32[8,128]{1,0:T(8,128)}', space=vmem, size = 0x1000, scoped, tag = 'scratch operand']
  #allocation3 [shape = 'f32[8,8,256]{2,1,0:T(8,128)}', space=vmem, size = 0x10000, scoped, tag = 'scratch operand']
  #allocation4 [shape = 'f32[8,8,128]{2,1,0:T(8,128)}', space=vmem, size = 0x8000, scoped, tag = 'scratch operand']
  %s0 = inlined_call_operand.vmem [shape: bf16[8,8,128], index: 0, kind: input, shape index: {}]
  %s1 = inlined_call_operand.vmem [shape: bf16[128,256], index: 1, kind: input, shape index: {}]
  %s2 = inlined_call_operand.vmem [shape: f32[1,256], index: 2, kind: input, shape index: {}]
  %s3 = inlined_call_operand.vmem [shape: bf16[128,128], index: 3, kind: input, shape index: {}]
  %s4 = inlined_call_operand.vmem [shape: f32[1,128], index: 4, kind: input, shape index: {}]
  %s5 = inlined_call_operand.hbm [shape: bf16[128,256], index: 5, kind: input, shape index: {}]
  %s6 = inlined_call_operand.hbm [shape: bf16[128,128], index: 6, kind: input, shape index: {}]
  %s7 = inlined_call_operand.vmem [shape: bf16[8,8,128], index: 7, kind: output, shape index: {}]
  %s8 = sld [smem:[#allocation0]]
  $region50: #{char_gru_forward.4} parent=0
    _
  %s10 = ssub.s32 1, %s8
  %s11 = scalar_select 0, %s10, %s8
  $region1: #{char_gru_forward.4} parent=0
    #allocation5 [shape = 'u8[65536]{0}', space=vmem, size = 0x10000, scoped, tag = 'input window, operand 5, single buffered']
    #allocation6 [shape = 's32[1]{0}', space=sflag, size = 0x4, scoped, tag = 'scoped memory for char_gru_forward.4']
    #allocation7 [shape = 'u8[32768]{0}', space=vmem, size = 0x8000, scoped, tag = 'input window, operand 6, single buffered']
    #allocation8 [shape = 's32[1]{0}', space=sflag, size = 0x4, scoped, tag = 'scoped memory for char_gru_forward.4']
    %12 = vsyncpa [#allocation6], 0
    %13 = vsyncpa [#allocation8], 0
    // Predicated region
    $region2: #{char_gru_forward.4} parent=1 // pred_check
      _
    $region3: #{char_gru_forward.4} parent=1 // pred_check_branch
      %15 = sbr.rel (0) target = $region5
    $region4: #{char_gru_forward.4} parent=1 // pred_region
      _
    $region5: #{char_gru_forward.4} parent=1 // pred_fallthru
      _
    // Predicated region
    $region6: #{char_gru_forward.4} parent=1 // pred_check
      _
    $region7: #{char_gru_forward.4} parent=1 // pred_check_branch
      %17 = sbr.rel (0) target = $region9
    $region8: #{char_gru_forward.4} parent=1 // pred_region
      _
    $region9: #{char_gru_forward.4} parent=1 // pred_fallthru
      _
    // Predicated region
    $region10: #{char_gru_forward.4} parent=1 // pred_check
      _
    $region11: #{char_gru_forward.4} parent=1 // pred_check_branch
      %19 = sbr.rel (0) target = $region13
    $region12: #{char_gru_forward.4} parent=1 // pred_region
      _
    $region13: #{char_gru_forward.4} parent=1 // pred_fallthru
      _
    // Predicated region
    $region14: #{char_gru_forward.4} parent=1 // pred_check
      _
    $region15: #{char_gru_forward.4} parent=1 // pred_check_branch
      %21 = sbr.rel (0) target = $region17
    $region16: #{char_gru_forward.4} parent=1 // pred_region
      _
    $region17: #{char_gru_forward.4} parent=1 // pred_fallthru
      _
    // Predicated region
    $region18: #{char_gru_forward.4} parent=1 // pred_check
      _
    $region19: #{char_gru_forward.4} parent=1 // pred_check_branch
      %23 = sbr.rel (0) target = $region21
    $region20: #{char_gru_forward.4} parent=1 // pred_region
      _
    $region21: #{char_gru_forward.4} parent=1 // pred_fallthru
      _
    // Predicated region
    $region22: #{char_gru_forward.4} parent=1 // pred_check
      _
    $region23: #{char_gru_forward.4} parent=1 // pred_check_branch
      %25 = sbr.rel (0) target = $region25
    $region24: #{char_gru_forward.4} parent=1 // pred_region
      %s27 = ssub.s32 2048, 2048
      %28 = vsyncadd [#allocation6], %s27
      %s29 = sshll.u32 [#allocation5], 4
      %s30 = int_to_ptr.vmem [resolvable:$true] %s29
      %35 = dma.hbm_to_vmem [thread:$0]  %s5, 2048, %s30, [#allocation6], 128, 128, 8
    $region25: #{char_gru_forward.4} parent=1 // pred_fallthru
      _
    // Predicated region
    $region26: #{char_gru_forward.4} parent=1 // pred_check
      _
    $region27: #{char_gru_forward.4} parent=1 // pred_check_branch
      %37 = sbr.rel (0) target = $region29
    $region28: #{char_gru_forward.4} parent=1 // pred_region
      %s39 = ssub.s32 1024, 1024
      %40 = vsyncadd [#allocation8], %s39
      %s41 = sshll.u32 [#allocation7], 4
      %s42 = int_to_ptr.vmem [resolvable:$true] %s41
      %47 = dma.hbm_to_vmem [thread:$0]  %s6, 1024, %s42, [#allocation8], 64, 64, 4
    $region29: #{char_gru_forward.4} parent=1 // pred_fallthru
      _
    // Predicated region
    $region30: #{char_gru_forward.4} parent=1 // pred_check
      _
    $region31: #{char_gru_forward.4} parent=1 // pred_check_branch
      %49 = sbr.rel (0) target = $region33
    $region32: #{char_gru_forward.4} parent=1 // pred_region
      %50 = dma.done [#allocation6], 2048
    $region33: #{char_gru_forward.4} parent=1 // pred_fallthru
      _
    // Predicated region
    $region34: #{char_gru_forward.4} parent=1 // pred_check
      _
    $region35: #{char_gru_forward.4} parent=1 // pred_check_branch
      %52 = sbr.rel (0) target = $region37
    $region36: #{char_gru_forward.4} parent=1 // pred_region
      %53 = dma.done [#allocation8], 1024
    $region37: #{char_gru_forward.4} parent=1 // pred_fallthru
      _
    %p55 = scmp.eq.s32.totalorder 0, 0
    // Predicated region
    $region38: #{char_gru_forward.4} parent=1 // pred_check
      %p56 = pneg %p55
    $region39: #{char_gru_forward.4} parent=1 // pred_check_branch
      %58 = sbr.rel (%p56) target = $region41
    $region40: #{char_gru_forward.4} parent=1 // pred_region
      %59 = vst [vmem:[#allocation2] sm:$0xff] 0.0
    $region41: #{char_gru_forward.4} parent=1 // pred_fallthru
      _
    %v60 = vld [vmem:[%s0] sm:$0xf]
    %v61 = vld [vmem:[%s0 + $0x4] sm:$0xf]
    %v62 = vld [vmem:[%s0 + $0x8] sm:$0xf]
    %v63 = vld [vmem:[%s0 + $0xc] sm:$0xf]
    %v64 = vld [vmem:[%s0 + $0x10] sm:$0xf]
    %v65 = vld [vmem:[%s0 + $0x14] sm:$0xf]
    %v66 = vld [vmem:[%s0 + $0x18] sm:$0xf]
    %v67 = vld [vmem:[%s0 + $0x1c] sm:$0xf]
    %v68 = vld [vmem:[%s1] sm:$0xff]
    %v69 = vld [vmem:[%s1 + $0x8] sm:$0xff]
    %v70 = vld [vmem:[%s1 + $0x10] sm:$0xff]
    %v71 = vld [vmem:[%s1 + $0x18] sm:$0xff]
    %v72 = vld [vmem:[%s1 + $0x20] sm:$0xff]
    %v73 = vld [vmem:[%s1 + $0x28] sm:$0xff]
    %v74 = vld [vmem:[%s1 + $0x30] sm:$0xff]
    %v75 = vld [vmem:[%s1 + $0x38] sm:$0xff]
    %v76 = vld [vmem:[%s1 + $0x40] sm:$0xff]
    %v77 = vld [vmem:[%s1 + $0x48] sm:$0xff]
    %v78 = vld [vmem:[%s1 + $0x50] sm:$0xff]
    %v79 = vld [vmem:[%s1 + $0x58] sm:$0xff]
    %v80 = vld [vmem:[%s1 + $0x60] sm:$0xff]
    %v81 = vld [vmem:[%s1 + $0x68] sm:$0xff]
    %v82 = vld [vmem:[%s1 + $0x70] sm:$0xff]
    %v83 = vld [vmem:[%s1 + $0x78] sm:$0xff]
    %v84 = vld [vmem:[%s2] sm:$0x3]
    %v86 = vlaneseq
    %v87 = vshrl.u32 %v86, 7
    %v88 = vsub.s32 0, %v87
    %v89 = vrot.slane %v84, %v88
    %v90 = vlaneseq
    %v91 = vshrl.u32 %v90, 7
    %v92 = vsub.s32 1, %v91
    %v93 = vrot.slane %v84, %v92
    %v104 = vunpack.c.l.b16 %v60
    %v105 = vunpack.c.l.b16 %v61
    %v106 = vunpack.c.l.b16 %v62
    %v107 = vunpack.c.l.b16 %v63
    %v108 = vunpack.c.l.b16 %v64
    %v109 = vunpack.c.l.b16 %v65
    %v110 = vunpack.c.l.b16 %v66
    %v111 = vunpack.c.l.b16 %v67
    %v112 = vpack.c.b16 %v105, %v104
    %v113 = vpack.c.b16 %v107, %v106
    %v114 = vpack.c.b16 %v109, %v108
    %v115 = vpack.c.b16 %v111, %v110
    %v136 = vunpack.c.l.b16 %v68
    %v137 = vunpack.c.h.b16 %v68
    %v138 = vunpack.c.l.b16 %v69
    %v139 = vunpack.c.h.b16 %v69
    %v140 = vunpack.c.l.b16 %v70
    %v141 = vunpack.c.h.b16 %v70
    %v142 = vunpack.c.l.b16 %v71
    %v143 = vunpack.c.h.b16 %v71
    %v144 = vunpack.c.l.b16 %v72
    %v145 = vunpack.c.h.b16 %v72
    %v146 = vunpack.c.l.b16 %v73
    %v147 = vunpack.c.h.b16 %v73
    %v148 = vunpack.c.l.b16 %v74
    %v149 = vunpack.c.h.b16 %v74
    %v150 = vunpack.c.l.b16 %v75
    %v151 = vunpack.c.h.b16 %v75
    %v152 = vunpack.c.l.b16 %v76
    %v153 = vunpack.c.h.b16 %v76
    %v154 = vunpack.c.l.b16 %v77
    %v155 = vunpack.c.h.b16 %v77
    %v156 = vunpack.c.l.b16 %v78
    %v157 = vunpack.c.h.b16 %v78
    %v158 = vunpack.c.l.b16 %v79
    %v159 = vunpack.c.h.b16 %v79
    %v160 = vunpack.c.l.b16 %v80
    %v161 = vunpack.c.h.b16 %v80
    %v162 = vunpack.c.l.b16 %v81
    %v163 = vunpack.c.h.b16 %v81
    %v164 = vunpack.c.l.b16 %v82
    %v165 = vunpack.c.h.b16 %v82
    %v166 = vunpack.c.l.b16 %v83
    %v167 = vunpack.c.h.b16 %v83
    %v168 = vpack.c.b16 %v138, %v136
    %v169 = vpack.c.b16 %v139, %v137
    %v170 = vpack.c.b16 %v142, %v140
    %v171 = vpack.c.b16 %v143, %v141
    %v172 = vpack.c.b16 %v146, %v144
    %v173 = vpack.c.b16 %v147, %v145
    %v174 = vpack.c.b16 %v150, %v148
    %v175 = vpack.c.b16 %v151, %v149
    %v176 = vpack.c.b16 %v154, %v152
    %v177 = vpack.c.b16 %v155, %v153
    %v178 = vpack.c.b16 %v158, %v156
    %v179 = vpack.c.b16 %v159, %v157
    %v180 = vpack.c.b16 %v162, %v160
    %v181 = vpack.c.b16 %v163, %v161
    %v182 = vpack.c.b16 %v166, %v164
    %v183 = vpack.c.b16 %v167, %v165
    %200 = vmatprep.subr.bf16.mxu0 %v169
    %201 = vmatpush1.bf16.msra.mxu0 %v168
    %202 = vmatprep.subr.bf16.mxu0 %v171
    %203 = vmatpush1.bf16.msra.mxu0 %v170
    %204 = vmatprep.subr.bf16.mxu0 %v173
    %205 = vmatpush1.bf16.msra.mxu0 %v172
    %206 = vmatprep.subr.bf16.mxu0 %v175
    %207 = vmatpush1.bf16.msra.mxu0 %v174
    %208 = vmatprep.subr.bf16.mxu0 %v177
    %209 = vmatpush1.bf16.msra.mxu0 %v176
    %210 = vmatprep.subr.bf16.mxu0 %v179
    %211 = vmatpush1.bf16.msra.mxu0 %v178
    %212 = vmatprep.subr.bf16.mxu0 %v181
    %213 = vmatpush1.bf16.msra.mxu0 %v180
    %214 = vmatprep.subr.bf16.mxu0 %v183
    %215 = vmatpush1.bf16.msra.mxu0 %v182
    %216 = vmatprep.subr.bf16.mxu0 0
    %217 = vmatpush1.bf16.msra.mxu0 0
    %218 = vmatprep.subr.bf16.mxu0 0
    %219 = vmatpush1.bf16.msra.mxu0 0
    %220 = vmatprep.subr.bf16.mxu0 0
    %221 = vmatpush1.bf16.msra.mxu0 0
    %222 = vmatprep.subr.bf16.mxu0 0
    %223 = vmatpush1.bf16.msra.mxu0 0
    %224 = vmatprep.subr.bf16.mxu0 0
    %225 = vmatpush1.bf16.msra.mxu0 0
    %226 = vmatprep.subr.bf16.mxu0 0
    %227 = vmatpush1.bf16.msra.mxu0 0
    %228 = vmatprep.subr.bf16.mxu0 0
    %229 = vmatpush1.bf16.msra.mxu0 0
    %230 = vmatprep.subr.bf16.mxu0 0
    %231 = vmatpush1.bf16.msra.mxu0 0
    %232 = vmatprep.mubr.bf16.mxu0 0
    %233 = vmatmul.mubr.bf16.gmra.mrb[0].mxu0 %v112
    %v234 = vpop.f32.mrb[0].mxu0
    %v235 = vadd.f32 %v89, %v234
    %v236 = vpop.f32.mrb[0].mxu0
    %v237 = vadd.f32 %v93, %v236
    %v238 = vpop.f32.mrb[0].mxu0
    %v239 = vadd.f32 %v89, %v238
    %v240 = vpop.f32.mrb[0].mxu0
    %v241 = vadd.f32 %v93, %v240
    %242 = vmatprep.mubr.bf16.mxu0 0
    %243 = vmatmul.mubr.bf16.gmra.mrb[0].mxu0 %v113
    %v244 = vpop.f32.mrb[0].mxu0
    %v245 = vadd.f32 %v89, %v244
    %v246 = vpop.f32.mrb[0].mxu0
    %v247 = vadd.f32 %v93, %v246
    %v248 = vpop.f32.mrb[0].mxu0
    %v249 = vadd.f32 %v89, %v248
    %v250 = vpop.f32.mrb[0].mxu0
    %v251 = vadd.f32 %v93, %v250
    %252 = vmatprep.mubr.bf16.mxu0 0
    %253 = vmatmul.mubr.bf16.gmra.mrb[0].mxu0 %v114
    %v254 = vpop.f32.mrb[0].mxu0
    %v255 = vadd.f32 %v89, %v254
    %v256 = vpop.f32.mrb[0].mxu0
    %v257 = vadd.f32 %v93, %v256
    %v258 = vpop.f32.mrb[0].mxu0
    %v259 = vadd.f32 %v89, %v258
    %v260 = vpop.f32.mrb[0].mxu0
    %v261 = vadd.f32 %v93, %v260
    %262 = vmatprep.mubr.bf16.mxu0 0
    %263 = vmatmul.mubr.bf16.gmra.mrb[0].mxu0 %v115
    %v264 = vpop.f32.mrb[0].mxu0
    %v265 = vadd.f32 %v89, %v264
    %v266 = vpop.f32.mrb[0].mxu0
    %v267 = vadd.f32 %v93, %v266
    %v268 = vpop.f32.mrb[0].mxu0
    %v269 = vadd.f32 %v89, %v268
    %v270 = vpop.f32.mrb[0].mxu0
    %v271 = vadd.f32 %v93, %v270
    %272 = vdwg.mxu0
    %273 = vst [vmem:[#allocation3] sm:$0xff] %v235
    %274 = vst [vmem:[#allocation3 + $0x8] sm:$0xff] %v237
    %275 = vst [vmem:[#allocation3 + $0x10] sm:$0xff] %v239
    %276 = vst [vmem:[#allocation3 + $0x18] sm:$0xff] %v241
    %277 = vst [vmem:[#allocation3 + $0x20] sm:$0xff] %v245
    %278 = vst [vmem:[#allocation3 + $0x28] sm:$0xff] %v247
    %279 = vst [vmem:[#allocation3 + $0x30] sm:$0xff] %v249
    %280 = vst [vmem:[#allocation3 + $0x38] sm:$0xff] %v251
    %281 = vst [vmem:[#allocation3 + $0x40] sm:$0xff] %v255
    %282 = vst [vmem:[#allocation3 + $0x48] sm:$0xff] %v257
    %283 = vst [vmem:[#allocation3 + $0x50] sm:$0xff] %v259
    %284 = vst [vmem:[#allocation3 + $0x58] sm:$0xff] %v261
    %285 = vst [vmem:[#allocation3 + $0x60] sm:$0xff] %v265
    %286 = vst [vmem:[#allocation3 + $0x68] sm:$0xff] %v267
    %287 = vst [vmem:[#allocation3 + $0x70] sm:$0xff] %v269
    %288 = vst [vmem:[#allocation3 + $0x78] sm:$0xff] %v271
    %v289 = vld [vmem:[%s3] sm:$0xf]
    %v290 = vld [vmem:[%s3 + $0x4] sm:$0xf]
    %v291 = vld [vmem:[%s3 + $0x8] sm:$0xf]
    %v292 = vld [vmem:[%s3 + $0xc] sm:$0xf]
    %v293 = vld [vmem:[%s3 + $0x10] sm:$0xf]
    %v294 = vld [vmem:[%s3 + $0x14] sm:$0xf]
    %v295 = vld [vmem:[%s3 + $0x18] sm:$0xf]
    %v296 = vld [vmem:[%s3 + $0x1c] sm:$0xf]
    %v297 = vld [vmem:[%s3 + $0x20] sm:$0xf]
    %v298 = vld [vmem:[%s3 + $0x24] sm:$0xf]
    %v299 = vld [vmem:[%s3 + $0x28] sm:$0xf]
    %v300 = vld [vmem:[%s3 + $0x2c] sm:$0xf]
    %v301 = vld [vmem:[%s3 + $0x30] sm:$0xf]
    %v302 = vld [vmem:[%s3 + $0x34] sm:$0xf]
    %v303 = vld [vmem:[%s3 + $0x38] sm:$0xf]
    %v304 = vld [vmem:[%s3 + $0x3c] sm:$0xf]
    %v305 = vld [vmem:[%s4] sm:$0x1]
    %v307 = vlaneseq
    %v308 = vshrl.u32 %v307, 7
    %v309 = vsub.s32 0, %v308
    %v310 = vrot.slane %v305, %v309
    %v328 = vunpack.c.l.b16 %v289
    %v329 = vunpack.c.l.b16 %v290
    %v330 = vunpack.c.l.b16 %v291
    %v331 = vunpack.c.l.b16 %v292
    %v332 = vunpack.c.l.b16 %v293
    %v333 = vunpack.c.l.b16 %v294
    %v334 = vunpack.c.l.b16 %v295
    %v335 = vunpack.c.l.b16 %v296
    %v336 = vunpack.c.l.b16 %v297
    %v337 = vunpack.c.l.b16 %v298
    %v338 = vunpack.c.l.b16 %v299
    %v339 = vunpack.c.l.b16 %v300
    %v340 = vunpack.c.l.b16 %v301
    %v341 = vunpack.c.l.b16 %v302
    %v342 = vunpack.c.l.b16 %v303
    %v343 = vunpack.c.l.b16 %v304
    %v344 = vpack.c.b16 %v329, %v328
    %v345 = vpack.c.b16 %v331, %v330
    %v346 = vpack.c.b16 %v333, %v332
    %v347 = vpack.c.b16 %v335, %v334
    %v348 = vpack.c.b16 %v337, %v336
    %v349 = vpack.c.b16 %v339, %v338
    %v350 = vpack.c.b16 %v341, %v340
    %v351 = vpack.c.b16 %v343, %v342
    %360 = vmatprep.subr.bf16.mxu0 0
    %361 = vmatpush1.bf16.msra.mxu0 %v344
    %362 = vmatprep.subr.bf16.mxu0 0
    %363 = vmatpush1.bf16.msra.mxu0 %v345
    %364 = vmatprep.subr.bf16.mxu0 0
    %365 = vmatpush1.bf16.msra.mxu0 %v346
    %366 = vmatprep.subr.bf16.mxu0 0
    %367 = vmatpush1.bf16.msra.mxu0 %v347
    %368 = vmatprep.subr.bf16.mxu0 0
    %369 = vmatpush1.bf16.msra.mxu0 %v348
    %370 = vmatprep.subr.bf16.mxu0 0
    %371 = vmatpush1.bf16.msra.mxu0 %v349
    %372 = vmatprep.subr.bf16.mxu0 0
    %373 = vmatpush1.bf16.msra.mxu0 %v350
    %374 = vmatprep.subr.bf16.mxu0 0
    %375 = vmatpush1.bf16.msra.mxu0 %v351
    %376 = vmatprep.subr.bf16.mxu0 0
    %377 = vmatpush1.bf16.msra.mxu0 0
    %378 = vmatprep.subr.bf16.mxu0 0
    %379 = vmatpush1.bf16.msra.mxu0 0
    %380 = vmatprep.subr.bf16.mxu0 0
    %381 = vmatpush1.bf16.msra.mxu0 0
    %382 = vmatprep.subr.bf16.mxu0 0
    %383 = vmatpush1.bf16.msra.mxu0 0
    %384 = vmatprep.subr.bf16.mxu0 0
    %385 = vmatpush1.bf16.msra.mxu0 0
    %386 = vmatprep.subr.bf16.mxu0 0
    %387 = vmatpush1.bf16.msra.mxu0 0
    %388 = vmatprep.subr.bf16.mxu0 0
    %389 = vmatpush1.bf16.msra.mxu0 0
    %390 = vmatprep.subr.bf16.mxu0 0
    %391 = vmatpush1.bf16.msra.mxu0 0
    %392 = vmatprep.mubr.bf16.mxu0 0
    %393 = vmatmul.mubr.bf16.gmra.mrb[0].mxu0 %v112
    %v394 = vpop.f32.mrb[0].mxu0
    %v395 = vadd.f32 %v310, %v394
    %v396 = vpop.f32.mrb[0].mxu0
    %v397 = vpop.f32.mrb[0].mxu0
    %v398 = vadd.f32 %v310, %v397
    %v399 = vpop.f32.mrb[0].mxu0
    %400 = vmatprep.mubr.bf16.mxu0 0
    %401 = vmatmul.mubr.bf16.gmra.mrb[0].mxu0 %v113
    %v402 = vpop.f32.mrb[0].mxu0
    %v403 = vadd.f32 %v310, %v402
    %v404 = vpop.f32.mrb[0].mxu0
    %v405 = vpop.f32.mrb[0].mxu0
    %v406 = vadd.f32 %v310, %v405
    %v407 = vpop.f32.mrb[0].mxu0
    %408 = vmatprep.mubr.bf16.mxu0 0
    %409 = vmatmul.mubr.bf16.gmra.mrb[0].mxu0 %v114
    %v410 = vpop.f32.mrb[0].mxu0
    %v411 = vadd.f32 %v310, %v410
    %v412 = vpop.f32.mrb[0].mxu0
    %v413 = vpop.f32.mrb[0].mxu0
    %v414 = vadd.f32 %v310, %v413
    %v415 = vpop.f32.mrb[0].mxu0
    %416 = vmatprep.mubr.bf16.mxu0 0
    %417 = vmatmul.mubr.bf16.gmra.mrb[0].mxu0 %v115
    %v418 = vpop.f32.mrb[0].mxu0
    %v419 = vadd.f32 %v310, %v418
    %v420 = vpop.f32.mrb[0].mxu0
    %v421 = vpop.f32.mrb[0].mxu0
    %v422 = vadd.f32 %v310, %v421
    %v423 = vpop.f32.mrb[0].mxu0
    %424 = vdwg.mxu0
    %425 = vst [vmem:[#allocation4] sm:$0xff] %v395
    %426 = vst [vmem:[#allocation4 + $0x8] sm:$0xff] %v398
    %427 = vst [vmem:[#allocation4 + $0x10] sm:$0xff] %v403
    %428 = vst [vmem:[#allocation4 + $0x18] sm:$0xff] %v406
    %429 = vst [vmem:[#allocation4 + $0x20] sm:$0xff] %v411
    %430 = vst [vmem:[#allocation4 + $0x28] sm:$0xff] %v414
    %431 = vst [vmem:[#allocation4 + $0x30] sm:$0xff] %v419
    %432 = vst [vmem:[#allocation4 + $0x38] sm:$0xff] %v422
    %v433 = vld [vmem:[#allocation2] sm:$0xff]
    %v434 = vld [vmem:[#allocation3] sm:$0xff]
    %v435 = vld [vmem:[#allocation3 + $0x8] sm:$0xff]
    %v436 = vpack.c.bf16 %v433, %v433
    %v437 = vld [vmem:[#allocation5] sm:$0xff]
    %v438 = vld [vmem:[#allocation5 + $0x8] sm:$0xff]
    %v439 = vld [vmem:[#allocation5 + $0x10] sm:$0xff]
    %v440 = vld [vmem:[#allocation5 + $0x18] sm:$0xff]
    %v441 = vld [vmem:[#allocation5 + $0x20] sm:$0xff]
    %v442 = vld [vmem:[#allocation5 + $0x28] sm:$0xff]
    %v443 = vld [vmem:[#allocation5 + $0x30] sm:$0xff]
    %v444 = vld [vmem:[#allocation5 + $0x38] sm:$0xff]
    %v445 = vld [vmem:[#allocation5 + $0x40] sm:$0xff]
    %v446 = vld [vmem:[#allocation5 + $0x48] sm:$0xff]
    %v447 = vld [vmem:[#allocation5 + $0x50] sm:$0xff]
    %v448 = vld [vmem:[#allocation5 + $0x58] sm:$0xff]
    %v449 = vld [vmem:[#allocation5 + $0x60] sm:$0xff]
    %v450 = vld [vmem:[#allocation5 + $0x68] sm:$0xff]
    %v451 = vld [vmem:[#allocation5 + $0x70] sm:$0xff]
    %v452 = vld [vmem:[#allocation5 + $0x78] sm:$0xff]
    %v469 = vunpack.c.l.b16 %v437
    %v470 = vunpack.c.h.b16 %v437
    %v471 = vunpack.c.l.b16 %v438
    %v472 = vunpack.c.h.b16 %v438
    %v473 = vunpack.c.l.b16 %v439
    %v474 = vunpack.c.h.b16 %v439
    %v475 = vunpack.c.l.b16 %v440
    %v476 = vunpack.c.h.b16 %v440
    %v477 = vunpack.c.l.b16 %v441
    %v478 = vunpack.c.h.b16 %v441
    %v479 = vunpack.c.l.b16 %v442
    %v480 = vunpack.c.h.b16 %v442
    %v481 = vunpack.c.l.b16 %v443
    %v482 = vunpack.c.h.b16 %v443
    %v483 = vunpack.c.l.b16 %v444
    %v484 = vunpack.c.h.b16 %v444
    %v485 = vunpack.c.l.b16 %v445
    %v486 = vunpack.c.h.b16 %v445
    %v487 = vunpack.c.l.b16 %v446
    %v488 = vunpack.c.h.b16 %v446
    %v489 = vunpack.c.l.b16 %v447
    %v490 = vunpack.c.h.b16 %v447
    %v491 = vunpack.c.l.b16 %v448
    %v492 = vunpack.c.h.b16 %v448
    %v493 = vunpack.c.l.b16 %v449
    %v494 = vunpack.c.h.b16 %v449
    %v495 = vunpack.c.l.b16 %v450
    %v496 = vunpack.c.h.b16 %v450
    %v497 = vunpack.c.l.b16 %v451
    %v498 = vunpack.c.h.b16 %v451
    %v499 = vunpack.c.l.b16 %v452
    %v500 = vunpack.c.h.b16 %v452
    %v501 = vpack.c.b16 %v471, %v469
    %v502 = vpack.c.b16 %v472, %v470
    %v503 = vpack.c.b16 %v475, %v473
    %v504 = vpack.c.b16 %v476, %v474
    %v505 = vpack.c.b16 %v479, %v477
    %v506 = vpack.c.b16 %v480, %v478
    %v507 = vpack.c.b16 %v483, %v481
    %v508 = vpack.c.b16 %v484, %v482
    %v509 = vpack.c.b16 %v487, %v485
    %v510 = vpack.c.b16 %v488, %v486
    %v511 = vpack.c.b16 %v491, %v489
    %v512 = vpack.c.b16 %v492, %v490
    %v513 = vpack.c.b16 %v495, %v493
    %v514 = vpack.c.b16 %v496, %v494
    %v515 = vpack.c.b16 %v499, %v497
    %v516 = vpack.c.b16 %v500, %v498
    %533 = vmatprep.subr.bf16.mxu0 %v502
    %534 = vmatpush1.bf16.msra.mxu0 %v501
    %535 = vmatprep.subr.bf16.mxu0 %v504
    %536 = vmatpush1.bf16.msra.mxu0 %v503
    %537 = vmatprep.subr.bf16.mxu0 %v506
    %538 = vmatpush1.bf16.msra.mxu0 %v505
    %539 = vmatprep.subr.bf16.mxu0 %v508
    %540 = vmatpush1.bf16.msra.mxu0 %v507
    %541 = vmatprep.subr.bf16.mxu0 %v510
    %542 = vmatpush1.bf16.msra.mxu0 %v509
    %543 = vmatprep.subr.bf16.mxu0 %v512
    %544 = vmatpush1.bf16.msra.mxu0 %v511
    %545 = vmatprep.subr.bf16.mxu0 %v514
    %546 = vmatpush1.bf16.msra.mxu0 %v513
    %547 = vmatprep.subr.bf16.mxu0 %v516
    %548 = vmatpush1.bf16.msra.mxu0 %v515
    %549 = vmatprep.subr.bf16.mxu0 0
    %550 = vmatpush1.bf16.msra.mxu0 0
    %551 = vmatprep.subr.bf16.mxu0 0
    %552 = vmatpush1.bf16.msra.mxu0 0
    %553 = vmatprep.subr.bf16.mxu0 0
    %554 = vmatpush1.bf16.msra.mxu0 0
    %555 = vmatprep.subr.bf16.mxu0 0
    %556 = vmatpush1.bf16.msra.mxu0 0
    %557 = vmatprep.subr.bf16.mxu0 0
    %558 = vmatpush1.bf16.msra.mxu0 0
    %559 = vmatprep.subr.bf16.mxu0 0
    %560 = vmatpush1.bf16.msra.mxu0 0
    %561 = vmatprep.subr.bf16.mxu0 0
    %562 = vmatpush1.bf16.msra.mxu0 0
    %563 = vmatprep.subr.bf16.mxu0 0
    %564 = vmatpush1.bf16.msra.mxu0 0
    %565 = vmatprep.mubr.bf16.mxu0 0
    %566 = vmatmul.mubr.bf16.gmra.mrb[0].mxu0 %v436
    %v567 = vpop.f32.mrb[0].mxu0
    %v568 = vadd.f32 0.0, %v567
    %v569 = vpop.f32.mrb[0].mxu0
    %v570 = vadd.f32 0.0, %v569
    %v571 = vpop.f32.mrb[0].mxu0
    %v572 = vpop.f32.mrb[0].mxu0
    %573 = vdwg.mxu0
    %v574 = vadd.f32 %v434, %v568
    %v575 = vadd.f32 %v435, %v570
    %v576 = vxor.u32 %v574, 2147483648
    %v577 = vxor.u32 %v575, 2147483648
    %v578 = vmul.f32 %v576, 1.442695
    %v579 = vpow.pop %v578
    %v580 = vmul.f32 %v577, 1.442695
    %v581 = vpow.pop %v580
    %v582 = vadd.f32 %v579, 1.0
    %v583 = vadd.f32 %v581, 1.0
    %v584 = vrcp.pop %v582
    %v585 = vmul.f32 1.0, %v584
    %v586 = vrcp.pop %v583
    %v587 = vmul.f32 1.0, %v586
    %v588 = vld [vmem:[#allocation4] sm:$0xff]
    %v589 = vmul.f32 %v587, %v433
    %v590 = vpack.c.bf16 %v589, %v589
    %v591 = vld [vmem:[#allocation7] sm:$0xf]
    %v592 = vld [vmem:[#allocation7 + $0x4] sm:$0xf]
    %v593 = vld [vmem:[#allocation7 + $0x8] sm:$0xf]
    %v594 = vld [vmem:[#allocation7 + $0xc] sm:$0xf]
    %v595 = vld [vmem:[#allocation7 + $0x10] sm:$0xf]
    %v596 = vld [vmem:[#allocation7 + $0x14] sm:$0xf]
    %v597 = vld [vmem:[#allocation7 + $0x18] sm:$0xf]
    %v598 = vld [vmem:[#allocation7 + $0x1c] sm:$0xf]
    %v599 = vld [vmem:[#allocation7 + $0x20] sm:$0xf]
    %v600 = vld [vmem:[#allocation7 + $0x24] sm:$0xf]
    %v601 = vld [vmem:[#allocation7 + $0x28] sm:$0xf]
    %v602 = vld [vmem:[#allocation7 + $0x2c] sm:$0xf]
    %v603 = vld [vmem:[#allocation7 + $0x30] sm:$0xf]
    %v604 = vld [vmem:[#allocation7 + $0x34] sm:$0xf]
    %v605 = vld [vmem:[#allocation7 + $0x38] sm:$0xf]
    %v606 = vld [vmem:[#allocation7 + $0x3c] sm:$0xf]
    %v623 = vunpack.c.l.b16 %v591
    %v624 = vunpack.c.l.b16 %v592
    %v625 = vunpack.c.l.b16 %v593
    %v626 = vunpack.c.l.b16 %v594
    %v627 = vunpack.c.l.b16 %v595
    %v628 = vunpack.c.l.b16 %v596
    %v629 = vunpack.c.l.b16 %v597
    %v630 = vunpack.c.l.b16 %v598
    %v631 = vunpack.c.l.b16 %v599
    %v632 = vunpack.c.l.b16 %v600
    %v633 = vunpack.c.l.b16 %v601
    %v634 = vunpack.c.l.b16 %v602
    %v635 = vunpack.c.l.b16 %v603
    %v636 = vunpack.c.l.b16 %v604
    %v637 = vunpack.c.l.b16 %v605
    %v638 = vunpack.c.l.b16 %v606
    %v639 = vpack.c.b16 %v624, %v623
    %v640 = vpack.c.b16 %v626, %v625
    %v641 = vpack.c.b16 %v628, %v627
    %v642 = vpack.c.b16 %v630, %v629
    %v643 = vpack.c.b16 %v632, %v631
    %v644 = vpack.c.b16 %v634, %v633
    %v645 = vpack.c.b16 %v636, %v635
    %v646 = vpack.c.b16 %v638, %v637
    %655 = vmatprep.subr.bf16.mxu0 0
    %656 = vmatpush1.bf16.msra.mxu0 %v639
    %657 = vmatprep.subr.bf16.mxu0 0
    %658 = vmatpush1.bf16.msra.mxu0 %v640
    %659 = vmatprep.subr.bf16.mxu0 0
    %660 = vmatpush1.bf16.msra.mxu0 %v641
    %661 = vmatprep.subr.bf16.mxu0 0
    %662 = vmatpush1.bf16.msra.mxu0 %v642
    %663 = vmatprep.subr.bf16.mxu0 0
    %664 = vmatpush1.bf16.msra.mxu0 %v643
    %665 = vmatprep.subr.bf16.mxu0 0
    %666 = vmatpush1.bf16.msra.mxu0 %v644
    %667 = vmatprep.subr.bf16.mxu0 0
    %668 = vmatpush1.bf16.msra.mxu0 %v645
    %669 = vmatprep.subr.bf16.mxu0 0
    %670 = vmatpush1.bf16.msra.mxu0 %v646
    %671 = vmatprep.subr.bf16.mxu0 0
    %672 = vmatpush1.bf16.msra.mxu0 0
    %673 = vmatprep.subr.bf16.mxu0 0
    %674 = vmatpush1.bf16.msra.mxu0 0
    %675 = vmatprep.subr.bf16.mxu0 0
    %676 = vmatpush1.bf16.msra.mxu0 0
    %677 = vmatprep.subr.bf16.mxu0 0
    %678 = vmatpush1.bf16.msra.mxu0 0
    %679 = vmatprep.subr.bf16.mxu0 0
    %680 = vmatpush1.bf16.msra.mxu0 0
    %681 = vmatprep.subr.bf16.mxu0 0
    %682 = vmatpush1.bf16.msra.mxu0 0
    %683 = vmatprep.subr.bf16.mxu0 0
    %684 = vmatpush1.bf16.msra.mxu0 0
    %685 = vmatprep.subr.bf16.mxu0 0
    %686 = vmatpush1.bf16.msra.mxu0 0
    %687 = vmatprep.mubr.bf16.mxu0 0
    %688 = vmatmul.mubr.bf16.gmra.mrb[0].mxu0 %v590
    %v689 = vpop.f32.mrb[0].mxu0
    %v690 = vadd.f32 0.0, %v689
    %v691 = vpop.f32.mrb[0].mxu0
    %v692 = vpop.f32.mrb[0].mxu0
    %v693 = vpop.f32.mrb[0].mxu0
    %694 = vdwg.mxu0
    %v695 = vadd.f32 %v588, %v690
    %v696 = vtanh.pop %v695
    %v697 = vsub.f32 %v696, %v433
    %v698 = vmul.f32 %v585, %v697
    %v699 = vadd.f32 %v433, %v698
    %700 = vst [vmem:[#allocation2] sm:$0xff] %v699
    %v701 = vpack.c.bf16 %v699, %v699
    %702 = vst [vmem:[%s7] sm:$0xf] %v701
    %v703 = vld [vmem:[#allocation2] sm:$0xff]
    %s704 = scalar_lea.vmem [#allocation3], 16
    %v705 = vld [vmem:[%s704] sm:$0xff]
    %v706 = vld [vmem:[%s704 + $0x8] sm:$0xff]
    %v707 = vpack.c.bf16 %v703, %v703
    %v708 = vld [vmem:[#allocation5] sm:$0xff]
    %v709 = vld [vmem:[#allocation5 + $0x8] sm:$0xff]
    %v710 = vld [vmem:[#allocation5 + $0x10] sm:$0xff]
    %v711 = vld [vmem:[#allocation5 + $0x18] sm:$0xff]
    %v712 = vld [vmem:[#allocation5 + $0x20] sm:$0xff]
    %v713 = vld [vmem:[#allocation5 + $0x28] sm:$0xff]
    %v714 = vld [vmem:[#allocation5 + $0x30] sm:$0xff]
    %v715 = vld [vmem:[#allocation5 + $0x38] sm:$0xff]
    %v716 = vld [vmem:[#allocation5 + $0x40] sm:$0xff]
    %v717 = vld [vmem:[#allocation5 + $0x48] sm:$0xff]
    %v718 = vld [vmem:[#allocation5 + $0x50] sm:$0xff]
    %v719 = vld [vmem:[#allocation5 + $0x58] sm:$0xff]
    %v720 = vld [vmem:[#allocation5 + $0x60] sm:$0xff]
    %v721 = vld [vmem:[#allocation5 + $0x68] sm:$0xff]
    %v722 = vld [vmem:[#allocation5 + $0x70] sm:$0xff]
    %v723 = vld [vmem:[#allocation5 + $0x78] sm:$0xff]
    %v740 = vunpack.c.l.b16 %v708
    %v741 = vunpack.c.h.b16 %v708
    %v742 = vunpack.c.l.b16 %v709
    %v743 = vunpack.c.h.b16 %v709
    %v744 = vunpack.c.l.b16 %v710
    %v745 = vunpack.c.h.b16 %v710
    %v746 = vunpack.c.l.b16 %v711
    %v747 = vunpack.c.h.b16 %v711
    %v748 = vunpack.c.l.b16 %v712
    %v749 = vunpack.c.h.b16 %v712
    %v750 = vunpack.c.l.b16 %v713
    %v751 = vunpack.c.h.b16 %v713
    %v752 = vunpack.c.l.b16 %v714
    %v753 = vunpack.c.h.b16 %v714
    %v754 = vunpack.c.l.b16 %v715
    %v755 = vunpack.c.h.b16 %v715
    %v756 = vunpack.c.l.b16 %v716
    %v757 = vunpack.c.h.b16 %v716
    %v758 = vunpack.c.l.b16 %v717
    %v759 = vunpack.c.h.b16 %v717
    %v760 = vunpack.c.l.b16 %v718
    %v761 = vunpack.c.h.b16 %v718
    %v762 = vunpack.c.l.b16 %v719
    %v763 = vunpack.c.h.b16 %v719
    %v764 = vunpack.c.l.b16 %v720
    %v765 = vunpack.c.h.b16 %v720
    %v766 = vunpack.c.l.b16 %v721
    %v767 = vunpack.c.h.b16 %v721
    %v768 = vunpack.c.l.b16 %v722
    %v769 = vunpack.c.h.b16 %v722
    %v770 = vunpack.c.l.b16 %v723
    %v771 = vunpack.c.h.b16 %v723
    %v772 = vpack.c.b16 %v742, %v740
    %v773 = vpack.c.b16 %v743, %v741
    %v774 = vpack.c.b16 %v746, %v744
    %v775 = vpack.c.b16 %v747, %v745
    %v776 = vpack.c.b16 %v750, %v748
    %v777 = vpack.c.b16 %v751, %v749
    %v778 = vpack.c.b16 %v754, %v752
    %v779 = vpack.c.b16 %v755, %v753
    %v780 = vpack.c.b16 %v758, %v756
    %v781 = vpack.c.b16 %v759, %v757
    %v782 = vpack.c.b16 %v762, %v760
    %v783 = vpack.c.b16 %v763, %v761
    %v784 = vpack.c.b16 %v766, %v764
    %v785 = vpack.c.b16 %v767, %v765
    %v786 = vpack.c.b16 %v770, %v768
    %v787 = vpack.c.b16 %v771, %v769
    %804 = vmatprep.subr.bf16.mxu0 %v773
    %805 = vmatpush1.bf16.msra.mxu0 %v772
    %806 = vmatprep.subr.bf16.mxu0 %v775
    %807 = vmatpush1.bf16.msra.mxu0 %v774
    %808 = vmatprep.subr.bf16.mxu0 %v777
    %809 = vmatpush1.bf16.msra.mxu0 %v776
    %810 = vmatprep.subr.bf16.mxu0 %v779
    %811 = vmatpush1.bf16.msra.mxu0 %v778
    %812 = vmatprep.subr.bf16.mxu0 %v781
    %813 = vmatpush1.bf16.msra.mxu0 %v780
    %814 = vmatprep.subr.bf16.mxu0 %v783
    %815 = vmatpush1.bf16.msra.mxu0 %v782
    %816 = vmatprep.subr.bf16.mxu0 %v785
    %817 = vmatpush1.bf16.msra.mxu0 %v784
    %818 = vmatprep.subr.bf16.mxu0 %v787
    %819 = vmatpush1.bf16.msra.mxu0 %v786
    %820 = vmatprep.subr.bf16.mxu0 0
    %821 = vmatpush1.bf16.msra.mxu0 0
    %822 = vmatprep.subr.bf16.mxu0 0
    %823 = vmatpush1.bf16.msra.mxu0 0
    %824 = vmatprep.subr.bf16.mxu0 0
    %825 = vmatpush1.bf16.msra.mxu0 0
    %826 = vmatprep.subr.bf16.mxu0 0
    %827 = vmatpush1.bf16.msra.mxu0 0
    %828 = vmatprep.subr.bf16.mxu0 0
    %829 = vmatpush1.bf16.msra.mxu0 0
    %830 = vmatprep.subr.bf16.mxu0 0
    %831 = vmatpush1.bf16.msra.mxu0 0
    %832 = vmatprep.subr.bf16.mxu0 0
    %833 = vmatpush1.bf16.msra.mxu0 0
    %834 = vmatprep.subr.bf16.mxu0 0
    %835 = vmatpush1.bf16.msra.mxu0 0
    %836 = vmatprep.mubr.bf16.mxu0 0
    %837 = vmatmul.mubr.bf16.gmra.mrb[0].mxu0 %v707
    %v838 = vpop.f32.mrb[0].mxu0
    %v839 = vadd.f32 0.0, %v838
    %v840 = vpop.f32.mrb[0].mxu0
    %v841 = vadd.f32 0.0, %v840
    %v842 = vpop.f32.mrb[0].mxu0
    %v843 = vpop.f32.mrb[0].mxu0
    %844 = vdwg.mxu0
    %v845 = vadd.f32 %v705, %v839
    %v846 = vadd.f32 %v706, %v841
    %v847 = vxor.u32 %v845, 2147483648
    %v848 = vxor.u32 %v846, 2147483648
    %v849 = vmul.f32 %v847, 1.442695
    %v850 = vpow.pop %v849
    %v851 = vmul.f32 %v848, 1.442695
    %v852 = vpow.pop %v851
    %v853 = vadd.f32 %v850, 1.0
    %v854 = vadd.f32 %v852, 1.0
    %v855 = vrcp.pop %v853
    %v856 = vmul.f32 1.0, %v855
    %v857 = vrcp.pop %v854
    %v858 = vmul.f32 1.0, %v857
    %s859 = scalar_lea.vmem [#allocation4], 8
    %v860 = vld [vmem:[%s859] sm:$0xff]
    %v861 = vmul.f32 %v858, %v703
    %v862 = vpack.c.bf16 %v861, %v861
    %v863 = vld [vmem:[#allocation7] sm:$0xf]
    %v864 = vld [vmem:[#allocation7 + $0x4] sm:$0xf]
    %v865 = vld [vmem:[#allocation7 + $0x8] sm:$0xf]
    %v866 = vld [vmem:[#allocation7 + $0xc] sm:$0xf]
    %v867 = vld [vmem:[#allocation7 + $0x10] sm:$0xf]
    %v868 = vld [vmem:[#allocation7 + $0x14] sm:$0xf]
    %v869 = vld [vmem:[#allocation7 + $0x18] sm:$0xf]
    %v870 = vld [vmem:[#allocation7 + $0x1c] sm:$0xf]
    %v871 = vld [vmem:[#allocation7 + $0x20] sm:$0xf]
    %v872 = vld [vmem:[#allocation7 + $0x24] sm:$0xf]
    %v873 = vld [vmem:[#allocation7 + $0x28] sm:$0xf]
    %v874 = vld [vmem:[#allocation7 + $0x2c] sm:$0xf]
    %v875 = vld [vmem:[#allocation7 + $0x30] sm:$0xf]
    %v876 = vld [vmem:[#allocation7 + $0x34] sm:$0xf]
    %v877 = vld [vmem:[#allocation7 + $0x38] sm:$0xf]
    %v878 = vld [vmem:[#allocation7 + $0x3c] sm:$0xf]
    %v895 = vunpack.c.l.b16 %v863
    %v896 = vunpack.c.l.b16 %v864
    %v897 = vunpack.c.l.b16 %v865
    %v898 = vunpack.c.l.b16 %v866
    %v899 = vunpack.c.l.b16 %v867
    %v900 = vunpack.c.l.b16 %v868
    %v901 = vunpack.c.l.b16 %v869
    %v902 = vunpack.c.l.b16 %v870
    %v903 = vunpack.c.l.b16 %v871
    %v904 = vunpack.c.l.b16 %v872
    %v905 = vunpack.c.l.b16 %v873
    %v906 = vunpack.c.l.b16 %v874
    %v907 = vunpack.c.l.b16 %v875
    %v908 = vunpack.c.l.b16 %v876
    %v909 = vunpack.c.l.b16 %v877
    %v910 = vunpack.c.l.b16 %v878
    %v911 = vpack.c.b16 %v896, %v895
    %v912 = vpack.c.b16 %v898, %v897
    %v913 = vpack.c.b16 %v900, %v899
    %v914 = vpack.c.b16 %v902, %v901
    %v915 = vpack.c.b16 %v904, %v903
    %v916 = vpack.c.b16 %v906, %v905
    %v917 = vpack.c.b16 %v908, %v907
    %v918 = vpack.c.b16 %v910, %v909
    %927 = vmatprep.subr.bf16.mxu0 0
    %928 = vmatpush1.bf16.msra.mxu0 %v911
    %929 = vmatprep.subr.bf16.mxu0 0
    %930 = vmatpush1.bf16.msra.mxu0 %v912
    %931 = vmatprep.subr.bf16.mxu0 0
    %932 = vmatpush1.bf16.msra.mxu0 %v913
    %933 = vmatprep.subr.bf16.mxu0 0
    %934 = vmatpush1.bf16.msra.mxu0 %v914
    %935 = vmatprep.subr.bf16.mxu0 0
    %936 = vmatpush1.bf16.msra.mxu0 %v915
    %937 = vmatprep.subr.bf16.mxu0 0
    %938 = vmatpush1.bf16.msra.mxu0 %v916
    %939 = vmatprep.subr.bf16.mxu0 0
    %940 = vmatpush1.bf16.msra.mxu0 %v917
    %941 = vmatprep.subr.bf16.mxu0 0
    %942 = vmatpush1.bf16.msra.mxu0 %v918
    %943 = vmatprep.subr.bf16.mxu0 0
    %944 = vmatpush1.bf16.msra.mxu0 0
    %945 = vmatprep.subr.bf16.mxu0 0
    %946 = vmatpush1.bf16.msra.mxu0 0
    %947 = vmatprep.subr.bf16.mxu0 0
    %948 = vmatpush1.bf16.msra.mxu0 0
    %949 = vmatprep.subr.bf16.mxu0 0
    %950 = vmatpush1.bf16.msra.mxu0 0
    %951 = vmatprep.subr.bf16.mxu0 0
    %952 = vmatpush1.bf16.msra.mxu0 0
    %953 = vmatprep.subr.bf16.mxu0 0
    %954 = vmatpush1.bf16.msra.mxu0 0
    %955 = vmatprep.subr.bf16.mxu0 0
    %956 = vmatpush1.bf16.msra.mxu0 0
    %957 = vmatprep.subr.bf16.mxu0 0
    %958 = vmatpush1.bf16.msra.mxu0 0
    %959 = vmatprep.mubr.bf16.mxu0 0
    %960 = vmatmul.mubr.bf16.gmra.mrb[0].mxu0 %v862
    %v961 = vpop.f32.mrb[0].mxu0
    %v962 = vadd.f32 0.0, %v961
    %v963 = vpop.f32.mrb[0].mxu0
    %v964 = vpop.f32.mrb[0].mxu0
    %v965 = vpop.f32.mrb[0].mxu0
    %966 = vdwg.mxu0
    %v967 = vadd.f32 %v860, %v962
    %v968 = vtanh.pop %v967
    %v969 = vsub.f32 %v968, %v703
    %v970 = vmul.f32 %v856, %v969
    %v971 = vadd.f32 %v703, %v970
    %972 = vst [vmem:[#allocation2] sm:$0xff] %v971
    %v973 = vpack.c.bf16 %v971, %v971
    %s974 = scalar_lea.vmem %s7, 4
    %975 = vst [vmem:[%s974] sm:$0xf] %v973
    %v976 = vld [vmem:[#allocation2] sm:$0xff]
    %s977 = scalar_lea.vmem [#allocation3], 32
    %v978 = vld [vmem:[%s977] sm:$0xff]
    %v979 = vld [vmem:[%s977 + $0x8] sm:$0xff]
    %v980 = vpack.c.bf16 %v976, %v976
    %v981 = vld [vmem:[#allocation5] sm:$0xff]
    %v982 = vld [vmem:[#allocation5 + $0x8] sm:$0xff]
    %v983 = vld [vmem:[#allocation5 + $0x10] sm:$0xff]
    %v984 = vld [vmem:[#allocation5 + $0x18] sm:$0xff]
    %v985 = vld [vmem:[#allocation5 + $0x20] sm:$0xff]
    %v986 = vld [vmem:[#allocation5 + $0x28] sm:$0xff]
    %v987 = vld [vmem:[#allocation5 + $0x30] sm:$0xff]
    %v988 = vld [vmem:[#allocation5 + $0x38] sm:$0xff]
    %v989 = vld [vmem:[#allocation5 + $0x40] sm:$0xff]
    %v990 = vld [vmem:[#allocation5 + $0x48] sm:$0xff]
    %v991 = vld [vmem:[#allocation5 + $0x50] sm:$0xff]
    %v992 = vld [vmem:[#allocation5 + $0x58] sm:$0xff]
    %v993 = vld [vmem:[#allocation5 + $0x60] sm:$0xff]
    %v994 = vld [vmem:[#allocation5 + $0x68] sm:$0xff]
    %v995 = vld [vmem:[#allocation5 + $0x70] sm:$0xff]
    %v996 = vld [vmem:[#allocation5 + $0x78] sm:$0xff]
    %v1013 = vunpack.c.l.b16 %v981
    %v1014 = vunpack.c.h.b16 %v981
    %v1015 = vunpack.c.l.b16 %v982
    %v1016 = vunpack.c.h.b16 %v982
    %v1017 = vunpack.c.l.b16 %v983
    %v1018 = vunpack.c.h.b16 %v983
    %v1019 = vunpack.c.l.b16 %v984
    %v1020 = vunpack.c.h.b16 %v984
    %v1021 = vunpack.c.l.b16 %v985
    %v1022 = vunpack.c.h.b16 %v985
    %v1023 = vunpack.c.l.b16 %v986
    %v1024 = vunpack.c.h.b16 %v986
    %v1025 = vunpack.c.l.b16 %v987
    %v1026 = vunpack.c.h.b16 %v987
    %v1027 = vunpack.c.l.b16 %v988
    %v1028 = vunpack.c.h.b16 %v988
    %v1029 = vunpack.c.l.b16 %v989
    %v1030 = vunpack.c.h.b16 %v989
    %v1031 = vunpack.c.l.b16 %v990
    %v1032 = vunpack.c.h.b16 %v990
    %v1033 = vunpack.c.l.b16 %v991
    %v1034 = vunpack.c.h.b16 %v991
    %v1035 = vunpack.c.l.b16 %v992
    %v1036 = vunpack.c.h.b16 %v992
    %v1037 = vunpack.c.l.b16 %v993
    %v1038 = vunpack.c.h.b16 %v993
    %v1039 = vunpack.c.l.b16 %v994
    %v1040 = vunpack.c.h.b16 %v994
    %v1041 = vunpack.c.l.b16 %v995
    %v1042 = vunpack.c.h.b16 %v995
    %v1043 = vunpack.c.l.b16 %v996
    %v1044 = vunpack.c.h.b16 %v996
    %v1045 = vpack.c.b16 %v1015, %v1013
    %v1046 = vpack.c.b16 %v1016, %v1014
    %v1047 = vpack.c.b16 %v1019, %v1017
    %v1048 = vpack.c.b16 %v1020, %v1018
    %v1049 = vpack.c.b16 %v1023, %v1021
    %v1050 = vpack.c.b16 %v1024, %v1022
    %v1051 = vpack.c.b16 %v1027, %v1025
    %v1052 = vpack.c.b16 %v1028, %v1026
    %v1053 = vpack.c.b16 %v1031, %v1029
    %v1054 = vpack.c.b16 %v1032, %v1030
    %v1055 = vpack.c.b16 %v1035, %v1033
    %v1056 = vpack.c.b16 %v1036, %v1034
    %v1057 = vpack.c.b16 %v1039, %v1037
    %v1058 = vpack.c.b16 %v1040, %v1038
    %v1059 = vpack.c.b16 %v1043, %v1041
    %v1060 = vpack.c.b16 %v1044, %v1042
    %1077 = vmatprep.subr.bf16.mxu0 %v1046
    %1078 = vmatpush1.bf16.msra.mxu0 %v1045
    %1079 = vmatprep.subr.bf16.mxu0 %v1048
    %1080 = vmatpush1.bf16.msra.mxu0 %v1047
    %1081 = vmatprep.subr.bf16.mxu0 %v1050
    %1082 = vmatpush1.bf16.msra.mxu0 %v1049
    %1083 = vmatprep.subr.bf16.mxu0 %v1052
    %1084 = vmatpush1.bf16.msra.mxu0 %v1051
    %1085 = vmatprep.subr.bf16.mxu0 %v1054
    %1086 = vmatpush1.bf16.msra.mxu0 %v1053
    %1087 = vmatprep.subr.bf16.mxu0 %v1056
    %1088 = vmatpush1.bf16.msra.mxu0 %v1055
    %1089 = vmatprep.subr.bf16.mxu0 %v1058
    %1090 = vmatpush1.bf16.msra.mxu0 %v1057
    %1091 = vmatprep.subr.bf16.mxu0 %v1060
    %1092 = vmatpush1.bf16.msra.mxu0 %v1059
    %1093 = vmatprep.subr.bf16.mxu0 0
    %1094 = vmatpush1.bf16.msra.mxu0 0
    %1095 = vmatprep.subr.bf16.mxu0 0
    %1096 = vmatpush1.bf16.msra.mxu0 0
    %1097 = vmatprep.subr.bf16.mxu0 0
    %1098 = vmatpush1.bf16.msra.mxu0 0
    %1099 = vmatprep.subr.bf16.mxu0 0
    %1100 = vmatpush1.bf16.msra.mxu0 0
    %1101 = vmatprep.subr.bf16.mxu0 0
    %1102 = vmatpush1.bf16.msra.mxu0 0
    %1103 = vmatprep.subr.bf16.mxu0 0
    %1104 = vmatpush1.bf16.msra.mxu0 0
    %1105 = vmatprep.subr.bf16.mxu0 0
    %1106 = vmatpush1.bf16.msra.mxu0 0
    %1107 = vmatprep.subr.bf16.mxu0 0
    %1108 = vmatpush1.bf16.msra.mxu0 0
    %1109 = vmatprep.mubr.bf16.mxu0 0
    %1110 = vmatmul.mubr.bf16.gmra.mrb[0].mxu0 %v980
    %v1111 = vpop.f32.mrb[0].mxu0
    %v1112 = vadd.f32 0.0, %v1111
    %v1113 = vpop.f32.mrb[0].mxu0
    %v1114 = vadd.f32 0.0, %v1113
    %v1115 = vpop.f32.mrb[0].mxu0
    %v1116 = vpop.f32.mrb[0].mxu0
    %1117 = vdwg.mxu0
    %v1118 = vadd.f32 %v978, %v1112
    %v1119 = vadd.f32 %v979, %v1114
    %v1120 = vxor.u32 %v1118, 2147483648
    %v1121 = vxor.u32 %v1119, 2147483648
    %v1122 = vmul.f32 %v1120, 1.442695
    %v1123 = vpow.pop %v1122
    %v1124 = vmul.f32 %v1121, 1.442695
    %v1125 = vpow.pop %v1124
    %v1126 = vadd.f32 %v1123, 1.0
    %v1127 = vadd.f32 %v1125, 1.0
    %v1128 = vrcp.pop %v1126
    %v1129 = vmul.f32 1.0, %v1128
    %v1130 = vrcp.pop %v1127
    %v1131 = vmul.f32 1.0, %v1130
    %s1132 = scalar_lea.vmem [#allocation4], 16
    %v1133 = vld [vmem:[%s1132] sm:$0xff]
    %v1134 = vmul.f32 %v1131, %v976
    %v1135 = vpack.c.bf16 %v1134, %v1134
    %v1136 = vld [vmem:[#allocation7] sm:$0xf]
    %v1137 = vld [vmem:[#allocation7 + $0x4] sm:$0xf]
    %v1138 = vld [vmem:[#allocation7 + $0x8] sm:$0xf]
    %v1139 = vld [vmem:[#allocation7 + $0xc] sm:$0xf]
    %v1140 = vld [vmem:[#allocation7 + $0x10] sm:$0xf]
    %v1141 = vld [vmem:[#allocation7 + $0x14] sm:$0xf]
    %v1142 = vld [vmem:[#allocation7 + $0x18] sm:$0xf]
    %v1143 = vld [vmem:[#allocation7 + $0x1c] sm:$0xf]
    %v1144 = vld [vmem:[#allocation7 + $0x20] sm:$0xf]
    %v1145 = vld [vmem:[#allocation7 + $0x24] sm:$0xf]
    %v1146 = vld [vmem:[#allocation7 + $0x28] sm:$0xf]
    %v1147 = vld [vmem:[#allocation7 + $0x2c] sm:$0xf]
    %v1148 = vld [vmem:[#allocation7 + $0x30] sm:$0xf]
    %v1149 = vld [vmem:[#allocation7 + $0x34] sm:$0xf]
    %v1150 = vld [vmem:[#allocation7 + $0x38] sm:$0xf]
    %v1151 = vld [vmem:[#allocation7 + $0x3c] sm:$0xf]
    %v1168 = vunpack.c.l.b16 %v1136
    %v1169 = vunpack.c.l.b16 %v1137
    %v1170 = vunpack.c.l.b16 %v1138
    %v1171 = vunpack.c.l.b16 %v1139
    %v1172 = vunpack.c.l.b16 %v1140
    %v1173 = vunpack.c.l.b16 %v1141
    %v1174 = vunpack.c.l.b16 %v1142
    %v1175 = vunpack.c.l.b16 %v1143
    %v1176 = vunpack.c.l.b16 %v1144
    %v1177 = vunpack.c.l.b16 %v1145
    %v1178 = vunpack.c.l.b16 %v1146
    %v1179 = vunpack.c.l.b16 %v1147
    %v1180 = vunpack.c.l.b16 %v1148
    %v1181 = vunpack.c.l.b16 %v1149
    %v1182 = vunpack.c.l.b16 %v1150
    %v1183 = vunpack.c.l.b16 %v1151
    %v1184 = vpack.c.b16 %v1169, %v1168
    %v1185 = vpack.c.b16 %v1171, %v1170
    %v1186 = vpack.c.b16 %v1173, %v1172
    %v1187 = vpack.c.b16 %v1175, %v1174
    %v1188 = vpack.c.b16 %v1177, %v1176
    %v1189 = vpack.c.b16 %v1179, %v1178
    %v1190 = vpack.c.b16 %v1181, %v1180
    %v1191 = vpack.c.b16 %v1183, %v1182
    %1200 = vmatprep.subr.bf16.mxu0 0
    %1201 = vmatpush1.bf16.msra.mxu0 %v1184
    %1202 = vmatprep.subr.bf16.mxu0 0
    %1203 = vmatpush1.bf16.msra.mxu0 %v1185
    %1204 = vmatprep.subr.bf16.mxu0 0
    %1205 = vmatpush1.bf16.msra.mxu0 %v1186
    %1206 = vmatprep.subr.bf16.mxu0 0
    %1207 = vmatpush1.bf16.msra.mxu0 %v1187
    %1208 = vmatprep.subr.bf16.mxu0 0
    %1209 = vmatpush1.bf16.msra.mxu0 %v1188
    %1210 = vmatprep.subr.bf16.mxu0 0
    %1211 = vmatpush1.bf16.msra.mxu0 %v1189
    %1212 = vmatprep.subr.bf16.mxu0 0
    %1213 = vmatpush1.bf16.msra.mxu0 %v1190
    %1214 = vmatprep.subr.bf16.mxu0 0
    %1215 = vmatpush1.bf16.msra.mxu0 %v1191
    %1216 = vmatprep.subr.bf16.mxu0 0
    %1217 = vmatpush1.bf16.msra.mxu0 0
    %1218 = vmatprep.subr.bf16.mxu0 0
    %1219 = vmatpush1.bf16.msra.mxu0 0
    %1220 = vmatprep.subr.bf16.mxu0 0
    %1221 = vmatpush1.bf16.msra.mxu0 0
    %1222 = vmatprep.subr.bf16.mxu0 0
    %1223 = vmatpush1.bf16.msra.mxu0 0
    %1224 = vmatprep.subr.bf16.mxu0 0
    %1225 = vmatpush1.bf16.msra.mxu0 0
    %1226 = vmatprep.subr.bf16.mxu0 0
    %1227 = vmatpush1.bf16.msra.mxu0 0
    %1228 = vmatprep.subr.bf16.mxu0 0
    %1229 = vmatpush1.bf16.msra.mxu0 0
    %1230 = vmatprep.subr.bf16.mxu0 0
    %1231 = vmatpush1.bf16.msra.mxu0 0
    %1232 = vmatprep.mubr.bf16.mxu0 0
    %1233 = vmatmul.mubr.bf16.gmra.mrb[0].mxu0 %v1135
    %v1234 = vpop.f32.mrb[0].mxu0
    %v1235 = vadd.f32 0.0, %v1234
    %v1236 = vpop.f32.mrb[0].mxu0
    %v1237 = vpop.f32.mrb[0].mxu0
    %v1238 = vpop.f32.mrb[0].mxu0
    %1239 = vdwg.mxu0
    %v1240 = vadd.f32 %v1133, %v1235
    %v1241 = vtanh.pop %v1240
    %v1242 = vsub.f32 %v1241, %v976
    %v1243 = vmul.f32 %v1129, %v1242
    %v1244 = vadd.f32 %v976, %v1243
    %1245 = vst [vmem:[#allocation2] sm:$0xff] %v1244
    %v1246 = vpack.c.bf16 %v1244, %v1244
    %s1247 = scalar_lea.vmem %s7, 8
    %1248 = vst [vmem:[%s1247] sm:$0xf] %v1246
    %v1249 = vld [vmem:[#allocation2] sm:$0xff]
    %s1250 = scalar_lea.vmem [#allocation3], 48
    %v1251 = vld [vmem:[%s1250] sm:$0xff]
    %v1252 = vld [vmem:[%s1250 + $0x8] sm:$0xff]
    %v1253 = vpack.c.bf16 %v1249, %v1249
    %v1254 = vld [vmem:[#allocation5] sm:$0xff]
    %v1255 = vld [vmem:[#allocation5 + $0x8] sm:$0xff]
    %v1256 = vld [vmem:[#allocation5 + $0x10] sm:$0xff]
    %v1257 = vld [vmem:[#allocation5 + $0x18] sm:$0xff]
    %v1258 = vld [vmem:[#allocation5 + $0x20] sm:$0xff]
    %v1259 = vld [vmem:[#allocation5 + $0x28] sm:$0xff]
    %v1260 = vld [vmem:[#allocation5 + $0x30] sm:$0xff]
    %v1261 = vld [vmem:[#allocation5 + $0x38] sm:$0xff]
    %v1262 = vld [vmem:[#allocation5 + $0x40] sm:$0xff]
    %v1263 = vld [vmem:[#allocation5 + $0x48] sm:$0xff]
    %v1264 = vld [vmem:[#allocation5 + $0x50] sm:$0xff]
    %v1265 = vld [vmem:[#allocation5 + $0x58] sm:$0xff]
    %v1266 = vld [vmem:[#allocation5 + $0x60] sm:$0xff]
    %v1267 = vld [vmem:[#allocation5 + $0x68] sm:$0xff]
    %v1268 = vld [vmem:[#allocation5 + $0x70] sm:$0xff]
    %v1269 = vld [vmem:[#allocation5 + $0x78] sm:$0xff]
    %v1286 = vunpack.c.l.b16 %v1254
    %v1287 = vunpack.c.h.b16 %v1254
    %v1288 = vunpack.c.l.b16 %v1255
    %v1289 = vunpack.c.h.b16 %v1255
    %v1290 = vunpack.c.l.b16 %v1256
    %v1291 = vunpack.c.h.b16 %v1256
    %v1292 = vunpack.c.l.b16 %v1257
    %v1293 = vunpack.c.h.b16 %v1257
    %v1294 = vunpack.c.l.b16 %v1258
    %v1295 = vunpack.c.h.b16 %v1258
    %v1296 = vunpack.c.l.b16 %v1259
    %v1297 = vunpack.c.h.b16 %v1259
    %v1298 = vunpack.c.l.b16 %v1260
    %v1299 = vunpack.c.h.b16 %v1260
    %v1300 = vunpack.c.l.b16 %v1261
    %v1301 = vunpack.c.h.b16 %v1261
    %v1302 = vunpack.c.l.b16 %v1262
    %v1303 = vunpack.c.h.b16 %v1262
    %v1304 = vunpack.c.l.b16 %v1263
    %v1305 = vunpack.c.h.b16 %v1263
    %v1306 = vunpack.c.l.b16 %v1264
    %v1307 = vunpack.c.h.b16 %v1264
    %v1308 = vunpack.c.l.b16 %v1265
    %v1309 = vunpack.c.h.b16 %v1265
    %v1310 = vunpack.c.l.b16 %v1266
    %v1311 = vunpack.c.h.b16 %v1266
    %v1312 = vunpack.c.l.b16 %v1267
    %v1313 = vunpack.c.h.b16 %v1267
    %v1314 = vunpack.c.l.b16 %v1268
    %v1315 = vunpack.c.h.b16 %v1268
    %v1316 = vunpack.c.l.b16 %v1269
    %v1317 = vunpack.c.h.b16 %v1269
    %v1318 = vpack.c.b16 %v1288, %v1286
    %v1319 = vpack.c.b16 %v1289, %v1287
    %v1320 = vpack.c.b16 %v1292, %v1290
    %v1321 = vpack.c.b16 %v1293, %v1291
    %v1322 = vpack.c.b16 %v1296, %v1294
    %v1323 = vpack.c.b16 %v1297, %v1295
    %v1324 = vpack.c.b16 %v1300, %v1298
    %v1325 = vpack.c.b16 %v1301, %v1299
    %v1326 = vpack.c.b16 %v1304, %v1302
    %v1327 = vpack.c.b16 %v1305, %v1303
    %v1328 = vpack.c.b16 %v1308, %v1306
    %v1329 = vpack.c.b16 %v1309, %v1307
    %v1330 = vpack.c.b16 %v1312, %v1310
    %v1331 = vpack.c.b16 %v1313, %v1311
    %v1332 = vpack.c.b16 %v1316, %v1314
    %v1333 = vpack.c.b16 %v1317, %v1315
    %1350 = vmatprep.subr.bf16.mxu0 %v1319
    %1351 = vmatpush1.bf16.msra.mxu0 %v1318
    %1352 = vmatprep.subr.bf16.mxu0 %v1321
    %1353 = vmatpush1.bf16.msra.mxu0 %v1320
    %1354 = vmatprep.subr.bf16.mxu0 %v1323
    %1355 = vmatpush1.bf16.msra.mxu0 %v1322
    %1356 = vmatprep.subr.bf16.mxu0 %v1325
    %1357 = vmatpush1.bf16.msra.mxu0 %v1324
    %1358 = vmatprep.subr.bf16.mxu0 %v1327
    %1359 = vmatpush1.bf16.msra.mxu0 %v1326
    %1360 = vmatprep.subr.bf16.mxu0 %v1329
    %1361 = vmatpush1.bf16.msra.mxu0 %v1328
    %1362 = vmatprep.subr.bf16.mxu0 %v1331
    %1363 = vmatpush1.bf16.msra.mxu0 %v1330
    %1364 = vmatprep.subr.bf16.mxu0 %v1333
    %1365 = vmatpush1.bf16.msra.mxu0 %v1332
    %1366 = vmatprep.subr.bf16.mxu0 0
    %1367 = vmatpush1.bf16.msra.mxu0 0
    %1368 = vmatprep.subr.bf16.mxu0 0
    %1369 = vmatpush1.bf16.msra.mxu0 0
    %1370 = vmatprep.subr.bf16.mxu0 0
    %1371 = vmatpush1.bf16.msra.mxu0 0
    %1372 = vmatprep.subr.bf16.mxu0 0
    %1373 = vmatpush1.bf16.msra.mxu0 0
    %1374 = vmatprep.subr.bf16.mxu0 0
    %1375 = vmatpush1.bf16.msra.mxu0 0
    %1376 = vmatprep.subr.bf16.mxu0 0
    %1377 = vmatpush1.bf16.msra.mxu0 0
    %1378 = vmatprep.subr.bf16.mxu0 0
    %1379 = vmatpush1.bf16.msra.mxu0 0
    %1380 = vmatprep.subr.bf16.mxu0 0
    %1381 = vmatpush1.bf16.msra.mxu0 0
    %1382 = vmatprep.mubr.bf16.mxu0 0
    %1383 = vmatmul.mubr.bf16.gmra.mrb[0].mxu0 %v1253
    %v1384 = vpop.f32.mrb[0].mxu0
    %v1385 = vadd.f32 0.0, %v1384
    %v1386 = vpop.f32.mrb[0].mxu0
    %v1387 = vadd.f32 0.0, %v1386
    %v1388 = vpop.f32.mrb[0].mxu0
    %v1389 = vpop.f32.mrb[0].mxu0
    %1390 = vdwg.mxu0
    %v1391 = vadd.f32 %v1251, %v1385
    %v1392 = vadd.f32 %v1252, %v1387
    %v1393 = vxor.u32 %v1391, 2147483648
    %v1394 = vxor.u32 %v1392, 2147483648
    %v1395 = vmul.f32 %v1393, 1.442695
    %v1396 = vpow.pop %v1395
    %v1397 = vmul.f32 %v1394, 1.442695
    %v1398 = vpow.pop %v1397
    %v1399 = vadd.f32 %v1396, 1.0
    %v1400 = vadd.f32 %v1398, 1.0
    %v1401 = vrcp.pop %v1399
    %v1402 = vmul.f32 1.0, %v1401
    %v1403 = vrcp.pop %v1400
    %v1404 = vmul.f32 1.0, %v1403
    %s1405 = scalar_lea.vmem [#allocation4], 24
    %v1406 = vld [vmem:[%s1405] sm:$0xff]
    %v1407 = vmul.f32 %v1404, %v1249
    %v1408 = vpack.c.bf16 %v1407, %v1407
    %v1409 = vld [vmem:[#allocation7] sm:$0xf]
    %v1410 = vld [vmem:[#allocation7 + $0x4] sm:$0xf]
    %v1411 = vld [vmem:[#allocation7 + $0x8] sm:$0xf]
    %v1412 = vld [vmem:[#allocation7 + $0xc] sm:$0xf]
    %v1413 = vld [vmem:[#allocation7 + $0x10] sm:$0xf]
    %v1414 = vld [vmem:[#allocation7 + $0x14] sm:$0xf]
    %v1415 = vld [vmem:[#allocation7 + $0x18] sm:$0xf]
    %v1416 = vld [vmem:[#allocation7 + $0x1c] sm:$0xf]
    %v1417 = vld [vmem:[#allocation7 + $0x20] sm:$0xf]
    %v1418 = vld [vmem:[#allocation7 + $0x24] sm:$0xf]
    %v1419 = vld [vmem:[#allocation7 + $0x28] sm:$0xf]
    %v1420 = vld [vmem:[#allocation7 + $0x2c] sm:$0xf]
    %v1421 = vld [vmem:[#allocation7 + $0x30] sm:$0xf]
    %v1422 = vld [vmem:[#allocation7 + $0x34] sm:$0xf]
    %v1423 = vld [vmem:[#allocation7 + $0x38] sm:$0xf]
    %v1424 = vld [vmem:[#allocation7 + $0x3c] sm:$0xf]
    %v1441 = vunpack.c.l.b16 %v1409
    %v1442 = vunpack.c.l.b16 %v1410
    %v1443 = vunpack.c.l.b16 %v1411
    %v1444 = vunpack.c.l.b16 %v1412
    %v1445 = vunpack.c.l.b16 %v1413
    %v1446 = vunpack.c.l.b16 %v1414
    %v1447 = vunpack.c.l.b16 %v1415
    %v1448 = vunpack.c.l.b16 %v1416
    %v1449 = vunpack.c.l.b16 %v1417
    %v1450 = vunpack.c.l.b16 %v1418
    %v1451 = vunpack.c.l.b16 %v1419
    %v1452 = vunpack.c.l.b16 %v1420
    %v1453 = vunpack.c.l.b16 %v1421
    %v1454 = vunpack.c.l.b16 %v1422
    %v1455 = vunpack.c.l.b16 %v1423
    %v1456 = vunpack.c.l.b16 %v1424
    %v1457 = vpack.c.b16 %v1442, %v1441
    %v1458 = vpack.c.b16 %v1444, %v1443
    %v1459 = vpack.c.b16 %v1446, %v1445
    %v1460 = vpack.c.b16 %v1448, %v1447
    %v1461 = vpack.c.b16 %v1450, %v1449
    %v1462 = vpack.c.b16 %v1452, %v1451
    %v1463 = vpack.c.b16 %v1454, %v1453
    %v1464 = vpack.c.b16 %v1456, %v1455
    %1473 = vmatprep.subr.bf16.mxu0 0
    %1474 = vmatpush1.bf16.msra.mxu0 %v1457
    %1475 = vmatprep.subr.bf16.mxu0 0
    %1476 = vmatpush1.bf16.msra.mxu0 %v1458
    %1477 = vmatprep.subr.bf16.mxu0 0
    %1478 = vmatpush1.bf16.msra.mxu0 %v1459
    %1479 = vmatprep.subr.bf16.mxu0 0
    %1480 = vmatpush1.bf16.msra.mxu0 %v1460
    %1481 = vmatprep.subr.bf16.mxu0 0
    %1482 = vmatpush1.bf16.msra.mxu0 %v1461
    %1483 = vmatprep.subr.bf16.mxu0 0
    %1484 = vmatpush1.bf16.msra.mxu0 %v1462
    %1485 = vmatprep.subr.bf16.mxu0 0
    %1486 = vmatpush1.bf16.msra.mxu0 %v1463
    %1487 = vmatprep.subr.bf16.mxu0 0
    %1488 = vmatpush1.bf16.msra.mxu0 %v1464
    %1489 = vmatprep.subr.bf16.mxu0 0
    %1490 = vmatpush1.bf16.msra.mxu0 0
    %1491 = vmatprep.subr.bf16.mxu0 0
    %1492 = vmatpush1.bf16.msra.mxu0 0
    %1493 = vmatprep.subr.bf16.mxu0 0
    %1494 = vmatpush1.bf16.msra.mxu0 0
    %1495 = vmatprep.subr.bf16.mxu0 0
    %1496 = vmatpush1.bf16.msra.mxu0 0
    %1497 = vmatprep.subr.bf16.mxu0 0
    %1498 = vmatpush1.bf16.msra.mxu0 0
    %1499 = vmatprep.subr.bf16.mxu0 0
    %1500 = vmatpush1.bf16.msra.mxu0 0
    %1501 = vmatprep.subr.bf16.mxu0 0
    %1502 = vmatpush1.bf16.msra.mxu0 0
    %1503 = vmatprep.subr.bf16.mxu0 0
    %1504 = vmatpush1.bf16.msra.mxu0 0
    %1505 = vmatprep.mubr.bf16.mxu0 0
    %1506 = vmatmul.mubr.bf16.gmra.mrb[0].mxu0 %v1408
    %v1507 = vpop.f32.mrb[0].mxu0
    %v1508 = vadd.f32 0.0, %v1507
    %v1509 = vpop.f32.mrb[0].mxu0
    %v1510 = vpop.f32.mrb[0].mxu0
    %v1511 = vpop.f32.mrb[0].mxu0
    %1512 = vdwg.mxu0
    %v1513 = vadd.f32 %v1406, %v1508
    %v1514 = vtanh.pop %v1513
    %v1515 = vsub.f32 %v1514, %v1249
    %v1516 = vmul.f32 %v1402, %v1515
    %v1517 = vadd.f32 %v1249, %v1516
    %1518 = vst [vmem:[#allocation2] sm:$0xff] %v1517
    %v1519 = vpack.c.bf16 %v1517, %v1517
    %s1520 = scalar_lea.vmem %s7, 12
    %1521 = vst [vmem:[%s1520] sm:$0xf] %v1519
    %v1522 = vld [vmem:[#allocation2] sm:$0xff]
    %s1523 = scalar_lea.vmem [#allocation3], 64
    %v1524 = vld [vmem:[%s1523] sm:$0xff]
    %v1525 = vld [vmem:[%s1523 + $0x8] sm:$0xff]
    %v1526 = vpack.c.bf16 %v1522, %v1522
    %v1527 = vld [vmem:[#allocation5] sm:$0xff]
    %v1528 = vld [vmem:[#allocation5 + $0x8] sm:$0xff]
    %v1529 = vld [vmem:[#allocation5 + $0x10] sm:$0xff]
    %v1530 = vld [vmem:[#allocation5 + $0x18] sm:$0xff]
    %v1531 = vld [vmem:[#allocation5 + $0x20] sm:$0xff]
    %v1532 = vld [vmem:[#allocation5 + $0x28] sm:$0xff]
    %v1533 = vld [vmem:[#allocation5 + $0x30] sm:$0xff]
    %v1534 = vld [vmem:[#allocation5 + $0x38] sm:$0xff]
    %v1535 = vld [vmem:[#allocation5 + $0x40] sm:$0xff]
    %v1536 = vld [vmem:[#allocation5 + $0x48] sm:$0xff]
    %v1537 = vld [vmem:[#allocation5 + $0x50] sm:$0xff]
    %v1538 = vld [vmem:[#allocation5 + $0x58] sm:$0xff]
    %v1539 = vld [vmem:[#allocation5 + $0x60] sm:$0xff]
    %v1540 = vld [vmem:[#allocation5 + $0x68] sm:$0xff]
    %v1541 = vld [vmem:[#allocation5 + $0x70] sm:$0xff]
    %v1542 = vld [vmem:[#allocation5 + $0x78] sm:$0xff]
    %v1559 = vunpack.c.l.b16 %v1527
    %v1560 = vunpack.c.h.b16 %v1527
    %v1561 = vunpack.c.l.b16 %v1528
    %v1562 = vunpack.c.h.b16 %v1528
    %v1563 = vunpack.c.l.b16 %v1529
    %v1564 = vunpack.c.h.b16 %v1529
    %v1565 = vunpack.c.l.b16 %v1530
    %v1566 = vunpack.c.h.b16 %v1530
    %v1567 = vunpack.c.l.b16 %v1531
    %v1568 = vunpack.c.h.b16 %v1531
    %v1569 = vunpack.c.l.b16 %v1532
    %v1570 = vunpack.c.h.b16 %v1532
    %v1571 = vunpack.c.l.b16 %v1533
    %v1572 = vunpack.c.h.b16 %v1533
    %v1573 = vunpack.c.l.b16 %v1534
    %v1574 = vunpack.c.h.b16 %v1534
    %v1575 = vunpack.c.l.b16 %v1535
    %v1576 = vunpack.c.h.b16 %v1535
    %v1577 = vunpack.c.l.b16 %v1536
    %v1578 = vunpack.c.h.b16 %v1536
    %v1579 = vunpack.c.l.b16 %v1537
    %v1580 = vunpack.c.h.b16 %v1537
    %v1581 = vunpack.c.l.b16 %v1538
    %v1582 = vunpack.c.h.b16 %v1538
    %v1583 = vunpack.c.l.b16 %v1539
    %v1584 = vunpack.c.h.b16 %v1539
    %v1585 = vunpack.c.l.b16 %v1540
    %v1586 = vunpack.c.h.b16 %v1540
    %v1587 = vunpack.c.l.b16 %v1541
    %v1588 = vunpack.c.h.b16 %v1541
    %v1589 = vunpack.c.l.b16 %v1542
    %v1590 = vunpack.c.h.b16 %v1542
    %v1591 = vpack.c.b16 %v1561, %v1559
    %v1592 = vpack.c.b16 %v1562, %v1560
    %v1593 = vpack.c.b16 %v1565, %v1563
    %v1594 = vpack.c.b16 %v1566, %v1564
    %v1595 = vpack.c.b16 %v1569, %v1567
    %v1596 = vpack.c.b16 %v1570, %v1568
    %v1597 = vpack.c.b16 %v1573, %v1571
    %v1598 = vpack.c.b16 %v1574, %v1572
    %v1599 = vpack.c.b16 %v1577, %v1575
    %v1600 = vpack.c.b16 %v1578, %v1576
    %v1601 = vpack.c.b16 %v1581, %v1579
    %v1602 = vpack.c.b16 %v1582, %v1580
    %v1603 = vpack.c.b16 %v1585, %v1583
    %v1604 = vpack.c.b16 %v1586, %v1584
    %v1605 = vpack.c.b16 %v1589, %v1587
    %v1606 = vpack.c.b16 %v1590, %v1588
    %1623 = vmatprep.subr.bf16.mxu0 %v1592
    %1624 = vmatpush1.bf16.msra.mxu0 %v1591
    %1625 = vmatprep.subr.bf16.mxu0 %v1594
    %1626 = vmatpush1.bf16.msra.mxu0 %v1593
    %1627 = vmatprep.subr.bf16.mxu0 %v1596
    %1628 = vmatpush1.bf16.msra.mxu0 %v1595
    %1629 = vmatprep.subr.bf16.mxu0 %v1598
    %1630 = vmatpush1.bf16.msra.mxu0 %v1597
    %1631 = vmatprep.subr.bf16.mxu0 %v1600
    %1632 = vmatpush1.bf16.msra.mxu0 %v1599
    %1633 = vmatprep.subr.bf16.mxu0 %v1602
    %1634 = vmatpush1.bf16.msra.mxu0 %v1601
    %1635 = vmatprep.subr.bf16.mxu0 %v1604
    %1636 = vmatpush1.bf16.msra.mxu0 %v1603
    %1637 = vmatprep.subr.bf16.mxu0 %v1606
    %1638 = vmatpush1.bf16.msra.mxu0 %v1605
    %1639 = vmatprep.subr.bf16.mxu0 0
    %1640 = vmatpush1.bf16.msra.mxu0 0
    %1641 = vmatprep.subr.bf16.mxu0 0
    %1642 = vmatpush1.bf16.msra.mxu0 0
    %1643 = vmatprep.subr.bf16.mxu0 0
    %1644 = vmatpush1.bf16.msra.mxu0 0
    %1645 = vmatprep.subr.bf16.mxu0 0
    %1646 = vmatpush1.bf16.msra.mxu0 0
    %1647 = vmatprep.subr.bf16.mxu0 0
    %1648 = vmatpush1.bf16.msra.mxu0 0
    %1649 = vmatprep.subr.bf16.mxu0 0
    %1650 = vmatpush1.bf16.msra.mxu0 0
    %1651 = vmatprep.subr.bf16.mxu0 0
    %1652 = vmatpush1.bf16.msra.mxu0 0
    %1653 = vmatprep.subr.bf16.mxu0 0
    %1654 = vmatpush1.bf16.msra.mxu0 0
    %1655 = vmatprep.mubr.bf16.mxu0 0
    %1656 = vmatmul.mubr.bf16.gmra.mrb[0].mxu0 %v1526
    %v1657 = vpop.f32.mrb[0].mxu0
    %v1658 = vadd.f32 0.0, %v1657
    %v1659 = vpop.f32.mrb[0].mxu0
    %v1660 = vadd.f32 0.0, %v1659
    %v1661 = vpop.f32.mrb[0].mxu0
    %v1662 = vpop.f32.mrb[0].mxu0
    %1663 = vdwg.mxu0
    %v1664 = vadd.f32 %v1524, %v1658
    %v1665 = vadd.f32 %v1525, %v1660
    %v1666 = vxor.u32 %v1664, 2147483648
    %v1667 = vxor.u32 %v1665, 2147483648
    %v1668 = vmul.f32 %v1666, 1.442695
    %v1669 = vpow.pop %v1668
    %v1670 = vmul.f32 %v1667, 1.442695
    %v1671 = vpow.pop %v1670
    %v1672 = vadd.f32 %v1669, 1.0
    %v1673 = vadd.f32 %v1671, 1.0
    %v1674 = vrcp.pop %v1672
    %v1675 = vmul.f32 1.0, %v1674
    %v1676 = vrcp.pop %v1673
    %v1677 = vmul.f32 1.0, %v1676
    %s1678 = scalar_lea.vmem [#allocation4], 32
    %v1679 = vld [vmem:[%s1678] sm:$0xff]
    %v1680 = vmul.f32 %v1677, %v1522
    %v1681 = vpack.c.bf16 %v1680, %v1680
    %v1682 = vld [vmem:[#allocation7] sm:$0xf]
    %v1683 = vld [vmem:[#allocation7 + $0x4] sm:$0xf]
    %v1684 = vld [vmem:[#allocation7 + $0x8] sm:$0xf]
    %v1685 = vld [vmem:[#allocation7 + $0xc] sm:$0xf]
    %v1686 = vld [vmem:[#allocation7 + $0x10] sm:$0xf]
    %v1687 = vld [vmem:[#allocation7 + $0x14] sm:$0xf]
    %v1688 = vld [vmem:[#allocation7 + $0x18] sm:$0xf]
    %v1689 = vld [vmem:[#allocation7 + $0x1c] sm:$0xf]
    %v1690 = vld [vmem:[#allocation7 + $0x20] sm:$0xf]
    %v1691 = vld [vmem:[#allocation7 + $0x24] sm:$0xf]
    %v1692 = vld [vmem:[#allocation7 + $0x28] sm:$0xf]
    %v1693 = vld [vmem:[#allocation7 + $0x2c] sm:$0xf]
    %v1694 = vld [vmem:[#allocation7 + $0x30] sm:$0xf]
    %v1695 = vld [vmem:[#allocation7 + $0x34] sm:$0xf]
    %v1696 = vld [vmem:[#allocation7 + $0x38] sm:$0xf]
    %v1697 = vld [vmem:[#allocation7 + $0x3c] sm:$0xf]
    %v1714 = vunpack.c.l.b16 %v1682
    %v1715 = vunpack.c.l.b16 %v1683
    %v1716 = vunpack.c.l.b16 %v1684
    %v1717 = vunpack.c.l.b16 %v1685
    %v1718 = vunpack.c.l.b16 %v1686
    %v1719 = vunpack.c.l.b16 %v1687
    %v1720 = vunpack.c.l.b16 %v1688
    %v1721 = vunpack.c.l.b16 %v1689
    %v1722 = vunpack.c.l.b16 %v1690
    %v1723 = vunpack.c.l.b16 %v1691
    %v1724 = vunpack.c.l.b16 %v1692
    %v1725 = vunpack.c.l.b16 %v1693
    %v1726 = vunpack.c.l.b16 %v1694
    %v1727 = vunpack.c.l.b16 %v1695
    %v1728 = vunpack.c.l.b16 %v1696
    %v1729 = vunpack.c.l.b16 %v1697
    %v1730 = vpack.c.b16 %v1715, %v1714
    %v1731 = vpack.c.b16 %v1717, %v1716
    %v1732 = vpack.c.b16 %v1719, %v1718
    %v1733 = vpack.c.b16 %v1721, %v1720
    %v1734 = vpack.c.b16 %v1723, %v1722
    %v1735 = vpack.c.b16 %v1725, %v1724
    %v1736 = vpack.c.b16 %v1727, %v1726
    %v1737 = vpack.c.b16 %v1729, %v1728
    %1746 = vmatprep.subr.bf16.mxu0 0
    %1747 = vmatpush1.bf16.msra.mxu0 %v1730
    %1748 = vmatprep.subr.bf16.mxu0 0
    %1749 = vmatpush1.bf16.msra.mxu0 %v1731
    %1750 = vmatprep.subr.bf16.mxu0 0
    %1751 = vmatpush1.bf16.msra.mxu0 %v1732
    %1752 = vmatprep.subr.bf16.mxu0 0
    %1753 = vmatpush1.bf16.msra.mxu0 %v1733
    %1754 = vmatprep.subr.bf16.mxu0 0
    %1755 = vmatpush1.bf16.msra.mxu0 %v1734
    %1756 = vmatprep.subr.bf16.mxu0 0
    %1757 = vmatpush1.bf16.msra.mxu0 %v1735
    %1758 = vmatprep.subr.bf16.mxu0 0
    %1759 = vmatpush1.bf16.msra.mxu0 %v1736
    %1760 = vmatprep.subr.bf16.mxu0 0
    %1761 = vmatpush1.bf16.msra.mxu0 %v1737
    %1762 = vmatprep.subr.bf16.mxu0 0
    %1763 = vmatpush1.bf16.msra.mxu0 0
    %1764 = vmatprep.subr.bf16.mxu0 0
    %1765 = vmatpush1.bf16.msra.mxu0 0
    %1766 = vmatprep.subr.bf16.mxu0 0
    %1767 = vmatpush1.bf16.msra.mxu0 0
    %1768 = vmatprep.subr.bf16.mxu0 0
    %1769 = vmatpush1.bf16.msra.mxu0 0
    %1770 = vmatprep.subr.bf16.mxu0 0
    %1771 = vmatpush1.bf16.msra.mxu0 0
    %1772 = vmatprep.subr.bf16.mxu0 0
    %1773 = vmatpush1.bf16.msra.mxu0 0
    %1774 = vmatprep.subr.bf16.mxu0 0
    %1775 = vmatpush1.bf16.msra.mxu0 0
    %1776 = vmatprep.subr.bf16.mxu0 0
    %1777 = vmatpush1.bf16.msra.mxu0 0
    %1778 = vmatprep.mubr.bf16.mxu0 0
    %1779 = vmatmul.mubr.bf16.gmra.mrb[0].mxu0 %v1681
    %v1780 = vpop.f32.mrb[0].mxu0
    %v1781 = vadd.f32 0.0, %v1780
    %v1782 = vpop.f32.mrb[0].mxu0
    %v1783 = vpop.f32.mrb[0].mxu0
    %v1784 = vpop.f32.mrb[0].mxu0
    %1785 = vdwg.mxu0
    %v1786 = vadd.f32 %v1679, %v1781
    %v1787 = vtanh.pop %v1786
    %v1788 = vsub.f32 %v1787, %v1522
    %v1789 = vmul.f32 %v1675, %v1788
    %v1790 = vadd.f32 %v1522, %v1789
    %1791 = vst [vmem:[#allocation2] sm:$0xff] %v1790
    %v1792 = vpack.c.bf16 %v1790, %v1790
    %s1793 = scalar_lea.vmem %s7, 16
    %1794 = vst [vmem:[%s1793] sm:$0xf] %v1792
    %v1795 = vld [vmem:[#allocation2] sm:$0xff]
    %s1796 = scalar_lea.vmem [#allocation3], 80
    %v1797 = vld [vmem:[%s1796] sm:$0xff]
    %v1798 = vld [vmem:[%s1796 + $0x8] sm:$0xff]
    %v1799 = vpack.c.bf16 %v1795, %v1795
    %v1800 = vld [vmem:[#allocation5] sm:$0xff]
    %v1801 = vld [vmem:[#allocation5 + $0x8] sm:$0xff]
    %v1802 = vld [vmem:[#allocation5 + $0x10] sm:$0xff]
    %v1803 = vld [vmem:[#allocation5 + $0x18] sm:$0xff]
    %v1804 = vld [vmem:[#allocation5 + $0x20] sm:$0xff]
    %v1805 = vld [vmem:[#allocation5 + $0x28] sm:$0xff]
    %v1806 = vld [vmem:[#allocation5 + $0x30] sm:$0xff]
    %v1807 = vld [vmem:[#allocation5 + $0x38] sm:$0xff]
    %v1808 = vld [vmem:[#allocation5 + $0x40] sm:$0xff]
    %v1809 = vld [vmem:[#allocation5 + $0x48] sm:$0xff]
    %v1810 = vld [vmem:[#allocation5 + $0x50] sm:$0xff]
    %v1811 = vld [vmem:[#allocation5 + $0x58] sm:$0xff]
    %v1812 = vld [vmem:[#allocation5 + $0x60] sm:$0xff]
    %v1813 = vld [vmem:[#allocation5 + $0x68] sm:$0xff]
    %v1814 = vld [vmem:[#allocation5 + $0x70] sm:$0xff]
    %v1815 = vld [vmem:[#allocation5 + $0x78] sm:$0xff]
    %v1832 = vunpack.c.l.b16 %v1800
    %v1833 = vunpack.c.h.b16 %v1800
    %v1834 = vunpack.c.l.b16 %v1801
    %v1835 = vunpack.c.h.b16 %v1801
    %v1836 = vunpack.c.l.b16 %v1802
    %v1837 = vunpack.c.h.b16 %v1802
    %v1838 = vunpack.c.l.b16 %v1803
    %v1839 = vunpack.c.h.b16 %v1803
    %v1840 = vunpack.c.l.b16 %v1804
    %v1841 = vunpack.c.h.b16 %v1804
    %v1842 = vunpack.c.l.b16 %v1805
    %v1843 = vunpack.c.h.b16 %v1805
    %v1844 = vunpack.c.l.b16 %v1806
    %v1845 = vunpack.c.h.b16 %v1806
    %v1846 = vunpack.c.l.b16 %v1807
    %v1847 = vunpack.c.h.b16 %v1807
    %v1848 = vunpack.c.l.b16 %v1808
    %v1849 = vunpack.c.h.b16 %v1808
    %v1850 = vunpack.c.l.b16 %v1809
    %v1851 = vunpack.c.h.b16 %v1809
    %v1852 = vunpack.c.l.b16 %v1810
    %v1853 = vunpack.c.h.b16 %v1810
    %v1854 = vunpack.c.l.b16 %v1811
    %v1855 = vunpack.c.h.b16 %v1811
    %v1856 = vunpack.c.l.b16 %v1812
    %v1857 = vunpack.c.h.b16 %v1812
    %v1858 = vunpack.c.l.b16 %v1813
    %v1859 = vunpack.c.h.b16 %v1813
    %v1860 = vunpack.c.l.b16 %v1814
    %v1861 = vunpack.c.h.b16 %v1814
    %v1862 = vunpack.c.l.b16 %v1815
    %v1863 = vunpack.c.h.b16 %v1815
    %v1864 = vpack.c.b16 %v1834, %v1832
    %v1865 = vpack.c.b16 %v1835, %v1833
    %v1866 = vpack.c.b16 %v1838, %v1836
    %v1867 = vpack.c.b16 %v1839, %v1837
    %v1868 = vpack.c.b16 %v1842, %v1840
    %v1869 = vpack.c.b16 %v1843, %v1841
    %v1870 = vpack.c.b16 %v1846, %v1844
    %v1871 = vpack.c.b16 %v1847, %v1845
    %v1872 = vpack.c.b16 %v1850, %v1848
    %v1873 = vpack.c.b16 %v1851, %v1849
    %v1874 = vpack.c.b16 %v1854, %v1852
    %v1875 = vpack.c.b16 %v1855, %v1853
    %v1876 = vpack.c.b16 %v1858, %v1856
    %v1877 = vpack.c.b16 %v1859, %v1857
    %v1878 = vpack.c.b16 %v1862, %v1860
    %v1879 = vpack.c.b16 %v1863, %v1861
    %1896 = vmatprep.subr.bf16.mxu0 %v1865
    %1897 = vmatpush1.bf16.msra.mxu0 %v1864
    %1898 = vmatprep.subr.bf16.mxu0 %v1867
    %1899 = vmatpush1.bf16.msra.mxu0 %v1866
    %1900 = vmatprep.subr.bf16.mxu0 %v1869
    %1901 = vmatpush1.bf16.msra.mxu0 %v1868
    %1902 = vmatprep.subr.bf16.mxu0 %v1871
    %1903 = vmatpush1.bf16.msra.mxu0 %v1870
    %1904 = vmatprep.subr.bf16.mxu0 %v1873
    %1905 = vmatpush1.bf16.msra.mxu0 %v1872
    %1906 = vmatprep.subr.bf16.mxu0 %v1875
    %1907 = vmatpush1.bf16.msra.mxu0 %v1874
    %1908 = vmatprep.subr.bf16.mxu0 %v1877
    %1909 = vmatpush1.bf16.msra.mxu0 %v1876
    %1910 = vmatprep.subr.bf16.mxu0 %v1879
    %1911 = vmatpush1.bf16.msra.mxu0 %v1878
    %1912 = vmatprep.subr.bf16.mxu0 0
    %1913 = vmatpush1.bf16.msra.mxu0 0
    %1914 = vmatprep.subr.bf16.mxu0 0
    %1915 = vmatpush1.bf16.msra.mxu0 0
    %1916 = vmatprep.subr.bf16.mxu0 0
    %1917 = vmatpush1.bf16.msra.mxu0 0
    %1918 = vmatprep.subr.bf16.mxu0 0
    %1919 = vmatpush1.bf16.msra.mxu0 0
    %1920 = vmatprep.subr.bf16.mxu0 0
    %1921 = vmatpush1.bf16.msra.mxu0 0
    %1922 = vmatprep.subr.bf16.mxu0 0
    %1923 = vmatpush1.bf16.msra.mxu0 0
    %1924 = vmatprep.subr.bf16.mxu0 0
    %1925 = vmatpush1.bf16.msra.mxu0 0
    %1926 = vmatprep.subr.bf16.mxu0 0
    %1927 = vmatpush1.bf16.msra.mxu0 0
    %1928 = vmatprep.mubr.bf16.mxu0 0
    %1929 = vmatmul.mubr.bf16.gmra.mrb[0].mxu0 %v1799
    %v1930 = vpop.f32.mrb[0].mxu0
    %v1931 = vadd.f32 0.0, %v1930
    %v1932 = vpop.f32.mrb[0].mxu0
    %v1933 = vadd.f32 0.0, %v1932
    %v1934 = vpop.f32.mrb[0].mxu0
    %v1935 = vpop.f32.mrb[0].mxu0
    %1936 = vdwg.mxu0
    %v1937 = vadd.f32 %v1797, %v1931
    %v1938 = vadd.f32 %v1798, %v1933
    %v1939 = vxor.u32 %v1937, 2147483648
    %v1940 = vxor.u32 %v1938, 2147483648
    %v1941 = vmul.f32 %v1939, 1.442695
    %v1942 = vpow.pop %v1941
    %v1943 = vmul.f32 %v1940, 1.442695
    %v1944 = vpow.pop %v1943
    %v1945 = vadd.f32 %v1942, 1.0
    %v1946 = vadd.f32 %v1944, 1.0
    %v1947 = vrcp.pop %v1945
    %v1948 = vmul.f32 1.0, %v1947
    %v1949 = vrcp.pop %v1946
    %v1950 = vmul.f32 1.0, %v1949
    %s1951 = scalar_lea.vmem [#allocation4], 40
    %v1952 = vld [vmem:[%s1951] sm:$0xff]
    %v1953 = vmul.f32 %v1950, %v1795
    %v1954 = vpack.c.bf16 %v1953, %v1953
    %v1955 = vld [vmem:[#allocation7] sm:$0xf]
    %v1956 = vld [vmem:[#allocation7 + $0x4] sm:$0xf]
    %v1957 = vld [vmem:[#allocation7 + $0x8] sm:$0xf]
    %v1958 = vld [vmem:[#allocation7 + $0xc] sm:$0xf]
    %v1959 = vld [vmem:[#allocation7 + $0x10] sm:$0xf]
    %v1960 = vld [vmem:[#allocation7 + $0x14] sm:$0xf]
    %v1961 = vld [vmem:[#allocation7 + $0x18] sm:$0xf]
    %v1962 = vld [vmem:[#allocation7 + $0x1c] sm:$0xf]
    %v1963 = vld [vmem:[#allocation7 + $0x20] sm:$0xf]
    %v1964 = vld [vmem:[#allocation7 + $0x24] sm:$0xf]
    %v1965 = vld [vmem:[#allocation7 + $0x28] sm:$0xf]
    %v1966 = vld [vmem:[#allocation7 + $0x2c] sm:$0xf]
    %v1967 = vld [vmem:[#allocation7 + $0x30] sm:$0xf]
    %v1968 = vld [vmem:[#allocation7 + $0x34] sm:$0xf]
    %v1969 = vld [vmem:[#allocation7 + $0x38] sm:$0xf]
    %v1970 = vld [vmem:[#allocation7 + $0x3c] sm:$0xf]
    %v1987 = vunpack.c.l.b16 %v1955
    %v1988 = vunpack.c.l.b16 %v1956
    %v1989 = vunpack.c.l.b16 %v1957
    %v1990 = vunpack.c.l.b16 %v1958
    %v1991 = vunpack.c.l.b16 %v1959
    %v1992 = vunpack.c.l.b16 %v1960
    %v1993 = vunpack.c.l.b16 %v1961
    %v1994 = vunpack.c.l.b16 %v1962
    %v1995 = vunpack.c.l.b16 %v1963
    %v1996 = vunpack.c.l.b16 %v1964
    %v1997 = vunpack.c.l.b16 %v1965
    %v1998 = vunpack.c.l.b16 %v1966
    %v1999 = vunpack.c.l.b16 %v1967
    %v2000 = vunpack.c.l.b16 %v1968
    %v2001 = vunpack.c.l.b16 %v1969
    %v2002 = vunpack.c.l.b16 %v1970
    %v2003 = vpack.c.b16 %v1988, %v1987
    %v2004 = vpack.c.b16 %v1990, %v1989
    %v2005 = vpack.c.b16 %v1992, %v1991
    %v2006 = vpack.c.b16 %v1994, %v1993
    %v2007 = vpack.c.b16 %v1996, %v1995
    %v2008 = vpack.c.b16 %v1998, %v1997
    %v2009 = vpack.c.b16 %v2000, %v1999
    %v2010 = vpack.c.b16 %v2002, %v2001
    %2019 = vmatprep.subr.bf16.mxu0 0
    %2020 = vmatpush1.bf16.msra.mxu0 %v2003
    %2021 = vmatprep.subr.bf16.mxu0 0
    %2022 = vmatpush1.bf16.msra.mxu0 %v2004
    %2023 = vmatprep.subr.bf16.mxu0 0
    %2024 = vmatpush1.bf16.msra.mxu0 %v2005
    %2025 = vmatprep.subr.bf16.mxu0 0
    %2026 = vmatpush1.bf16.msra.mxu0 %v2006
    %2027 = vmatprep.subr.bf16.mxu0 0
    %2028 = vmatpush1.bf16.msra.mxu0 %v2007
    %2029 = vmatprep.subr.bf16.mxu0 0
    %2030 = vmatpush1.bf16.msra.mxu0 %v2008
    %2031 = vmatprep.subr.bf16.mxu0 0
    %2032 = vmatpush1.bf16.msra.mxu0 %v2009
    %2033 = vmatprep.subr.bf16.mxu0 0
    %2034 = vmatpush1.bf16.msra.mxu0 %v2010
    %2035 = vmatprep.subr.bf16.mxu0 0
    %2036 = vmatpush1.bf16.msra.mxu0 0
    %2037 = vmatprep.subr.bf16.mxu0 0
    %2038 = vmatpush1.bf16.msra.mxu0 0
    %2039 = vmatprep.subr.bf16.mxu0 0
    %2040 = vmatpush1.bf16.msra.mxu0 0
    %2041 = vmatprep.subr.bf16.mxu0 0
    %2042 = vmatpush1.bf16.msra.mxu0 0
    %2043 = vmatprep.subr.bf16.mxu0 0
    %2044 = vmatpush1.bf16.msra.mxu0 0
    %2045 = vmatprep.subr.bf16.mxu0 0
    %2046 = vmatpush1.bf16.msra.mxu0 0
    %2047 = vmatprep.subr.bf16.mxu0 0
    %2048 = vmatpush1.bf16.msra.mxu0 0
    %2049 = vmatprep.subr.bf16.mxu0 0
    %2050 = vmatpush1.bf16.msra.mxu0 0
    %2051 = vmatprep.mubr.bf16.mxu0 0
    %2052 = vmatmul.mubr.bf16.gmra.mrb[0].mxu0 %v1954
    %v2053 = vpop.f32.mrb[0].mxu0
    %v2054 = vadd.f32 0.0, %v2053
    %v2055 = vpop.f32.mrb[0].mxu0
    %v2056 = vpop.f32.mrb[0].mxu0
    %v2057 = vpop.f32.mrb[0].mxu0
    %2058 = vdwg.mxu0
    %v2059 = vadd.f32 %v1952, %v2054
    %v2060 = vtanh.pop %v2059
    %v2061 = vsub.f32 %v2060, %v1795
    %v2062 = vmul.f32 %v1948, %v2061
    %v2063 = vadd.f32 %v1795, %v2062
    %2064 = vst [vmem:[#allocation2] sm:$0xff] %v2063
    %v2065 = vpack.c.bf16 %v2063, %v2063
    %s2066 = scalar_lea.vmem %s7, 20
    %2067 = vst [vmem:[%s2066] sm:$0xf] %v2065
    %v2068 = vld [vmem:[#allocation2] sm:$0xff]
    %s2069 = scalar_lea.vmem [#allocation3], 96
    %v2070 = vld [vmem:[%s2069] sm:$0xff]
    %v2071 = vld [vmem:[%s2069 + $0x8] sm:$0xff]
    %v2072 = vpack.c.bf16 %v2068, %v2068
    %v2073 = vld [vmem:[#allocation5] sm:$0xff]
    %v2074 = vld [vmem:[#allocation5 + $0x8] sm:$0xff]
    %v2075 = vld [vmem:[#allocation5 + $0x10] sm:$0xff]
    %v2076 = vld [vmem:[#allocation5 + $0x18] sm:$0xff]
    %v2077 = vld [vmem:[#allocation5 + $0x20] sm:$0xff]
    %v2078 = vld [vmem:[#allocation5 + $0x28] sm:$0xff]
    %v2079 = vld [vmem:[#allocation5 + $0x30] sm:$0xff]
    %v2080 = vld [vmem:[#allocation5 + $0x38] sm:$0xff]
    %v2081 = vld [vmem:[#allocation5 + $0x40] sm:$0xff]
    %v2082 = vld [vmem:[#allocation5 + $0x48] sm:$0xff]
    %v2083 = vld [vmem:[#allocation5 + $0x50] sm:$0xff]
    %v2084 = vld [vmem:[#allocation5 + $0x58] sm:$0xff]
    %v2085 = vld [vmem:[#allocation5 + $0x60] sm:$0xff]
    %v2086 = vld [vmem:[#allocation5 + $0x68] sm:$0xff]
    %v2087 = vld [vmem:[#allocation5 + $0x70] sm:$0xff]
    %v2088 = vld [vmem:[#allocation5 + $0x78] sm:$0xff]
    %v2105 = vunpack.c.l.b16 %v2073
    %v2106 = vunpack.c.h.b16 %v2073
    %v2107 = vunpack.c.l.b16 %v2074
    %v2108 = vunpack.c.h.b16 %v2074
    %v2109 = vunpack.c.l.b16 %v2075
    %v2110 = vunpack.c.h.b16 %v2075
    %v2111 = vunpack.c.l.b16 %v2076
    %v2112 = vunpack.c.h.b16 %v2076
    %v2113 = vunpack.c.l.b16 %v2077
    %v2114 = vunpack.c.h.b16 %v2077
    %v2115 = vunpack.c.l.b16 %v2078
    %v2116 = vunpack.c.h.b16 %v2078
    %v2117 = vunpack.c.l.b16 %v2079
    %v2118 = vunpack.c.h.b16 %v2079
    %v2119 = vunpack.c.l.b16 %v2080
    %v2120 = vunpack.c.h.b16 %v2080
    %v2121 = vunpack.c.l.b16 %v2081
    %v2122 = vunpack.c.h.b16 %v2081
    %v2123 = vunpack.c.l.b16 %v2082
    %v2124 = vunpack.c.h.b16 %v2082
    %v2125 = vunpack.c.l.b16 %v2083
    %v2126 = vunpack.c.h.b16 %v2083
    %v2127 = vunpack.c.l.b16 %v2084
    %v2128 = vunpack.c.h.b16 %v2084
    %v2129 = vunpack.c.l.b16 %v2085
    %v2130 = vunpack.c.h.b16 %v2085
    %v2131 = vunpack.c.l.b16 %v2086
    %v2132 = vunpack.c.h.b16 %v2086
    %v2133 = vunpack.c.l.b16 %v2087
    %v2134 = vunpack.c.h.b16 %v2087
    %v2135 = vunpack.c.l.b16 %v2088
    %v2136 = vunpack.c.h.b16 %v2088
    %v2137 = vpack.c.b16 %v2107, %v2105
    %v2138 = vpack.c.b16 %v2108, %v2106
    %v2139 = vpack.c.b16 %v2111, %v2109
    %v2140 = vpack.c.b16 %v2112, %v2110
    %v2141 = vpack.c.b16 %v2115, %v2113
    %v2142 = vpack.c.b16 %v2116, %v2114
    %v2143 = vpack.c.b16 %v2119, %v2117
    %v2144 = vpack.c.b16 %v2120, %v2118
    %v2145 = vpack.c.b16 %v2123, %v2121
    %v2146 = vpack.c.b16 %v2124, %v2122
    %v2147 = vpack.c.b16 %v2127, %v2125
    %v2148 = vpack.c.b16 %v2128, %v2126
    %v2149 = vpack.c.b16 %v2131, %v2129
    %v2150 = vpack.c.b16 %v2132, %v2130
    %v2151 = vpack.c.b16 %v2135, %v2133
    %v2152 = vpack.c.b16 %v2136, %v2134
    %2169 = vmatprep.subr.bf16.mxu0 %v2138
    %2170 = vmatpush1.bf16.msra.mxu0 %v2137
    %2171 = vmatprep.subr.bf16.mxu0 %v2140
    %2172 = vmatpush1.bf16.msra.mxu0 %v2139
    %2173 = vmatprep.subr.bf16.mxu0 %v2142
    %2174 = vmatpush1.bf16.msra.mxu0 %v2141
    %2175 = vmatprep.subr.bf16.mxu0 %v2144
    %2176 = vmatpush1.bf16.msra.mxu0 %v2143
    %2177 = vmatprep.subr.bf16.mxu0 %v2146
    %2178 = vmatpush1.bf16.msra.mxu0 %v2145
    %2179 = vmatprep.subr.bf16.mxu0 %v2148
    %2180 = vmatpush1.bf16.msra.mxu0 %v2147
    %2181 = vmatprep.subr.bf16.mxu0 %v2150
    %2182 = vmatpush1.bf16.msra.mxu0 %v2149
    %2183 = vmatprep.subr.bf16.mxu0 %v2152
    %2184 = vmatpush1.bf16.msra.mxu0 %v2151
    %2185 = vmatprep.subr.bf16.mxu0 0
    %2186 = vmatpush1.bf16.msra.mxu0 0
    %2187 = vmatprep.subr.bf16.mxu0 0
    %2188 = vmatpush1.bf16.msra.mxu0 0
    %2189 = vmatprep.subr.bf16.mxu0 0
    %2190 = vmatpush1.bf16.msra.mxu0 0
    %2191 = vmatprep.subr.bf16.mxu0 0
    %2192 = vmatpush1.bf16.msra.mxu0 0
    %2193 = vmatprep.subr.bf16.mxu0 0
    %2194 = vmatpush1.bf16.msra.mxu0 0
    %2195 = vmatprep.subr.bf16.mxu0 0
    %2196 = vmatpush1.bf16.msra.mxu0 0
    %2197 = vmatprep.subr.bf16.mxu0 0
    %2198 = vmatpush1.bf16.msra.mxu0 0
    %2199 = vmatprep.subr.bf16.mxu0 0
    %2200 = vmatpush1.bf16.msra.mxu0 0
    %2201 = vmatprep.mubr.bf16.mxu0 0
    %2202 = vmatmul.mubr.bf16.gmra.mrb[0].mxu0 %v2072
    %v2203 = vpop.f32.mrb[0].mxu0
    %v2204 = vadd.f32 0.0, %v2203
    %v2205 = vpop.f32.mrb[0].mxu0
    %v2206 = vadd.f32 0.0, %v2205
    %v2207 = vpop.f32.mrb[0].mxu0
    %v2208 = vpop.f32.mrb[0].mxu0
    %2209 = vdwg.mxu0
    %v2210 = vadd.f32 %v2070, %v2204
    %v2211 = vadd.f32 %v2071, %v2206
    %v2212 = vxor.u32 %v2210, 2147483648
    %v2213 = vxor.u32 %v2211, 2147483648
    %v2214 = vmul.f32 %v2212, 1.442695
    %v2215 = vpow.pop %v2214
    %v2216 = vmul.f32 %v2213, 1.442695
    %v2217 = vpow.pop %v2216
    %v2218 = vadd.f32 %v2215, 1.0
    %v2219 = vadd.f32 %v2217, 1.0
    %v2220 = vrcp.pop %v2218
    %v2221 = vmul.f32 1.0, %v2220
    %v2222 = vrcp.pop %v2219
    %v2223 = vmul.f32 1.0, %v2222
    %s2224 = scalar_lea.vmem [#allocation4], 48
    %v2225 = vld [vmem:[%s2224] sm:$0xff]
    %v2226 = vmul.f32 %v2223, %v2068
    %v2227 = vpack.c.bf16 %v2226, %v2226
    %v2228 = vld [vmem:[#allocation7] sm:$0xf]
    %v2229 = vld [vmem:[#allocation7 + $0x4] sm:$0xf]
    %v2230 = vld [vmem:[#allocation7 + $0x8] sm:$0xf]
    %v2231 = vld [vmem:[#allocation7 + $0xc] sm:$0xf]
    %v2232 = vld [vmem:[#allocation7 + $0x10] sm:$0xf]
    %v2233 = vld [vmem:[#allocation7 + $0x14] sm:$0xf]
    %v2234 = vld [vmem:[#allocation7 + $0x18] sm:$0xf]
    %v2235 = vld [vmem:[#allocation7 + $0x1c] sm:$0xf]
    %v2236 = vld [vmem:[#allocation7 + $0x20] sm:$0xf]
    %v2237 = vld [vmem:[#allocation7 + $0x24] sm:$0xf]
    %v2238 = vld [vmem:[#allocation7 + $0x28] sm:$0xf]
    %v2239 = vld [vmem:[#allocation7 + $0x2c] sm:$0xf]
    %v2240 = vld [vmem:[#allocation7 + $0x30] sm:$0xf]
    %v2241 = vld [vmem:[#allocation7 + $0x34] sm:$0xf]
    %v2242 = vld [vmem:[#allocation7 + $0x38] sm:$0xf]
    %v2243 = vld [vmem:[#allocation7 + $0x3c] sm:$0xf]
    %v2260 = vunpack.c.l.b16 %v2228
    %v2261 = vunpack.c.l.b16 %v2229
    %v2262 = vunpack.c.l.b16 %v2230
    %v2263 = vunpack.c.l.b16 %v2231
    %v2264 = vunpack.c.l.b16 %v2232
    %v2265 = vunpack.c.l.b16 %v2233
    %v2266 = vunpack.c.l.b16 %v2234
    %v2267 = vunpack.c.l.b16 %v2235
    %v2268 = vunpack.c.l.b16 %v2236
    %v2269 = vunpack.c.l.b16 %v2237
    %v2270 = vunpack.c.l.b16 %v2238
    %v2271 = vunpack.c.l.b16 %v2239
    %v2272 = vunpack.c.l.b16 %v2240
    %v2273 = vunpack.c.l.b16 %v2241
    %v2274 = vunpack.c.l.b16 %v2242
    %v2275 = vunpack.c.l.b16 %v2243
    %v2276 = vpack.c.b16 %v2261, %v2260
    %v2277 = vpack.c.b16 %v2263, %v2262
    %v2278 = vpack.c.b16 %v2265, %v2264
    %v2279 = vpack.c.b16 %v2267, %v2266
    %v2280 = vpack.c.b16 %v2269, %v2268
    %v2281 = vpack.c.b16 %v2271, %v2270
    %v2282 = vpack.c.b16 %v2273, %v2272
    %v2283 = vpack.c.b16 %v2275, %v2274
    %2292 = vmatprep.subr.bf16.mxu0 0
    %2293 = vmatpush1.bf16.msra.mxu0 %v2276
    %2294 = vmatprep.subr.bf16.mxu0 0
    %2295 = vmatpush1.bf16.msra.mxu0 %v2277
    %2296 = vmatprep.subr.bf16.mxu0 0
    %2297 = vmatpush1.bf16.msra.mxu0 %v2278
    %2298 = vmatprep.subr.bf16.mxu0 0
    %2299 = vmatpush1.bf16.msra.mxu0 %v2279
    %2300 = vmatprep.subr.bf16.mxu0 0
    %2301 = vmatpush1.bf16.msra.mxu0 %v2280
    %2302 = vmatprep.subr.bf16.mxu0 0
    %2303 = vmatpush1.bf16.msra.mxu0 %v2281
    %2304 = vmatprep.subr.bf16.mxu0 0
    %2305 = vmatpush1.bf16.msra.mxu0 %v2282
    %2306 = vmatprep.subr.bf16.mxu0 0
    %2307 = vmatpush1.bf16.msra.mxu0 %v2283
    %2308 = vmatprep.subr.bf16.mxu0 0
    %2309 = vmatpush1.bf16.msra.mxu0 0
    %2310 = vmatprep.subr.bf16.mxu0 0
    %2311 = vmatpush1.bf16.msra.mxu0 0
    %2312 = vmatprep.subr.bf16.mxu0 0
    %2313 = vmatpush1.bf16.msra.mxu0 0
    %2314 = vmatprep.subr.bf16.mxu0 0
    %2315 = vmatpush1.bf16.msra.mxu0 0
    %2316 = vmatprep.subr.bf16.mxu0 0
    %2317 = vmatpush1.bf16.msra.mxu0 0
    %2318 = vmatprep.subr.bf16.mxu0 0
    %2319 = vmatpush1.bf16.msra.mxu0 0
    %2320 = vmatprep.subr.bf16.mxu0 0
    %2321 = vmatpush1.bf16.msra.mxu0 0
    %2322 = vmatprep.subr.bf16.mxu0 0
    %2323 = vmatpush1.bf16.msra.mxu0 0
    %2324 = vmatprep.mubr.bf16.mxu0 0
    %2325 = vmatmul.mubr.bf16.gmra.mrb[0].mxu0 %v2227
    %v2326 = vpop.f32.mrb[0].mxu0
    %v2327 = vadd.f32 0.0, %v2326
    %v2328 = vpop.f32.mrb[0].mxu0
    %v2329 = vpop.f32.mrb[0].mxu0
    %v2330 = vpop.f32.mrb[0].mxu0
    %2331 = vdwg.mxu0
    %v2332 = vadd.f32 %v2225, %v2327
    %v2333 = vtanh.pop %v2332
    %v2334 = vsub.f32 %v2333, %v2068
    %v2335 = vmul.f32 %v2221, %v2334
    %v2336 = vadd.f32 %v2068, %v2335
    %2337 = vst [vmem:[#allocation2] sm:$0xff] %v2336
    %v2338 = vpack.c.bf16 %v2336, %v2336
    %s2339 = scalar_lea.vmem %s7, 24
    %2340 = vst [vmem:[%s2339] sm:$0xf] %v2338
    %v2341 = vld [vmem:[#allocation2] sm:$0xff]
    %s2342 = scalar_lea.vmem [#allocation3], 112
    %v2343 = vld [vmem:[%s2342] sm:$0xff]
    %v2344 = vld [vmem:[%s2342 + $0x8] sm:$0xff]
    %v2345 = vpack.c.bf16 %v2341, %v2341
    %v2346 = vld [vmem:[#allocation5] sm:$0xff]
    %v2347 = vld [vmem:[#allocation5 + $0x8] sm:$0xff]
    %v2348 = vld [vmem:[#allocation5 + $0x10] sm:$0xff]
    %v2349 = vld [vmem:[#allocation5 + $0x18] sm:$0xff]
    %v2350 = vld [vmem:[#allocation5 + $0x20] sm:$0xff]
    %v2351 = vld [vmem:[#allocation5 + $0x28] sm:$0xff]
    %v2352 = vld [vmem:[#allocation5 + $0x30] sm:$0xff]
    %v2353 = vld [vmem:[#allocation5 + $0x38] sm:$0xff]
    %v2354 = vld [vmem:[#allocation5 + $0x40] sm:$0xff]
    %v2355 = vld [vmem:[#allocation5 + $0x48] sm:$0xff]
    %v2356 = vld [vmem:[#allocation5 + $0x50] sm:$0xff]
    %v2357 = vld [vmem:[#allocation5 + $0x58] sm:$0xff]
    %v2358 = vld [vmem:[#allocation5 + $0x60] sm:$0xff]
    %v2359 = vld [vmem:[#allocation5 + $0x68] sm:$0xff]
    %v2360 = vld [vmem:[#allocation5 + $0x70] sm:$0xff]
    %v2361 = vld [vmem:[#allocation5 + $0x78] sm:$0xff]
    %v2378 = vunpack.c.l.b16 %v2346
    %v2379 = vunpack.c.h.b16 %v2346
    %v2380 = vunpack.c.l.b16 %v2347
    %v2381 = vunpack.c.h.b16 %v2347
    %v2382 = vunpack.c.l.b16 %v2348
    %v2383 = vunpack.c.h.b16 %v2348
    %v2384 = vunpack.c.l.b16 %v2349
    %v2385 = vunpack.c.h.b16 %v2349
    %v2386 = vunpack.c.l.b16 %v2350
    %v2387 = vunpack.c.h.b16 %v2350
    %v2388 = vunpack.c.l.b16 %v2351
    %v2389 = vunpack.c.h.b16 %v2351
    %v2390 = vunpack.c.l.b16 %v2352
    %v2391 = vunpack.c.h.b16 %v2352
    %v2392 = vunpack.c.l.b16 %v2353
    %v2393 = vunpack.c.h.b16 %v2353
    %v2394 = vunpack.c.l.b16 %v2354
    %v2395 = vunpack.c.h.b16 %v2354
    %v2396 = vunpack.c.l.b16 %v2355
    %v2397 = vunpack.c.h.b16 %v2355
    %v2398 = vunpack.c.l.b16 %v2356
    %v2399 = vunpack.c.h.b16 %v2356
    %v2400 = vunpack.c.l.b16 %v2357
    %v2401 = vunpack.c.h.b16 %v2357
    %v2402 = vunpack.c.l.b16 %v2358
    %v2403 = vunpack.c.h.b16 %v2358
    %v2404 = vunpack.c.l.b16 %v2359
    %v2405 = vunpack.c.h.b16 %v2359
    %v2406 = vunpack.c.l.b16 %v2360
    %v2407 = vunpack.c.h.b16 %v2360
    %v2408 = vunpack.c.l.b16 %v2361
    %v2409 = vunpack.c.h.b16 %v2361
    %v2410 = vpack.c.b16 %v2380, %v2378
    %v2411 = vpack.c.b16 %v2381, %v2379
    %v2412 = vpack.c.b16 %v2384, %v2382
    %v2413 = vpack.c.b16 %v2385, %v2383
    %v2414 = vpack.c.b16 %v2388, %v2386
    %v2415 = vpack.c.b16 %v2389, %v2387
    %v2416 = vpack.c.b16 %v2392, %v2390
    %v2417 = vpack.c.b16 %v2393, %v2391
    %v2418 = vpack.c.b16 %v2396, %v2394
    %v2419 = vpack.c.b16 %v2397, %v2395
    %v2420 = vpack.c.b16 %v2400, %v2398
    %v2421 = vpack.c.b16 %v2401, %v2399
    %v2422 = vpack.c.b16 %v2404, %v2402
    %v2423 = vpack.c.b16 %v2405, %v2403
    %v2424 = vpack.c.b16 %v2408, %v2406
    %v2425 = vpack.c.b16 %v2409, %v2407
    %2442 = vmatprep.subr.bf16.mxu0 %v2411
    %2443 = vmatpush1.bf16.msra.mxu0 %v2410
    %2444 = vmatprep.subr.bf16.mxu0 %v2413
    %2445 = vmatpush1.bf16.msra.mxu0 %v2412
    %2446 = vmatprep.subr.bf16.mxu0 %v2415
    %2447 = vmatpush1.bf16.msra.mxu0 %v2414
    %2448 = vmatprep.subr.bf16.mxu0 %v2417
    %2449 = vmatpush1.bf16.msra.mxu0 %v2416
    %2450 = vmatprep.subr.bf16.mxu0 %v2419
    %2451 = vmatpush1.bf16.msra.mxu0 %v2418
    %2452 = vmatprep.subr.bf16.mxu0 %v2421
    %2453 = vmatpush1.bf16.msra.mxu0 %v2420
    %2454 = vmatprep.subr.bf16.mxu0 %v2423
    %2455 = vmatpush1.bf16.msra.mxu0 %v2422
    %2456 = vmatprep.subr.bf16.mxu0 %v2425
    %2457 = vmatpush1.bf16.msra.mxu0 %v2424
    %2458 = vmatprep.subr.bf16.mxu0 0
    %2459 = vmatpush1.bf16.msra.mxu0 0
    %2460 = vmatprep.subr.bf16.mxu0 0
    %2461 = vmatpush1.bf16.msra.mxu0 0
    %2462 = vmatprep.subr.bf16.mxu0 0
    %2463 = vmatpush1.bf16.msra.mxu0 0
    %2464 = vmatprep.subr.bf16.mxu0 0
    %2465 = vmatpush1.bf16.msra.mxu0 0
    %2466 = vmatprep.subr.bf16.mxu0 0
    %2467 = vmatpush1.bf16.msra.mxu0 0
    %2468 = vmatprep.subr.bf16.mxu0 0
    %2469 = vmatpush1.bf16.msra.mxu0 0
    %2470 = vmatprep.subr.bf16.mxu0 0
    %2471 = vmatpush1.bf16.msra.mxu0 0
    %2472 = vmatprep.subr.bf16.mxu0 0
    %2473 = vmatpush1.bf16.msra.mxu0 0
    %2474 = vmatprep.mubr.bf16.mxu0 0
    %2475 = vmatmul.mubr.bf16.gmra.mrb[0].mxu0 %v2345
    %v2476 = vpop.f32.mrb[0].mxu0
    %v2477 = vadd.f32 0.0, %v2476
    %v2478 = vpop.f32.mrb[0].mxu0
    %v2479 = vadd.f32 0.0, %v2478
    %v2480 = vpop.f32.mrb[0].mxu0
    %v2481 = vpop.f32.mrb[0].mxu0
    %2482 = vdwg.mxu0
    %v2483 = vadd.f32 %v2343, %v2477
    %v2484 = vadd.f32 %v2344, %v2479
    %v2485 = vxor.u32 %v2483, 2147483648
    %v2486 = vxor.u32 %v2484, 2147483648
    %v2487 = vmul.f32 %v2485, 1.442695
    %v2488 = vpow.pop %v2487
    %v2489 = vmul.f32 %v2486, 1.442695
    %v2490 = vpow.pop %v2489
    %v2491 = vadd.f32 %v2488, 1.0
    %v2492 = vadd.f32 %v2490, 1.0
    %v2493 = vrcp.pop %v2491
    %v2494 = vmul.f32 1.0, %v2493
    %v2495 = vrcp.pop %v2492
    %v2496 = vmul.f32 1.0, %v2495
    %s2497 = scalar_lea.vmem [#allocation4], 56
    %v2498 = vld [vmem:[%s2497] sm:$0xff]
    %v2499 = vmul.f32 %v2496, %v2341
    %v2500 = vpack.c.bf16 %v2499, %v2499
    %v2501 = vld [vmem:[#allocation7] sm:$0xf]
    %v2502 = vld [vmem:[#allocation7 + $0x4] sm:$0xf]
    %v2503 = vld [vmem:[#allocation7 + $0x8] sm:$0xf]
    %v2504 = vld [vmem:[#allocation7 + $0xc] sm:$0xf]
    %v2505 = vld [vmem:[#allocation7 + $0x10] sm:$0xf]
    %v2506 = vld [vmem:[#allocation7 + $0x14] sm:$0xf]
    %v2507 = vld [vmem:[#allocation7 + $0x18] sm:$0xf]
    %v2508 = vld [vmem:[#allocation7 + $0x1c] sm:$0xf]
    %v2509 = vld [vmem:[#allocation7 + $0x20] sm:$0xf]
    %v2510 = vld [vmem:[#allocation7 + $0x24] sm:$0xf]
    %v2511 = vld [vmem:[#allocation7 + $0x28] sm:$0xf]
    %v2512 = vld [vmem:[#allocation7 + $0x2c] sm:$0xf]
    %v2513 = vld [vmem:[#allocation7 + $0x30] sm:$0xf]
    %v2514 = vld [vmem:[#allocation7 + $0x34] sm:$0xf]
    %v2515 = vld [vmem:[#allocation7 + $0x38] sm:$0xf]
    %v2516 = vld [vmem:[#allocation7 + $0x3c] sm:$0xf]
    %v2533 = vunpack.c.l.b16 %v2501
    %v2534 = vunpack.c.l.b16 %v2502
    %v2535 = vunpack.c.l.b16 %v2503
    %v2536 = vunpack.c.l.b16 %v2504
    %v2537 = vunpack.c.l.b16 %v2505
    %v2538 = vunpack.c.l.b16 %v2506
    %v2539 = vunpack.c.l.b16 %v2507
    %v2540 = vunpack.c.l.b16 %v2508
    %v2541 = vunpack.c.l.b16 %v2509
    %v2542 = vunpack.c.l.b16 %v2510
    %v2543 = vunpack.c.l.b16 %v2511
    %v2544 = vunpack.c.l.b16 %v2512
    %v2545 = vunpack.c.l.b16 %v2513
    %v2546 = vunpack.c.l.b16 %v2514
    %v2547 = vunpack.c.l.b16 %v2515
    %v2548 = vunpack.c.l.b16 %v2516
    %v2549 = vpack.c.b16 %v2534, %v2533
    %v2550 = vpack.c.b16 %v2536, %v2535
    %v2551 = vpack.c.b16 %v2538, %v2537
    %v2552 = vpack.c.b16 %v2540, %v2539
    %v2553 = vpack.c.b16 %v2542, %v2541
    %v2554 = vpack.c.b16 %v2544, %v2543
    %v2555 = vpack.c.b16 %v2546, %v2545
    %v2556 = vpack.c.b16 %v2548, %v2547
    %2565 = vmatprep.subr.bf16.mxu0 0
    %2566 = vmatpush1.bf16.msra.mxu0 %v2549
    %2567 = vmatprep.subr.bf16.mxu0 0
    %2568 = vmatpush1.bf16.msra.mxu0 %v2550
    %2569 = vmatprep.subr.bf16.mxu0 0
    %2570 = vmatpush1.bf16.msra.mxu0 %v2551
    %2571 = vmatprep.subr.bf16.mxu0 0
    %2572 = vmatpush1.bf16.msra.mxu0 %v2552
    %2573 = vmatprep.subr.bf16.mxu0 0
    %2574 = vmatpush1.bf16.msra.mxu0 %v2553
    %2575 = vmatprep.subr.bf16.mxu0 0
    %2576 = vmatpush1.bf16.msra.mxu0 %v2554
    %2577 = vmatprep.subr.bf16.mxu0 0
    %2578 = vmatpush1.bf16.msra.mxu0 %v2555
    %2579 = vmatprep.subr.bf16.mxu0 0
    %2580 = vmatpush1.bf16.msra.mxu0 %v2556
    %2581 = vmatprep.subr.bf16.mxu0 0
    %2582 = vmatpush1.bf16.msra.mxu0 0
    %2583 = vmatprep.subr.bf16.mxu0 0
    %2584 = vmatpush1.bf16.msra.mxu0 0
    %2585 = vmatprep.subr.bf16.mxu0 0
    %2586 = vmatpush1.bf16.msra.mxu0 0
    %2587 = vmatprep.subr.bf16.mxu0 0
    %2588 = vmatpush1.bf16.msra.mxu0 0
    %2589 = vmatprep.subr.bf16.mxu0 0
    %2590 = vmatpush1.bf16.msra.mxu0 0
    %2591 = vmatprep.subr.bf16.mxu0 0
    %2592 = vmatpush1.bf16.msra.mxu0 0
    %2593 = vmatprep.subr.bf16.mxu0 0
    %2594 = vmatpush1.bf16.msra.mxu0 0
    %2595 = vmatprep.subr.bf16.mxu0 0
    %2596 = vmatpush1.bf16.msra.mxu0 0
    %2597 = vmatprep.mubr.bf16.mxu0 0
    %2598 = vmatmul.mubr.bf16.gmra.mrb[0].mxu0 %v2500
    %v2599 = vpop.f32.mrb[0].mxu0
    %v2600 = vadd.f32 0.0, %v2599
    %v2601 = vpop.f32.mrb[0].mxu0
    %v2602 = vpop.f32.mrb[0].mxu0
    %v2603 = vpop.f32.mrb[0].mxu0
    %2604 = vdwg.mxu0
    %v2605 = vadd.f32 %v2498, %v2600
    %v2606 = vtanh.pop %v2605
    %v2607 = vsub.f32 %v2606, %v2341
    %v2608 = vmul.f32 %v2494, %v2607
    %v2609 = vadd.f32 %v2341, %v2608
    %2610 = vst [vmem:[#allocation2] sm:$0xff] %v2609
    %v2611 = vpack.c.bf16 %v2609, %v2609
    %s2612 = scalar_lea.vmem %s7, 28
    %2613 = vst [vmem:[%s2612] sm:$0xf] %v2611
    // Predicated region
    $region42: #{char_gru_forward.4} parent=1 // pred_check
      _
    $region43: #{char_gru_forward.4} parent=1 // pred_check_branch
      %2615 = sbr.rel (0) target = $region45
    $region44: #{char_gru_forward.4} parent=1 // pred_region
      _
    $region45: #{char_gru_forward.4} parent=1 // pred_fallthru
      _
    // Predicated region
    $region46: #{char_gru_forward.4} parent=1 // pred_check
      _
    $region47: #{char_gru_forward.4} parent=1 // pred_check_branch
      %2617 = sbr.rel (0) target = $region49
    $region48: #{char_gru_forward.4} parent=1 // pred_region
      _
    $region49: #{char_gru_forward.4} parent=1 // pred_fallthru
      _
    %2618 = vsyncpa [#allocation6], 1
    %2619 = vsyncpa [#allocation8], 1

// kernel: char_gru_forward.5
$region0: #{char_gru_forward.5}
  #allocation0 [shape = 'u32[]', space=smem, size = 0x4, offset = 0x4, fixed_abs, tag = 'smem constant byte address 0x4 - core index']
  #allocation1 [shape = 'u32[144,128]{1,0:T(1,128)}', space=vmem, size = 0x12000, scoped, tag = 'internal scratch']
  #allocation2 [shape = 'f32[8,128]{1,0:T(8,128)}', space=vmem, size = 0x1000, scoped, tag = 'scratch operand']
  #allocation3 [shape = 'f32[8,8,256]{2,1,0:T(8,128)}', space=vmem, size = 0x10000, scoped, tag = 'scratch operand']
  #allocation4 [shape = 'f32[8,8,128]{2,1,0:T(8,128)}', space=vmem, size = 0x8000, scoped, tag = 'scratch operand']
  %s0 = inlined_call_operand.vmem [shape: bf16[8,8,128], index: 0, kind: input, shape index: {}]
  %s1 = inlined_call_operand.vmem [shape: bf16[128,256], index: 1, kind: input, shape index: {}]
  %s2 = inlined_call_operand.vmem [shape: f32[1,256], index: 2, kind: input, shape index: {}]
  %s3 = inlined_call_operand.vmem [shape: bf16[128,128], index: 3, kind: input, shape index: {}]
  %s4 = inlined_call_operand.vmem [shape: f32[1,128], index: 4, kind: input, shape index: {}]
  %s5 = inlined_call_operand.vmem [shape: bf16[128,256], index: 5, kind: input, shape index: {}]
  %s6 = inlined_call_operand.vmem [shape: bf16[128,128], index: 6, kind: input, shape index: {}]
  %s7 = inlined_call_operand.vmem [shape: bf16[8,8,128], index: 7, kind: output, shape index: {}]
  %s8 = sld [smem:[#allocation0]]
  $region42: #{char_gru_forward.5} parent=0
    _
  %s10 = ssub.s32 1, %s8
  %s11 = scalar_select 0, %s10, %s8
  // Predicated region
  $region2: #{char_gru_forward.5} parent=0 // pred_check
    _
  $region3: #{char_gru_forward.5} parent=0 // pred_check_branch
    %13 = sbr.rel (0) target = $region5
  $region4: #{char_gru_forward.5} parent=0 // pred_region
    _
  $region5: #{char_gru_forward.5} parent=0 // pred_fallthru
    _
  // Predicated region
  $region6: #{char_gru_forward.5} parent=0 // pred_check
    _
  $region7: #{char_gru_forward.5} parent=0 // pred_check_branch
    %15 = sbr.rel (0) target = $region9
  $region8: #{char_gru_forward.5} parent=0 // pred_region
    _
  $region9: #{char_gru_forward.5} parent=0 // pred_fallthru
    _
  // Predicated region
  $region10: #{char_gru_forward.5} parent=0 // pred_check
    _
  $region11: #{char_gru_forward.5} parent=0 // pred_check_branch
    %17 = sbr.rel (0) target = $region13
  $region12: #{char_gru_forward.5} parent=0 // pred_region
    _
  $region13: #{char_gru_forward.5} parent=0 // pred_fallthru
    _
  // Predicated region
  $region14: #{char_gru_forward.5} parent=0 // pred_check
    _
  $region15: #{char_gru_forward.5} parent=0 // pred_check_branch
    %19 = sbr.rel (0) target = $region17
  $region16: #{char_gru_forward.5} parent=0 // pred_region
    _
  $region17: #{char_gru_forward.5} parent=0 // pred_fallthru
    _
  // Predicated region
  $region18: #{char_gru_forward.5} parent=0 // pred_check
    _
  $region19: #{char_gru_forward.5} parent=0 // pred_check_branch
    %21 = sbr.rel (0) target = $region21
  $region20: #{char_gru_forward.5} parent=0 // pred_region
    _
  $region21: #{char_gru_forward.5} parent=0 // pred_fallthru
    _
  // Predicated region
  $region22: #{char_gru_forward.5} parent=0 // pred_check
    _
  $region23: #{char_gru_forward.5} parent=0 // pred_check_branch
    %23 = sbr.rel (0) target = $region25
  $region24: #{char_gru_forward.5} parent=0 // pred_region
    _
  $region25: #{char_gru_forward.5} parent=0 // pred_fallthru
    _
  // Predicated region
  $region26: #{char_gru_forward.5} parent=0 // pred_check
    _
  $region27: #{char_gru_forward.5} parent=0 // pred_check_branch
    %25 = sbr.rel (0) target = $region29
  $region28: #{char_gru_forward.5} parent=0 // pred_region
    _
  $region29: #{char_gru_forward.5} parent=0 // pred_fallthru
    _
  %p27 = scmp.eq.s32.totalorder 0, 0
  // Predicated region
  $region30: #{char_gru_forward.5} parent=0 // pred_check
    %p28 = pneg %p27
  $region31: #{char_gru_forward.5} parent=0 // pred_check_branch
    %30 = sbr.rel (%p28) target = $region33
  $region32: #{char_gru_forward.5} parent=0 // pred_region
    %31 = vst [vmem:[#allocation2] sm:$0xff] 0.0
  $region33: #{char_gru_forward.5} parent=0 // pred_fallthru
    _
  %v32 = vld [vmem:[%s0] sm:$0xf]
  %v33 = vld [vmem:[%s0 + $0x4] sm:$0xf]
  %v34 = vld [vmem:[%s0 + $0x8] sm:$0xf]
  %v35 = vld [vmem:[%s0 + $0xc] sm:$0xf]
  %v36 = vld [vmem:[%s0 + $0x10] sm:$0xf]
  %v37 = vld [vmem:[%s0 + $0x14] sm:$0xf]
  %v38 = vld [vmem:[%s0 + $0x18] sm:$0xf]
  %v39 = vld [vmem:[%s0 + $0x1c] sm:$0xf]
  %v40 = vld [vmem:[%s1] sm:$0xff]
  %v41 = vld [vmem:[%s1 + $0x8] sm:$0xff]
  %v42 = vld [vmem:[%s1 + $0x10] sm:$0xff]
  %v43 = vld [vmem:[%s1 + $0x18] sm:$0xff]
  %v44 = vld [vmem:[%s1 + $0x20] sm:$0xff]
  %v45 = vld [vmem:[%s1 + $0x28] sm:$0xff]
  %v46 = vld [vmem:[%s1 + $0x30] sm:$0xff]
  %v47 = vld [vmem:[%s1 + $0x38] sm:$0xff]
  %v48 = vld [vmem:[%s1 + $0x40] sm:$0xff]
  %v49 = vld [vmem:[%s1 + $0x48] sm:$0xff]
  %v50 = vld [vmem:[%s1 + $0x50] sm:$0xff]
  %v51 = vld [vmem:[%s1 + $0x58] sm:$0xff]
  %v52 = vld [vmem:[%s1 + $0x60] sm:$0xff]
  %v53 = vld [vmem:[%s1 + $0x68] sm:$0xff]
  %v54 = vld [vmem:[%s1 + $0x70] sm:$0xff]
  %v55 = vld [vmem:[%s1 + $0x78] sm:$0xff]
  %v56 = vld [vmem:[%s2] sm:$0x3]
  %v58 = vlaneseq
  %v59 = vshrl.u32 %v58, 7
  %v60 = vsub.s32 0, %v59
  %v61 = vrot.slane %v56, %v60
  %v62 = vlaneseq
  %v63 = vshrl.u32 %v62, 7
  %v64 = vsub.s32 1, %v63
  %v65 = vrot.slane %v56, %v64
  %v76 = vunpack.c.l.b16 %v32
  %v77 = vunpack.c.l.b16 %v33
  %v78 = vunpack.c.l.b16 %v34
  %v79 = vunpack.c.l.b16 %v35
  %v80 = vunpack.c.l.b16 %v36
  %v81 = vunpack.c.l.b16 %v37
  %v82 = vunpack.c.l.b16 %v38
  %v83 = vunpack.c.l.b16 %v39
  %v84 = vpack.c.b16 %v77, %v76
  %v85 = vpack.c.b16 %v79, %v78
  %v86 = vpack.c.b16 %v81, %v80
  %v87 = vpack.c.b16 %v83, %v82
  %v108 = vunpack.c.l.b16 %v40
  %v109 = vunpack.c.h.b16 %v40
  %v110 = vunpack.c.l.b16 %v41
  %v111 = vunpack.c.h.b16 %v41
  %v112 = vunpack.c.l.b16 %v42
  %v113 = vunpack.c.h.b16 %v42
  %v114 = vunpack.c.l.b16 %v43
  %v115 = vunpack.c.h.b16 %v43
  %v116 = vunpack.c.l.b16 %v44
  %v117 = vunpack.c.h.b16 %v44
  %v118 = vunpack.c.l.b16 %v45
  %v119 = vunpack.c.h.b16 %v45
  %v120 = vunpack.c.l.b16 %v46
  %v121 = vunpack.c.h.b16 %v46
  %v122 = vunpack.c.l.b16 %v47
  %v123 = vunpack.c.h.b16 %v47
  %v124 = vunpack.c.l.b16 %v48
  %v125 = vunpack.c.h.b16 %v48
  %v126 = vunpack.c.l.b16 %v49
  %v127 = vunpack.c.h.b16 %v49
  %v128 = vunpack.c.l.b16 %v50
  %v129 = vunpack.c.h.b16 %v50
  %v130 = vunpack.c.l.b16 %v51
  %v131 = vunpack.c.h.b16 %v51
  %v132 = vunpack.c.l.b16 %v52
  %v133 = vunpack.c.h.b16 %v52
  %v134 = vunpack.c.l.b16 %v53
  %v135 = vunpack.c.h.b16 %v53
  %v136 = vunpack.c.l.b16 %v54
  %v137 = vunpack.c.h.b16 %v54
  %v138 = vunpack.c.l.b16 %v55
  %v139 = vunpack.c.h.b16 %v55
  %v140 = vpack.c.b16 %v110, %v108
  %v141 = vpack.c.b16 %v111, %v109
  %v142 = vpack.c.b16 %v114, %v112
  %v143 = vpack.c.b16 %v115, %v113
  %v144 = vpack.c.b16 %v118, %v116
  %v145 = vpack.c.b16 %v119, %v117
  %v146 = vpack.c.b16 %v122, %v120
  %v147 = vpack.c.b16 %v123, %v121
  %v148 = vpack.c.b16 %v126, %v124
  %v149 = vpack.c.b16 %v127, %v125
  %v150 = vpack.c.b16 %v130, %v128
  %v151 = vpack.c.b16 %v131, %v129
  %v152 = vpack.c.b16 %v134, %v132
  %v153 = vpack.c.b16 %v135, %v133
  %v154 = vpack.c.b16 %v138, %v136
  %v155 = vpack.c.b16 %v139, %v137
  %172 = vmatprep.subr.bf16.mxu0 %v141
  %173 = vmatpush1.bf16.msra.mxu0 %v140
  %174 = vmatprep.subr.bf16.mxu0 %v143
  %175 = vmatpush1.bf16.msra.mxu0 %v142
  %176 = vmatprep.subr.bf16.mxu0 %v145
  %177 = vmatpush1.bf16.msra.mxu0 %v144
  %178 = vmatprep.subr.bf16.mxu0 %v147
  %179 = vmatpush1.bf16.msra.mxu0 %v146
  %180 = vmatprep.subr.bf16.mxu0 %v149
  %181 = vmatpush1.bf16.msra.mxu0 %v148
  %182 = vmatprep.subr.bf16.mxu0 %v151
  %183 = vmatpush1.bf16.msra.mxu0 %v150
  %184 = vmatprep.subr.bf16.mxu0 %v153
  %185 = vmatpush1.bf16.msra.mxu0 %v152
  %186 = vmatprep.subr.bf16.mxu0 %v155
  %187 = vmatpush1.bf16.msra.mxu0 %v154
  %188 = vmatprep.subr.bf16.mxu0 0
  %189 = vmatpush1.bf16.msra.mxu0 0
  %190 = vmatprep.subr.bf16.mxu0 0
  %191 = vmatpush1.bf16.msra.mxu0 0
  %192 = vmatprep.subr.bf16.mxu0 0
  %193 = vmatpush1.bf16.msra.mxu0 0
  %194 = vmatprep.subr.bf16.mxu0 0
  %195 = vmatpush1.bf16.msra.mxu0 0
  %196 = vmatprep.subr.bf16.mxu0 0
  %197 = vmatpush1.bf16.msra.mxu0 0
  %198 = vmatprep.subr.bf16.mxu0 0
  %199 = vmatpush1.bf16.msra.mxu0 0
  %200 = vmatprep.subr.bf16.mxu0 0
  %201 = vmatpush1.bf16.msra.mxu0 0
  %202 = vmatprep.subr.bf16.mxu0 0
  %203 = vmatpush1.bf16.msra.mxu0 0
  %204 = vmatprep.mubr.bf16.mxu0 0
  %205 = vmatmul.mubr.bf16.gmra.mrb[0].mxu0 %v84
  %v206 = vpop.f32.mrb[0].mxu0
  %v207 = vadd.f32 %v61, %v206
  %v208 = vpop.f32.mrb[0].mxu0
  %v209 = vadd.f32 %v65, %v208
  %v210 = vpop.f32.mrb[0].mxu0
  %v211 = vadd.f32 %v61, %v210
  %v212 = vpop.f32.mrb[0].mxu0
  %v213 = vadd.f32 %v65, %v212
  %214 = vmatprep.mubr.bf16.mxu0 0
  %215 = vmatmul.mubr.bf16.gmra.mrb[0].mxu0 %v85
  %v216 = vpop.f32.mrb[0].mxu0
  %v217 = vadd.f32 %v61, %v216
  %v218 = vpop.f32.mrb[0].mxu0
  %v219 = vadd.f32 %v65, %v218
  %v220 = vpop.f32.mrb[0].mxu0
  %v221 = vadd.f32 %v61, %v220
  %v222 = vpop.f32.mrb[0].mxu0
  %v223 = vadd.f32 %v65, %v222
  %224 = vmatprep.mubr.bf16.mxu0 0
  %225 = vmatmul.mubr.bf16.gmra.mrb[0].mxu0 %v86
  %v226 = vpop.f32.mrb[0].mxu0
  %v227 = vadd.f32 %v61, %v226
  %v228 = vpop.f32.mrb[0].mxu0
  %v229 = vadd.f32 %v65, %v228
  %v230 = vpop.f32.mrb[0].mxu0
  %v231 = vadd.f32 %v61, %v230
  %v232 = vpop.f32.mrb[0].mxu0
  %v233 = vadd.f32 %v65, %v232
  %234 = vmatprep.mubr.bf16.mxu0 0
  %235 = vmatmul.mubr.bf16.gmra.mrb[0].mxu0 %v87
  %v236 = vpop.f32.mrb[0].mxu0
  %v237 = vadd.f32 %v61, %v236
  %v238 = vpop.f32.mrb[0].mxu0
  %v239 = vadd.f32 %v65, %v238
  %v240 = vpop.f32.mrb[0].mxu0
  %v241 = vadd.f32 %v61, %v240
  %v242 = vpop.f32.mrb[0].mxu0
  %v243 = vadd.f32 %v65, %v242
  %244 = vdwg.mxu0
  %245 = vst [vmem:[#allocation3] sm:$0xff] %v207
  %246 = vst [vmem:[#allocation3 + $0x8] sm:$0xff] %v209
  %247 = vst [vmem:[#allocation3 + $0x10] sm:$0xff] %v211
  %248 = vst [vmem:[#allocation3 + $0x18] sm:$0xff] %v213
  %249 = vst [vmem:[#allocation3 + $0x20] sm:$0xff] %v217
  %250 = vst [vmem:[#allocation3 + $0x28] sm:$0xff] %v219
  %251 = vst [vmem:[#allocation3 + $0x30] sm:$0xff] %v221
  %252 = vst [vmem:[#allocation3 + $0x38] sm:$0xff] %v223
  %253 = vst [vmem:[#allocation3 + $0x40] sm:$0xff] %v227
  %254 = vst [vmem:[#allocation3 + $0x48] sm:$0xff] %v229
  %255 = vst [vmem:[#allocation3 + $0x50] sm:$0xff] %v231
  %256 = vst [vmem:[#allocation3 + $0x58] sm:$0xff] %v233
  %257 = vst [vmem:[#allocation3 + $0x60] sm:$0xff] %v237
  %258 = vst [vmem:[#allocation3 + $0x68] sm:$0xff] %v239
  %259 = vst [vmem:[#allocation3 + $0x70] sm:$0xff] %v241
  %260 = vst [vmem:[#allocation3 + $0x78] sm:$0xff] %v243
  %v261 = vld [vmem:[%s3] sm:$0xf]
  %v262 = vld [vmem:[%s3 + $0x4] sm:$0xf]
  %v263 = vld [vmem:[%s3 + $0x8] sm:$0xf]
  %v264 = vld [vmem:[%s3 + $0xc] sm:$0xf]
  %v265 = vld [vmem:[%s3 + $0x10] sm:$0xf]
  %v266 = vld [vmem:[%s3 + $0x14] sm:$0xf]
  %v267 = vld [vmem:[%s3 + $0x18] sm:$0xf]
  %v268 = vld [vmem:[%s3 + $0x1c] sm:$0xf]
  %v269 = vld [vmem:[%s3 + $0x20] sm:$0xf]
  %v270 = vld [vmem:[%s3 + $0x24] sm:$0xf]
  %v271 = vld [vmem:[%s3 + $0x28] sm:$0xf]
  %v272 = vld [vmem:[%s3 + $0x2c] sm:$0xf]
  %v273 = vld [vmem:[%s3 + $0x30] sm:$0xf]
  %v274 = vld [vmem:[%s3 + $0x34] sm:$0xf]
  %v275 = vld [vmem:[%s3 + $0x38] sm:$0xf]
  %v276 = vld [vmem:[%s3 + $0x3c] sm:$0xf]
  %v277 = vld [vmem:[%s4] sm:$0x1]
  %v279 = vlaneseq
  %v280 = vshrl.u32 %v279, 7
  %v281 = vsub.s32 0, %v280
  %v282 = vrot.slane %v277, %v281
  %v300 = vunpack.c.l.b16 %v261
  %v301 = vunpack.c.l.b16 %v262
  %v302 = vunpack.c.l.b16 %v263
  %v303 = vunpack.c.l.b16 %v264
  %v304 = vunpack.c.l.b16 %v265
  %v305 = vunpack.c.l.b16 %v266
  %v306 = vunpack.c.l.b16 %v267
  %v307 = vunpack.c.l.b16 %v268
  %v308 = vunpack.c.l.b16 %v269
  %v309 = vunpack.c.l.b16 %v270
  %v310 = vunpack.c.l.b16 %v271
  %v311 = vunpack.c.l.b16 %v272
  %v312 = vunpack.c.l.b16 %v273
  %v313 = vunpack.c.l.b16 %v274
  %v314 = vunpack.c.l.b16 %v275
  %v315 = vunpack.c.l.b16 %v276
  %v316 = vpack.c.b16 %v301, %v300
  %v317 = vpack.c.b16 %v303, %v302
  %v318 = vpack.c.b16 %v305, %v304
  %v319 = vpack.c.b16 %v307, %v306
  %v320 = vpack.c.b16 %v309, %v308
  %v321 = vpack.c.b16 %v311, %v310
  %v322 = vpack.c.b16 %v313, %v312
  %v323 = vpack.c.b16 %v315, %v314
  %332 = vmatprep.subr.bf16.mxu0 0
  %333 = vmatpush1.bf16.msra.mxu0 %v316
  %334 = vmatprep.subr.bf16.mxu0 0
  %335 = vmatpush1.bf16.msra.mxu0 %v317
  %336 = vmatprep.subr.bf16.mxu0 0
  %337 = vmatpush1.bf16.msra.mxu0 %v318
  %338 = vmatprep.subr.bf16.mxu0 0
  %339 = vmatpush1.bf16.msra.mxu0 %v319
  %340 = vmatprep.subr.bf16.mxu0 0
  %341 = vmatpush1.bf16.msra.mxu0 %v320
  %342 = vmatprep.subr.bf16.mxu0 0
  %343 = vmatpush1.bf16.msra.mxu0 %v321
  %344 = vmatprep.subr.bf16.mxu0 0
  %345 = vmatpush1.bf16.msra.mxu0 %v322
  %346 = vmatprep.subr.bf16.mxu0 0
  %347 = vmatpush1.bf16.msra.mxu0 %v323
  %348 = vmatprep.subr.bf16.mxu0 0
  %349 = vmatpush1.bf16.msra.mxu0 0
  %350 = vmatprep.subr.bf16.mxu0 0
  %351 = vmatpush1.bf16.msra.mxu0 0
  %352 = vmatprep.subr.bf16.mxu0 0
  %353 = vmatpush1.bf16.msra.mxu0 0
  %354 = vmatprep.subr.bf16.mxu0 0
  %355 = vmatpush1.bf16.msra.mxu0 0
  %356 = vmatprep.subr.bf16.mxu0 0
  %357 = vmatpush1.bf16.msra.mxu0 0
  %358 = vmatprep.subr.bf16.mxu0 0
  %359 = vmatpush1.bf16.msra.mxu0 0
  %360 = vmatprep.subr.bf16.mxu0 0
  %361 = vmatpush1.bf16.msra.mxu0 0
  %362 = vmatprep.subr.bf16.mxu0 0
  %363 = vmatpush1.bf16.msra.mxu0 0
  %364 = vmatprep.mubr.bf16.mxu0 0
  %365 = vmatmul.mubr.bf16.gmra.mrb[0].mxu0 %v84
  %v366 = vpop.f32.mrb[0].mxu0
  %v367 = vadd.f32 %v282, %v366
  %v368 = vpop.f32.mrb[0].mxu0
  %v369 = vpop.f32.mrb[0].mxu0
  %v370 = vadd.f32 %v282, %v369
  %v371 = vpop.f32.mrb[0].mxu0
  %372 = vmatprep.mubr.bf16.mxu0 0
  %373 = vmatmul.mubr.bf16.gmra.mrb[0].mxu0 %v85
  %v374 = vpop.f32.mrb[0].mxu0
  %v375 = vadd.f32 %v282, %v374
  %v376 = vpop.f32.mrb[0].mxu0
  %v377 = vpop.f32.mrb[0].mxu0
  %v378 = vadd.f32 %v282, %v377
  %v379 = vpop.f32.mrb[0].mxu0
  %380 = vmatprep.mubr.bf16.mxu0 0
  %381 = vmatmul.mubr.bf16.gmra.mrb[0].mxu0 %v86
  %v382 = vpop.f32.mrb[0].mxu0
  %v383 = vadd.f32 %v282, %v382
  %v384 = vpop.f32.mrb[0].mxu0
  %v385 = vpop.f32.mrb[0].mxu0
  %v386 = vadd.f32 %v282, %v385
  %v387 = vpop.f32.mrb[0].mxu0
  %388 = vmatprep.mubr.bf16.mxu0 0
  %389 = vmatmul.mubr.bf16.gmra.mrb[0].mxu0 %v87
  %v390 = vpop.f32.mrb[0].mxu0
  %v391 = vadd.f32 %v282, %v390
  %v392 = vpop.f32.mrb[0].mxu0
  %v393 = vpop.f32.mrb[0].mxu0
  %v394 = vadd.f32 %v282, %v393
  %v395 = vpop.f32.mrb[0].mxu0
  %396 = vdwg.mxu0
  %397 = vst [vmem:[#allocation4] sm:$0xff] %v367
  %398 = vst [vmem:[#allocation4 + $0x8] sm:$0xff] %v370
  %399 = vst [vmem:[#allocation4 + $0x10] sm:$0xff] %v375
  %400 = vst [vmem:[#allocation4 + $0x18] sm:$0xff] %v378
  %401 = vst [vmem:[#allocation4 + $0x20] sm:$0xff] %v383
  %402 = vst [vmem:[#allocation4 + $0x28] sm:$0xff] %v386
  %403 = vst [vmem:[#allocation4 + $0x30] sm:$0xff] %v391
  %404 = vst [vmem:[#allocation4 + $0x38] sm:$0xff] %v394
  %v405 = vld [vmem:[#allocation2] sm:$0xff]
  %v406 = vld [vmem:[#allocation3] sm:$0xff]
  %v407 = vld [vmem:[#allocation3 + $0x8] sm:$0xff]
  %v408 = vpack.c.bf16 %v405, %v405
  %v409 = vld [vmem:[%s5] sm:$0xff]
  %v410 = vld [vmem:[%s5 + $0x8] sm:$0xff]
  %v411 = vld [vmem:[%s5 + $0x10] sm:$0xff]
  %v412 = vld [vmem:[%s5 + $0x18] sm:$0xff]
  %v413 = vld [vmem:[%s5 + $0x20] sm:$0xff]
  %v414 = vld [vmem:[%s5 + $0x28] sm:$0xff]
  %v415 = vld [vmem:[%s5 + $0x30] sm:$0xff]
  %v416 = vld [vmem:[%s5 + $0x38] sm:$0xff]
  %v417 = vld [vmem:[%s5 + $0x40] sm:$0xff]
  %v418 = vld [vmem:[%s5 + $0x48] sm:$0xff]
  %v419 = vld [vmem:[%s5 + $0x50] sm:$0xff]
  %v420 = vld [vmem:[%s5 + $0x58] sm:$0xff]
  %v421 = vld [vmem:[%s5 + $0x60] sm:$0xff]
  %v422 = vld [vmem:[%s5 + $0x68] sm:$0xff]
  %v423 = vld [vmem:[%s5 + $0x70] sm:$0xff]
  %v424 = vld [vmem:[%s5 + $0x78] sm:$0xff]
  %v441 = vunpack.c.l.b16 %v409
  %v442 = vunpack.c.h.b16 %v409
  %v443 = vunpack.c.l.b16 %v410
  %v444 = vunpack.c.h.b16 %v410
  %v445 = vunpack.c.l.b16 %v411
  %v446 = vunpack.c.h.b16 %v411
  %v447 = vunpack.c.l.b16 %v412
  %v448 = vunpack.c.h.b16 %v412
  %v449 = vunpack.c.l.b16 %v413
  %v450 = vunpack.c.h.b16 %v413
  %v451 = vunpack.c.l.b16 %v414
  %v452 = vunpack.c.h.b16 %v414
  %v453 = vunpack.c.l.b16 %v415
  %v454 = vunpack.c.h.b16 %v415
  %v455 = vunpack.c.l.b16 %v416
  %v456 = vunpack.c.h.b16 %v416
  %v457 = vunpack.c.l.b16 %v417
  %v458 = vunpack.c.h.b16 %v417
  %v459 = vunpack.c.l.b16 %v418
  %v460 = vunpack.c.h.b16 %v418
  %v461 = vunpack.c.l.b16 %v419
  %v462 = vunpack.c.h.b16 %v419
  %v463 = vunpack.c.l.b16 %v420
  %v464 = vunpack.c.h.b16 %v420
  %v465 = vunpack.c.l.b16 %v421
  %v466 = vunpack.c.h.b16 %v421
  %v467 = vunpack.c.l.b16 %v422
  %v468 = vunpack.c.h.b16 %v422
  %v469 = vunpack.c.l.b16 %v423
  %v470 = vunpack.c.h.b16 %v423
  %v471 = vunpack.c.l.b16 %v424
  %v472 = vunpack.c.h.b16 %v424
  %v473 = vpack.c.b16 %v443, %v441
  %v474 = vpack.c.b16 %v444, %v442
  %v475 = vpack.c.b16 %v447, %v445
  %v476 = vpack.c.b16 %v448, %v446
  %v477 = vpack.c.b16 %v451, %v449
  %v478 = vpack.c.b16 %v452, %v450
  %v479 = vpack.c.b16 %v455, %v453
  %v480 = vpack.c.b16 %v456, %v454
  %v481 = vpack.c.b16 %v459, %v457
  %v482 = vpack.c.b16 %v460, %v458
  %v483 = vpack.c.b16 %v463, %v461
  %v484 = vpack.c.b16 %v464, %v462
  %v485 = vpack.c.b16 %v467, %v465
  %v486 = vpack.c.b16 %v468, %v466
  %v487 = vpack.c.b16 %v471, %v469
  %v488 = vpack.c.b16 %v472, %v470
  %505 = vmatprep.subr.bf16.mxu0 %v474
  %506 = vmatpush1.bf16.msra.mxu0 %v473
  %507 = vmatprep.subr.bf16.mxu0 %v476
  %508 = vmatpush1.bf16.msra.mxu0 %v475
  %509 = vmatprep.subr.bf16.mxu0 %v478
  %510 = vmatpush1.bf16.msra.mxu0 %v477
  %511 = vmatprep.subr.bf16.mxu0 %v480
  %512 = vmatpush1.bf16.msra.mxu0 %v479
  %513 = vmatprep.subr.bf16.mxu0 %v482
  %514 = vmatpush1.bf16.msra.mxu0 %v481
  %515 = vmatprep.subr.bf16.mxu0 %v484
  %516 = vmatpush1.bf16.msra.mxu0 %v483
  %517 = vmatprep.subr.bf16.mxu0 %v486
  %518 = vmatpush1.bf16.msra.mxu0 %v485
  %519 = vmatprep.subr.bf16.mxu0 %v488
  %520 = vmatpush1.bf16.msra.mxu0 %v487
  %521 = vmatprep.subr.bf16.mxu0 0
  %522 = vmatpush1.bf16.msra.mxu0 0
  %523 = vmatprep.subr.bf16.mxu0 0
  %524 = vmatpush1.bf16.msra.mxu0 0
  %525 = vmatprep.subr.bf16.mxu0 0
  %526 = vmatpush1.bf16.msra.mxu0 0
  %527 = vmatprep.subr.bf16.mxu0 0
  %528 = vmatpush1.bf16.msra.mxu0 0
  %529 = vmatprep.subr.bf16.mxu0 0
  %530 = vmatpush1.bf16.msra.mxu0 0
  %531 = vmatprep.subr.bf16.mxu0 0
  %532 = vmatpush1.bf16.msra.mxu0 0
  %533 = vmatprep.subr.bf16.mxu0 0
  %534 = vmatpush1.bf16.msra.mxu0 0
  %535 = vmatprep.subr.bf16.mxu0 0
  %536 = vmatpush1.bf16.msra.mxu0 0
  %537 = vmatprep.mubr.bf16.mxu0 0
  %538 = vmatmul.mubr.bf16.gmra.mrb[0].mxu0 %v408
  %v539 = vpop.f32.mrb[0].mxu0
  %v540 = vadd.f32 0.0, %v539
  %v541 = vpop.f32.mrb[0].mxu0
  %v542 = vadd.f32 0.0, %v541
  %v543 = vpop.f32.mrb[0].mxu0
  %v544 = vpop.f32.mrb[0].mxu0
  %545 = vdwg.mxu0
  %v546 = vadd.f32 %v406, %v540
  %v547 = vadd.f32 %v407, %v542
  %v548 = vxor.u32 %v546, 2147483648
  %v549 = vxor.u32 %v547, 2147483648
  %v550 = vmul.f32 %v548, 1.442695
  %v551 = vpow.pop %v550
  %v552 = vmul.f32 %v549, 1.442695
  %v553 = vpow.pop %v552
  %v554 = vadd.f32 %v551, 1.0
  %v555 = vadd.f32 %v553, 1.0
  %v556 = vrcp.pop %v554
  %v557 = vmul.f32 1.0, %v556
  %v558 = vrcp.pop %v555
  %v559 = vmul.f32 1.0, %v558
  %v560 = vld [vmem:[#allocation4] sm:$0xff]
  %v561 = vmul.f32 %v559, %v405
  %v562 = vpack.c.bf16 %v561, %v561
  %v563 = vld [vmem:[%s6] sm:$0xf]
  %v564 = vld [vmem:[%s6 + $0x4] sm:$0xf]
  %v565 = vld [vmem:[%s6 + $0x8] sm:$0xf]
  %v566 = vld [vmem:[%s6 + $0xc] sm:$0xf]
  %v567 = vld [vmem:[%s6 + $0x10] sm:$0xf]
  %v568 = vld [vmem:[%s6 + $0x14] sm:$0xf]
  %v569 = vld [vmem:[%s6 + $0x18] sm:$0xf]
  %v570 = vld [vmem:[%s6 + $0x1c] sm:$0xf]
  %v571 = vld [vmem:[%s6 + $0x20] sm:$0xf]
  %v572 = vld [vmem:[%s6 + $0x24] sm:$0xf]
  %v573 = vld [vmem:[%s6 + $0x28] sm:$0xf]
  %v574 = vld [vmem:[%s6 + $0x2c] sm:$0xf]
  %v575 = vld [vmem:[%s6 + $0x30] sm:$0xf]
  %v576 = vld [vmem:[%s6 + $0x34] sm:$0xf]
  %v577 = vld [vmem:[%s6 + $0x38] sm:$0xf]
  %v578 = vld [vmem:[%s6 + $0x3c] sm:$0xf]
  %v595 = vunpack.c.l.b16 %v563
  %v596 = vunpack.c.l.b16 %v564
  %v597 = vunpack.c.l.b16 %v565
  %v598 = vunpack.c.l.b16 %v566
  %v599 = vunpack.c.l.b16 %v567
  %v600 = vunpack.c.l.b16 %v568
  %v601 = vunpack.c.l.b16 %v569
  %v602 = vunpack.c.l.b16 %v570
  %v603 = vunpack.c.l.b16 %v571
  %v604 = vunpack.c.l.b16 %v572
  %v605 = vunpack.c.l.b16 %v573
  %v606 = vunpack.c.l.b16 %v574
  %v607 = vunpack.c.l.b16 %v575
  %v608 = vunpack.c.l.b16 %v576
  %v609 = vunpack.c.l.b16 %v577
  %v610 = vunpack.c.l.b16 %v578
  %v611 = vpack.c.b16 %v596, %v595
  %v612 = vpack.c.b16 %v598, %v597
  %v613 = vpack.c.b16 %v600, %v599
  %v614 = vpack.c.b16 %v602, %v601
  %v615 = vpack.c.b16 %v604, %v603
  %v616 = vpack.c.b16 %v606, %v605
  %v617 = vpack.c.b16 %v608, %v607
  %v618 = vpack.c.b16 %v610, %v609
  %627 = vmatprep.subr.bf16.mxu0 0
  %628 = vmatpush1.bf16.msra.mxu0 %v611
  %629 = vmatprep.subr.bf16.mxu0 0
  %630 = vmatpush1.bf16.msra.mxu0 %v612
  %631 = vmatprep.subr.bf16.mxu0 0
  %632 = vmatpush1.bf16.msra.mxu0 %v613
  %633 = vmatprep.subr.bf16.mxu0 0
  %634 = vmatpush1.bf16.msra.mxu0 %v614
  %635 = vmatprep.subr.bf16.mxu0 0
  %636 = vmatpush1.bf16.msra.mxu0 %v615
  %637 = vmatprep.subr.bf16.mxu0 0
  %638 = vmatpush1.bf16.msra.mxu0 %v616
  %639 = vmatprep.subr.bf16.mxu0 0
  %640 = vmatpush1.bf16.msra.mxu0 %v617
  %641 = vmatprep.subr.bf16.mxu0 0
  %642 = vmatpush1.bf16.msra.mxu0 %v618
  %643 = vmatprep.subr.bf16.mxu0 0
  %644 = vmatpush1.bf16.msra.mxu0 0
  %645 = vmatprep.subr.bf16.mxu0 0
  %646 = vmatpush1.bf16.msra.mxu0 0
  %647 = vmatprep.subr.bf16.mxu0 0
  %648 = vmatpush1.bf16.msra.mxu0 0
  %649 = vmatprep.subr.bf16.mxu0 0
  %650 = vmatpush1.bf16.msra.mxu0 0
  %651 = vmatprep.subr.bf16.mxu0 0
  %652 = vmatpush1.bf16.msra.mxu0 0
  %653 = vmatprep.subr.bf16.mxu0 0
  %654 = vmatpush1.bf16.msra.mxu0 0
  %655 = vmatprep.subr.bf16.mxu0 0
  %656 = vmatpush1.bf16.msra.mxu0 0
  %657 = vmatprep.subr.bf16.mxu0 0
  %658 = vmatpush1.bf16.msra.mxu0 0
  %659 = vmatprep.mubr.bf16.mxu0 0
  %660 = vmatmul.mubr.bf16.gmra.mrb[0].mxu0 %v562
  %v661 = vpop.f32.mrb[0].mxu0
  %v662 = vadd.f32 0.0, %v661
  %v663 = vpop.f32.mrb[0].mxu0
  %v664 = vpop.f32.mrb[0].mxu0
  %v665 = vpop.f32.mrb[0].mxu0
  %666 = vdwg.mxu0
  %v667 = vadd.f32 %v560, %v662
  %v668 = vtanh.pop %v667
  %v669 = vsub.f32 %v668, %v405
  %v670 = vmul.f32 %v557, %v669
  %v671 = vadd.f32 %v405, %v670
  %672 = vst [vmem:[#allocation2] sm:$0xff] %v671
  %v673 = vpack.c.bf16 %v671, %v671
  %674 = vst [vmem:[%s7] sm:$0xf] %v673
  %v675 = vld [vmem:[#allocation2] sm:$0xff]
  %s676 = scalar_lea.vmem [#allocation3], 16
  %v677 = vld [vmem:[%s676] sm:$0xff]
  %v678 = vld [vmem:[%s676 + $0x8] sm:$0xff]
  %v679 = vpack.c.bf16 %v675, %v675
  %v680 = vld [vmem:[%s5] sm:$0xff]
  %v681 = vld [vmem:[%s5 + $0x8] sm:$0xff]
  %v682 = vld [vmem:[%s5 + $0x10] sm:$0xff]
  %v683 = vld [vmem:[%s5 + $0x18] sm:$0xff]
  %v684 = vld [vmem:[%s5 + $0x20] sm:$0xff]
  %v685 = vld [vmem:[%s5 + $0x28] sm:$0xff]
  %v686 = vld [vmem:[%s5 + $0x30] sm:$0xff]
  %v687 = vld [vmem:[%s5 + $0x38] sm:$0xff]
  %v688 = vld [vmem:[%s5 + $0x40] sm:$0xff]
  %v689 = vld [vmem:[%s5 + $0x48] sm:$0xff]
  %v690 = vld [vmem:[%s5 + $0x50] sm:$0xff]
  %v691 = vld [vmem:[%s5 + $0x58] sm:$0xff]
  %v692 = vld [vmem:[%s5 + $0x60] sm:$0xff]
  %v693 = vld [vmem:[%s5 + $0x68] sm:$0xff]
  %v694 = vld [vmem:[%s5 + $0x70] sm:$0xff]
  %v695 = vld [vmem:[%s5 + $0x78] sm:$0xff]
  %v712 = vunpack.c.l.b16 %v680
  %v713 = vunpack.c.h.b16 %v680
  %v714 = vunpack.c.l.b16 %v681
  %v715 = vunpack.c.h.b16 %v681
  %v716 = vunpack.c.l.b16 %v682
  %v717 = vunpack.c.h.b16 %v682
  %v718 = vunpack.c.l.b16 %v683
  %v719 = vunpack.c.h.b16 %v683
  %v720 = vunpack.c.l.b16 %v684
  %v721 = vunpack.c.h.b16 %v684
  %v722 = vunpack.c.l.b16 %v685
  %v723 = vunpack.c.h.b16 %v685
  %v724 = vunpack.c.l.b16 %v686
  %v725 = vunpack.c.h.b16 %v686
  %v726 = vunpack.c.l.b16 %v687
  %v727 = vunpack.c.h.b16 %v687
  %v728 = vunpack.c.l.b16 %v688
  %v729 = vunpack.c.h.b16 %v688
  %v730 = vunpack.c.l.b16 %v689
  %v731 = vunpack.c.h.b16 %v689
  %v732 = vunpack.c.l.b16 %v690
  %v733 = vunpack.c.h.b16 %v690
  %v734 = vunpack.c.l.b16 %v691
  %v735 = vunpack.c.h.b16 %v691
  %v736 = vunpack.c.l.b16 %v692
  %v737 = vunpack.c.h.b16 %v692
  %v738 = vunpack.c.l.b16 %v693
  %v739 = vunpack.c.h.b16 %v693
  %v740 = vunpack.c.l.b16 %v694
  %v741 = vunpack.c.h.b16 %v694
  %v742 = vunpack.c.l.b16 %v695
  %v743 = vunpack.c.h.b16 %v695
  %v744 = vpack.c.b16 %v714, %v712
  %v745 = vpack.c.b16 %v715, %v713
  %v746 = vpack.c.b16 %v718, %v716
  %v747 = vpack.c.b16 %v719, %v717
  %v748 = vpack.c.b16 %v722, %v720
  %v749 = vpack.c.b16 %v723, %v721
  %v750 = vpack.c.b16 %v726, %v724
  %v751 = vpack.c.b16 %v727, %v725
  %v752 = vpack.c.b16 %v730, %v728
  %v753 = vpack.c.b16 %v731, %v729
  %v754 = vpack.c.b16 %v734, %v732
  %v755 = vpack.c.b16 %v735, %v733
  %v756 = vpack.c.b16 %v738, %v736
  %v757 = vpack.c.b16 %v739, %v737
  %v758 = vpack.c.b16 %v742, %v740
  %v759 = vpack.c.b16 %v743, %v741
  %776 = vmatprep.subr.bf16.mxu0 %v745
  %777 = vmatpush1.bf16.msra.mxu0 %v744
  %778 = vmatprep.subr.bf16.mxu0 %v747
  %779 = vmatpush1.bf16.msra.mxu0 %v746
  %780 = vmatprep.subr.bf16.mxu0 %v749
  %781 = vmatpush1.bf16.msra.mxu0 %v748
  %782 = vmatprep.subr.bf16.mxu0 %v751
  %783 = vmatpush1.bf16.msra.mxu0 %v750
  %784 = vmatprep.subr.bf16.mxu0 %v753
  %785 = vmatpush1.bf16.msra.mxu0 %v752
  %786 = vmatprep.subr.bf16.mxu0 %v755
  %787 = vmatpush1.bf16.msra.mxu0 %v754
  %788 = vmatprep.subr.bf16.mxu0 %v757
  %789 = vmatpush1.bf16.msra.mxu0 %v756
  %790 = vmatprep.subr.bf16.mxu0 %v759
  %791 = vmatpush1.bf16.msra.mxu0 %v758
  %792 = vmatprep.subr.bf16.mxu0 0
  %793 = vmatpush1.bf16.msra.mxu0 0
  %794 = vmatprep.subr.bf16.mxu0 0
  %795 = vmatpush1.bf16.msra.mxu0 0
  %796 = vmatprep.subr.bf16.mxu0 0
  %797 = vmatpush1.bf16.msra.mxu0 0
  %798 = vmatprep.subr.bf16.mxu0 0
  %799 = vmatpush1.bf16.msra.mxu0 0
  %800 = vmatprep.subr.bf16.mxu0 0
  %801 = vmatpush1.bf16.msra.mxu0 0
  %802 = vmatprep.subr.bf16.mxu0 0
  %803 = vmatpush1.bf16.msra.mxu0 0
  %804 = vmatprep.subr.bf16.mxu0 0
  %805 = vmatpush1.bf16.msra.mxu0 0
  %806 = vmatprep.subr.bf16.mxu0 0
  %807 = vmatpush1.bf16.msra.mxu0 0
  %808 = vmatprep.mubr.bf16.mxu0 0
  %809 = vmatmul.mubr.bf16.gmra.mrb[0].mxu0 %v679
  %v810 = vpop.f32.mrb[0].mxu0
  %v811 = vadd.f32 0.0, %v810
  %v812 = vpop.f32.mrb[0].mxu0
  %v813 = vadd.f32 0.0, %v812
  %v814 = vpop.f32.mrb[0].mxu0
  %v815 = vpop.f32.mrb[0].mxu0
  %816 = vdwg.mxu0
  %v817 = vadd.f32 %v677, %v811
  %v818 = vadd.f32 %v678, %v813
  %v819 = vxor.u32 %v817, 2147483648
  %v820 = vxor.u32 %v818, 2147483648
  %v821 = vmul.f32 %v819, 1.442695
  %v822 = vpow.pop %v821
  %v823 = vmul.f32 %v820, 1.442695
  %v824 = vpow.pop %v823
  %v825 = vadd.f32 %v822, 1.0
  %v826 = vadd.f32 %v824, 1.0
  %v827 = vrcp.pop %v825
  %v828 = vmul.f32 1.0, %v827
  %v829 = vrcp.pop %v826
  %v830 = vmul.f32 1.0, %v829
  %s831 = scalar_lea.vmem [#allocation4], 8
  %v832 = vld [vmem:[%s831] sm:$0xff]
  %v833 = vmul.f32 %v830, %v675
  %v834 = vpack.c.bf16 %v833, %v833
  %v835 = vld [vmem:[%s6] sm:$0xf]
  %v836 = vld [vmem:[%s6 + $0x4] sm:$0xf]
  %v837 = vld [vmem:[%s6 + $0x8] sm:$0xf]
  %v838 = vld [vmem:[%s6 + $0xc] sm:$0xf]
  %v839 = vld [vmem:[%s6 + $0x10] sm:$0xf]
  %v840 = vld [vmem:[%s6 + $0x14] sm:$0xf]
  %v841 = vld [vmem:[%s6 + $0x18] sm:$0xf]
  %v842 = vld [vmem:[%s6 + $0x1c] sm:$0xf]
  %v843 = vld [vmem:[%s6 + $0x20] sm:$0xf]
  %v844 = vld [vmem:[%s6 + $0x24] sm:$0xf]
  %v845 = vld [vmem:[%s6 + $0x28] sm:$0xf]
  %v846 = vld [vmem:[%s6 + $0x2c] sm:$0xf]
  %v847 = vld [vmem:[%s6 + $0x30] sm:$0xf]
  %v848 = vld [vmem:[%s6 + $0x34] sm:$0xf]
  %v849 = vld [vmem:[%s6 + $0x38] sm:$0xf]
  %v850 = vld [vmem:[%s6 + $0x3c] sm:$0xf]
  %v867 = vunpack.c.l.b16 %v835
  %v868 = vunpack.c.l.b16 %v836
  %v869 = vunpack.c.l.b16 %v837
  %v870 = vunpack.c.l.b16 %v838
  %v871 = vunpack.c.l.b16 %v839
  %v872 = vunpack.c.l.b16 %v840
  %v873 = vunpack.c.l.b16 %v841
  %v874 = vunpack.c.l.b16 %v842
  %v875 = vunpack.c.l.b16 %v843
  %v876 = vunpack.c.l.b16 %v844
  %v877 = vunpack.c.l.b16 %v845
  %v878 = vunpack.c.l.b16 %v846
  %v879 = vunpack.c.l.b16 %v847
  %v880 = vunpack.c.l.b16 %v848
  %v881 = vunpack.c.l.b16 %v849
  %v882 = vunpack.c.l.b16 %v850
  %v883 = vpack.c.b16 %v868, %v867
  %v884 = vpack.c.b16 %v870, %v869
  %v885 = vpack.c.b16 %v872, %v871
  %v886 = vpack.c.b16 %v874, %v873
  %v887 = vpack.c.b16 %v876, %v875
  %v888 = vpack.c.b16 %v878, %v877
  %v889 = vpack.c.b16 %v880, %v879
  %v890 = vpack.c.b16 %v882, %v881
  %899 = vmatprep.subr.bf16.mxu0 0
  %900 = vmatpush1.bf16.msra.mxu0 %v883
  %901 = vmatprep.subr.bf16.mxu0 0
  %902 = vmatpush1.bf16.msra.mxu0 %v884
  %903 = vmatprep.subr.bf16.mxu0 0
  %904 = vmatpush1.bf16.msra.mxu0 %v885
  %905 = vmatprep.subr.bf16.mxu0 0
  %906 = vmatpush1.bf16.msra.mxu0 %v886
  %907 = vmatprep.subr.bf16.mxu0 0
  %908 = vmatpush1.bf16.msra.mxu0 %v887
  %909 = vmatprep.subr.bf16.mxu0 0
  %910 = vmatpush1.bf16.msra.mxu0 %v888
  %911 = vmatprep.subr.bf16.mxu0 0
  %912 = vmatpush1.bf16.msra.mxu0 %v889
  %913 = vmatprep.subr.bf16.mxu0 0
  %914 = vmatpush1.bf16.msra.mxu0 %v890
  %915 = vmatprep.subr.bf16.mxu0 0
  %916 = vmatpush1.bf16.msra.mxu0 0
  %917 = vmatprep.subr.bf16.mxu0 0
  %918 = vmatpush1.bf16.msra.mxu0 0
  %919 = vmatprep.subr.bf16.mxu0 0
  %920 = vmatpush1.bf16.msra.mxu0 0
  %921 = vmatprep.subr.bf16.mxu0 0
  %922 = vmatpush1.bf16.msra.mxu0 0
  %923 = vmatprep.subr.bf16.mxu0 0
  %924 = vmatpush1.bf16.msra.mxu0 0
  %925 = vmatprep.subr.bf16.mxu0 0
  %926 = vmatpush1.bf16.msra.mxu0 0
  %927 = vmatprep.subr.bf16.mxu0 0
  %928 = vmatpush1.bf16.msra.mxu0 0
  %929 = vmatprep.subr.bf16.mxu0 0
  %930 = vmatpush1.bf16.msra.mxu0 0
  %931 = vmatprep.mubr.bf16.mxu0 0
  %932 = vmatmul.mubr.bf16.gmra.mrb[0].mxu0 %v834
  %v933 = vpop.f32.mrb[0].mxu0
  %v934 = vadd.f32 0.0, %v933
  %v935 = vpop.f32.mrb[0].mxu0
  %v936 = vpop.f32.mrb[0].mxu0
  %v937 = vpop.f32.mrb[0].mxu0
  %938 = vdwg.mxu0
  %v939 = vadd.f32 %v832, %v934
  %v940 = vtanh.pop %v939
  %v941 = vsub.f32 %v940, %v675
  %v942 = vmul.f32 %v828, %v941
  %v943 = vadd.f32 %v675, %v942
  %944 = vst [vmem:[#allocation2] sm:$0xff] %v943
  %v945 = vpack.c.bf16 %v943, %v943
  %s946 = scalar_lea.vmem %s7, 4
  %947 = vst [vmem:[%s946] sm:$0xf] %v945
  %v948 = vld [vmem:[#allocation2] sm:$0xff]
  %s949 = scalar_lea.vmem [#allocation3], 32
  %v950 = vld [vmem:[%s949] sm:$0xff]
  %v951 = vld [vmem:[%s949 + $0x8] sm:$0xff]
  %v952 = vpack.c.bf16 %v948, %v948
  %v953 = vld [vmem:[%s5] sm:$0xff]
  %v954 = vld [vmem:[%s5 + $0x8] sm:$0xff]
  %v955 = vld [vmem:[%s5 + $0x10] sm:$0xff]
  %v956 = vld [vmem:[%s5 + $0x18] sm:$0xff]
  %v957 = vld [vmem:[%s5 + $0x20] sm:$0xff]
  %v958 = vld [vmem:[%s5 + $0x28] sm:$0xff]
  %v959 = vld [vmem:[%s5 + $0x30] sm:$0xff]
  %v960 = vld [vmem:[%s5 + $0x38] sm:$0xff]
  %v961 = vld [vmem:[%s5 + $0x40] sm:$0xff]
  %v962 = vld [vmem:[%s5 + $0x48] sm:$0xff]
  %v963 = vld [vmem:[%s5 + $0x50] sm:$0xff]
  %v964 = vld [vmem:[%s5 + $0x58] sm:$0xff]
  %v965 = vld [vmem:[%s5 + $0x60] sm:$0xff]
  %v966 = vld [vmem:[%s5 + $0x68] sm:$0xff]
  %v967 = vld [vmem:[%s5 + $0x70] sm:$0xff]
  %v968 = vld [vmem:[%s5 + $0x78] sm:$0xff]
  %v985 = vunpack.c.l.b16 %v953
  %v986 = vunpack.c.h.b16 %v953
  %v987 = vunpack.c.l.b16 %v954
  %v988 = vunpack.c.h.b16 %v954
  %v989 = vunpack.c.l.b16 %v955
  %v990 = vunpack.c.h.b16 %v955
  %v991 = vunpack.c.l.b16 %v956
  %v992 = vunpack.c.h.b16 %v956
  %v993 = vunpack.c.l.b16 %v957
  %v994 = vunpack.c.h.b16 %v957
  %v995 = vunpack.c.l.b16 %v958
  %v996 = vunpack.c.h.b16 %v958
  %v997 = vunpack.c.l.b16 %v959
  %v998 = vunpack.c.h.b16 %v959
  %v999 = vunpack.c.l.b16 %v960
  %v1000 = vunpack.c.h.b16 %v960
  %v1001 = vunpack.c.l.b16 %v961
  %v1002 = vunpack.c.h.b16 %v961
  %v1003 = vunpack.c.l.b16 %v962
  %v1004 = vunpack.c.h.b16 %v962
  %v1005 = vunpack.c.l.b16 %v963
  %v1006 = vunpack.c.h.b16 %v963
  %v1007 = vunpack.c.l.b16 %v964
  %v1008 = vunpack.c.h.b16 %v964
  %v1009 = vunpack.c.l.b16 %v965
  %v1010 = vunpack.c.h.b16 %v965
  %v1011 = vunpack.c.l.b16 %v966
  %v1012 = vunpack.c.h.b16 %v966
  %v1013 = vunpack.c.l.b16 %v967
  %v1014 = vunpack.c.h.b16 %v967
  %v1015 = vunpack.c.l.b16 %v968
  %v1016 = vunpack.c.h.b16 %v968
  %v1017 = vpack.c.b16 %v987, %v985
  %v1018 = vpack.c.b16 %v988, %v986
  %v1019 = vpack.c.b16 %v991, %v989
  %v1020 = vpack.c.b16 %v992, %v990
  %v1021 = vpack.c.b16 %v995, %v993
  %v1022 = vpack.c.b16 %v996, %v994
  %v1023 = vpack.c.b16 %v999, %v997
  %v1024 = vpack.c.b16 %v1000, %v998
  %v1025 = vpack.c.b16 %v1003, %v1001
  %v1026 = vpack.c.b16 %v1004, %v1002
  %v1027 = vpack.c.b16 %v1007, %v1005
  %v1028 = vpack.c.b16 %v1008, %v1006
  %v1029 = vpack.c.b16 %v1011, %v1009
  %v1030 = vpack.c.b16 %v1012, %v1010
  %v1031 = vpack.c.b16 %v1015, %v1013
  %v1032 = vpack.c.b16 %v1016, %v1014
  %1049 = vmatprep.subr.bf16.mxu0 %v1018
  %1050 = vmatpush1.bf16.msra.mxu0 %v1017
  %1051 = vmatprep.subr.bf16.mxu0 %v1020
  %1052 = vmatpush1.bf16.msra.mxu0 %v1019
  %1053 = vmatprep.subr.bf16.mxu0 %v1022
  %1054 = vmatpush1.bf16.msra.mxu0 %v1021
  %1055 = vmatprep.subr.bf16.mxu0 %v1024
  %1056 = vmatpush1.bf16.msra.mxu0 %v1023
  %1057 = vmatprep.subr.bf16.mxu0 %v1026
  %1058 = vmatpush1.bf16.msra.mxu0 %v1025
  %1059 = vmatprep.subr.bf16.mxu0 %v1028
  %1060 = vmatpush1.bf16.msra.mxu0 %v1027
  %1061 = vmatprep.subr.bf16.mxu0 %v1030
  %1062 = vmatpush1.bf16.msra.mxu0 %v1029
  %1063 = vmatprep.subr.bf16.mxu0 %v1032
  %1064 = vmatpush1.bf16.msra.mxu0 %v1031
  %1065 = vmatprep.subr.bf16.mxu0 0
  %1066 = vmatpush1.bf16.msra.mxu0 0
  %1067 = vmatprep.subr.bf16.mxu0 0
  %1068 = vmatpush1.bf16.msra.mxu0 0
  %1069 = vmatprep.subr.bf16.mxu0 0
  %1070 = vmatpush1.bf16.msra.mxu0 0
  %1071 = vmatprep.subr.bf16.mxu0 0
  %1072 = vmatpush1.bf16.msra.mxu0 0
  %1073 = vmatprep.subr.bf16.mxu0 0
  %1074 = vmatpush1.bf16.msra.mxu0 0
  %1075 = vmatprep.subr.bf16.mxu0 0
  %1076 = vmatpush1.bf16.msra.mxu0 0
  %1077 = vmatprep.subr.bf16.mxu0 0
  %1078 = vmatpush1.bf16.msra.mxu0 0
  %1079 = vmatprep.subr.bf16.mxu0 0
  %1080 = vmatpush1.bf16.msra.mxu0 0
  %1081 = vmatprep.mubr.bf16.mxu0 0
  %1082 = vmatmul.mubr.bf16.gmra.mrb[0].mxu0 %v952
  %v1083 = vpop.f32.mrb[0].mxu0
  %v1084 = vadd.f32 0.0, %v1083
  %v1085 = vpop.f32.mrb[0].mxu0
  %v1086 = vadd.f32 0.0, %v1085
  %v1087 = vpop.f32.mrb[0].mxu0
  %v1088 = vpop.f32.mrb[0].mxu0
  %1089 = vdwg.mxu0
  %v1090 = vadd.f32 %v950, %v1084
  %v1091 = vadd.f32 %v951, %v1086
  %v1092 = vxor.u32 %v1090, 2147483648
  %v1093 = vxor.u32 %v1091, 2147483648
  %v1094 = vmul.f32 %v1092, 1.442695
  %v1095 = vpow.pop %v1094
  %v1096 = vmul.f32 %v1093, 1.442695
  %v1097 = vpow.pop %v1096
  %v1098 = vadd.f32 %v1095, 1.0
  %v1099 = vadd.f32 %v1097, 1.0
  %v1100 = vrcp.pop %v1098
  %v1101 = vmul.f32 1.0, %v1100
  %v1102 = vrcp.pop %v1099
  %v1103 = vmul.f32 1.0, %v1102
  %s1104 = scalar_lea.vmem [#allocation4], 16
  %v1105 = vld [vmem:[%s1104] sm:$0xff]
  %v1106 = vmul.f32 %v1103, %v948
  %v1107 = vpack.c.bf16 %v1106, %v1106
  %v1108 = vld [vmem:[%s6] sm:$0xf]
  %v1109 = vld [vmem:[%s6 + $0x4] sm:$0xf]
  %v1110 = vld [vmem:[%s6 + $0x8] sm:$0xf]
  %v1111 = vld [vmem:[%s6 + $0xc] sm:$0xf]
  %v1112 = vld [vmem:[%s6 + $0x10] sm:$0xf]
  %v1113 = vld [vmem:[%s6 + $0x14] sm:$0xf]
  %v1114 = vld [vmem:[%s6 + $0x18] sm:$0xf]
  %v1115 = vld [vmem:[%s6 + $0x1c] sm:$0xf]
  %v1116 = vld [vmem:[%s6 + $0x20] sm:$0xf]
  %v1117 = vld [vmem:[%s6 + $0x24] sm:$0xf]
  %v1118 = vld [vmem:[%s6 + $0x28] sm:$0xf]
  %v1119 = vld [vmem:[%s6 + $0x2c] sm:$0xf]
  %v1120 = vld [vmem:[%s6 + $0x30] sm:$0xf]
  %v1121 = vld [vmem:[%s6 + $0x34] sm:$0xf]
  %v1122 = vld [vmem:[%s6 + $0x38] sm:$0xf]
  %v1123 = vld [vmem:[%s6 + $0x3c] sm:$0xf]
  %v1140 = vunpack.c.l.b16 %v1108
  %v1141 = vunpack.c.l.b16 %v1109
  %v1142 = vunpack.c.l.b16 %v1110
  %v1143 = vunpack.c.l.b16 %v1111
  %v1144 = vunpack.c.l.b16 %v1112
  %v1145 = vunpack.c.l.b16 %v1113
  %v1146 = vunpack.c.l.b16 %v1114
  %v1147 = vunpack.c.l.b16 %v1115
  %v1148 = vunpack.c.l.b16 %v1116
  %v1149 = vunpack.c.l.b16 %v1117
  %v1150 = vunpack.c.l.b16 %v1118
  %v1151 = vunpack.c.l.b16 %v1119
  %v1152 = vunpack.c.l.b16 %v1120
  %v1153 = vunpack.c.l.b16 %v1121
  %v1154 = vunpack.c.l.b16 %v1122
  %v1155 = vunpack.c.l.b16 %v1123
  %v1156 = vpack.c.b16 %v1141, %v1140
  %v1157 = vpack.c.b16 %v1143, %v1142
  %v1158 = vpack.c.b16 %v1145, %v1144
  %v1159 = vpack.c.b16 %v1147, %v1146
  %v1160 = vpack.c.b16 %v1149, %v1148
  %v1161 = vpack.c.b16 %v1151, %v1150
  %v1162 = vpack.c.b16 %v1153, %v1152
  %v1163 = vpack.c.b16 %v1155, %v1154
  %1172 = vmatprep.subr.bf16.mxu0 0
  %1173 = vmatpush1.bf16.msra.mxu0 %v1156
  %1174 = vmatprep.subr.bf16.mxu0 0
  %1175 = vmatpush1.bf16.msra.mxu0 %v1157
  %1176 = vmatprep.subr.bf16.mxu0 0
  %1177 = vmatpush1.bf16.msra.mxu0 %v1158
  %1178 = vmatprep.subr.bf16.mxu0 0
  %1179 = vmatpush1.bf16.msra.mxu0 %v1159
  %1180 = vmatprep.subr.bf16.mxu0 0
  %1181 = vmatpush1.bf16.msra.mxu0 %v1160
  %1182 = vmatprep.subr.bf16.mxu0 0
  %1183 = vmatpush1.bf16.msra.mxu0 %v1161
  %1184 = vmatprep.subr.bf16.mxu0 0
  %1185 = vmatpush1.bf16.msra.mxu0 %v1162
  %1186 = vmatprep.subr.bf16.mxu0 0
  %1187 = vmatpush1.bf16.msra.mxu0 %v1163
  %1188 = vmatprep.subr.bf16.mxu0 0
  %1189 = vmatpush1.bf16.msra.mxu0 0
  %1190 = vmatprep.subr.bf16.mxu0 0
  %1191 = vmatpush1.bf16.msra.mxu0 0
  %1192 = vmatprep.subr.bf16.mxu0 0
  %1193 = vmatpush1.bf16.msra.mxu0 0
  %1194 = vmatprep.subr.bf16.mxu0 0
  %1195 = vmatpush1.bf16.msra.mxu0 0
  %1196 = vmatprep.subr.bf16.mxu0 0
  %1197 = vmatpush1.bf16.msra.mxu0 0
  %1198 = vmatprep.subr.bf16.mxu0 0
  %1199 = vmatpush1.bf16.msra.mxu0 0
  %1200 = vmatprep.subr.bf16.mxu0 0
  %1201 = vmatpush1.bf16.msra.mxu0 0
  %1202 = vmatprep.subr.bf16.mxu0 0
  %1203 = vmatpush1.bf16.msra.mxu0 0
  %1204 = vmatprep.mubr.bf16.mxu0 0
  %1205 = vmatmul.mubr.bf16.gmra.mrb[0].mxu0 %v1107
  %v1206 = vpop.f32.mrb[0].mxu0
  %v1207 = vadd.f32 0.0, %v1206
  %v1208 = vpop.f32.mrb[0].mxu0
  %v1209 = vpop.f32.mrb[0].mxu0
  %v1210 = vpop.f32.mrb[0].mxu0
  %1211 = vdwg.mxu0
  %v1212 = vadd.f32 %v1105, %v1207
  %v1213 = vtanh.pop %v1212
  %v1214 = vsub.f32 %v1213, %v948
  %v1215 = vmul.f32 %v1101, %v1214
  %v1216 = vadd.f32 %v948, %v1215
  %1217 = vst [vmem:[#allocation2] sm:$0xff] %v1216
  %v1218 = vpack.c.bf16 %v1216, %v1216
  %s1219 = scalar_lea.vmem %s7, 8
  %1220 = vst [vmem:[%s1219] sm:$0xf] %v1218
  %v1221 = vld [vmem:[#allocation2] sm:$0xff]
  %s1222 = scalar_lea.vmem [#allocation3], 48
  %v1223 = vld [vmem:[%s1222] sm:$0xff]
  %v1224 = vld [vmem:[%s1222 + $0x8] sm:$0xff]
  %v1225 = vpack.c.bf16 %v1221, %v1221
  %v1226 = vld [vmem:[%s5] sm:$0xff]
  %v1227 = vld [vmem:[%s5 + $0x8] sm:$0xff]
  %v1228 = vld [vmem:[%s5 + $0x10] sm:$0xff]
  %v1229 = vld [vmem:[%s5 + $0x18] sm:$0xff]
  %v1230 = vld [vmem:[%s5 + $0x20] sm:$0xff]
  %v1231 = vld [vmem:[%s5 + $0x28] sm:$0xff]
  %v1232 = vld [vmem:[%s5 + $0x30] sm:$0xff]
  %v1233 = vld [vmem:[%s5 + $0x38] sm:$0xff]
  %v1234 = vld [vmem:[%s5 + $0x40] sm:$0xff]
  %v1235 = vld [vmem:[%s5 + $0x48] sm:$0xff]
  %v1236 = vld [vmem:[%s5 + $0x50] sm:$0xff]
  %v1237 = vld [vmem:[%s5 + $0x58] sm:$0xff]
  %v1238 = vld [vmem:[%s5 + $0x60] sm:$0xff]
  %v1239 = vld [vmem:[%s5 + $0x68] sm:$0xff]
  %v1240 = vld [vmem:[%s5 + $0x70] sm:$0xff]
  %v1241 = vld [vmem:[%s5 + $0x78] sm:$0xff]
  %v1258 = vunpack.c.l.b16 %v1226
  %v1259 = vunpack.c.h.b16 %v1226
  %v1260 = vunpack.c.l.b16 %v1227
  %v1261 = vunpack.c.h.b16 %v1227
  %v1262 = vunpack.c.l.b16 %v1228
  %v1263 = vunpack.c.h.b16 %v1228
  %v1264 = vunpack.c.l.b16 %v1229
  %v1265 = vunpack.c.h.b16 %v1229
  %v1266 = vunpack.c.l.b16 %v1230
  %v1267 = vunpack.c.h.b16 %v1230
  %v1268 = vunpack.c.l.b16 %v1231
  %v1269 = vunpack.c.h.b16 %v1231
  %v1270 = vunpack.c.l.b16 %v1232
  %v1271 = vunpack.c.h.b16 %v1232
  %v1272 = vunpack.c.l.b16 %v1233
  %v1273 = vunpack.c.h.b16 %v1233
  %v1274 = vunpack.c.l.b16 %v1234
  %v1275 = vunpack.c.h.b16 %v1234
  %v1276 = vunpack.c.l.b16 %v1235
  %v1277 = vunpack.c.h.b16 %v1235
  %v1278 = vunpack.c.l.b16 %v1236
  %v1279 = vunpack.c.h.b16 %v1236
  %v1280 = vunpack.c.l.b16 %v1237
  %v1281 = vunpack.c.h.b16 %v1237
  %v1282 = vunpack.c.l.b16 %v1238
  %v1283 = vunpack.c.h.b16 %v1238
  %v1284 = vunpack.c.l.b16 %v1239
  %v1285 = vunpack.c.h.b16 %v1239
  %v1286 = vunpack.c.l.b16 %v1240
  %v1287 = vunpack.c.h.b16 %v1240
  %v1288 = vunpack.c.l.b16 %v1241
  %v1289 = vunpack.c.h.b16 %v1241
  %v1290 = vpack.c.b16 %v1260, %v1258
  %v1291 = vpack.c.b16 %v1261, %v1259
  %v1292 = vpack.c.b16 %v1264, %v1262
  %v1293 = vpack.c.b16 %v1265, %v1263
  %v1294 = vpack.c.b16 %v1268, %v1266
  %v1295 = vpack.c.b16 %v1269, %v1267
  %v1296 = vpack.c.b16 %v1272, %v1270
  %v1297 = vpack.c.b16 %v1273, %v1271
  %v1298 = vpack.c.b16 %v1276, %v1274
  %v1299 = vpack.c.b16 %v1277, %v1275
  %v1300 = vpack.c.b16 %v1280, %v1278
  %v1301 = vpack.c.b16 %v1281, %v1279
  %v1302 = vpack.c.b16 %v1284, %v1282
  %v1303 = vpack.c.b16 %v1285, %v1283
  %v1304 = vpack.c.b16 %v1288, %v1286
  %v1305 = vpack.c.b16 %v1289, %v1287
  %1322 = vmatprep.subr.bf16.mxu0 %v1291
  %1323 = vmatpush1.bf16.msra.mxu0 %v1290
  %1324 = vmatprep.subr.bf16.mxu0 %v1293
  %1325 = vmatpush1.bf16.msra.mxu0 %v1292
  %1326 = vmatprep.subr.bf16.mxu0 %v1295
  %1327 = vmatpush1.bf16.msra.mxu0 %v1294
  %1328 = vmatprep.subr.bf16.mxu0 %v1297
  %1329 = vmatpush1.bf16.msra.mxu0 %v1296
  %1330 = vmatprep.subr.bf16.mxu0 %v1299
  %1331 = vmatpush1.bf16.msra.mxu0 %v1298
  %1332 = vmatprep.subr.bf16.mxu0 %v1301
  %1333 = vmatpush1.bf16.msra.mxu0 %v1300
  %1334 = vmatprep.subr.bf16.mxu0 %v1303
  %1335 = vmatpush1.bf16.msra.mxu0 %v1302
  %1336 = vmatprep.subr.bf16.mxu0 %v1305
  %1337 = vmatpush1.bf16.msra.mxu0 %v1304
  %1338 = vmatprep.subr.bf16.mxu0 0
  %1339 = vmatpush1.bf16.msra.mxu0 0
  %1340 = vmatprep.subr.bf16.mxu0 0
  %1341 = vmatpush1.bf16.msra.mxu0 0
  %1342 = vmatprep.subr.bf16.mxu0 0
  %1343 = vmatpush1.bf16.msra.mxu0 0
  %1344 = vmatprep.subr.bf16.mxu0 0
  %1345 = vmatpush1.bf16.msra.mxu0 0
  %1346 = vmatprep.subr.bf16.mxu0 0
  %1347 = vmatpush1.bf16.msra.mxu0 0
  %1348 = vmatprep.subr.bf16.mxu0 0
  %1349 = vmatpush1.bf16.msra.mxu0 0
  %1350 = vmatprep.subr.bf16.mxu0 0
  %1351 = vmatpush1.bf16.msra.mxu0 0
  %1352 = vmatprep.subr.bf16.mxu0 0
  %1353 = vmatpush1.bf16.msra.mxu0 0
  %1354 = vmatprep.mubr.bf16.mxu0 0
  %1355 = vmatmul.mubr.bf16.gmra.mrb[0].mxu0 %v1225
  %v1356 = vpop.f32.mrb[0].mxu0
  %v1357 = vadd.f32 0.0, %v1356
  %v1358 = vpop.f32.mrb[0].mxu0
  %v1359 = vadd.f32 0.0, %v1358
  %v1360 = vpop.f32.mrb[0].mxu0
  %v1361 = vpop.f32.mrb[0].mxu0
  %1362 = vdwg.mxu0
  %v1363 = vadd.f32 %v1223, %v1357
  %v1364 = vadd.f32 %v1224, %v1359
  %v1365 = vxor.u32 %v1363, 2147483648
  %v1366 = vxor.u32 %v1364, 2147483648
  %v1367 = vmul.f32 %v1365, 1.442695
  %v1368 = vpow.pop %v1367
  %v1369 = vmul.f32 %v1366, 1.442695
  %v1370 = vpow.pop %v1369
  %v1371 = vadd.f32 %v1368, 1.0
  %v1372 = vadd.f32 %v1370, 1.0
  %v1373 = vrcp.pop %v1371
  %v1374 = vmul.f32 1.0, %v1373
  %v1375 = vrcp.pop %v1372
  %v1376 = vmul.f32 1.0, %v1375
  %s1377 = scalar_lea.vmem [#allocation4], 24
  %v1378 = vld [vmem:[%s1377] sm:$0xff]
  %v1379 = vmul.f32 %v1376, %v1221
  %v1380 = vpack.c.bf16 %v1379, %v1379
  %v1381 = vld [vmem:[%s6] sm:$0xf]
  %v1382 = vld [vmem:[%s6 + $0x4] sm:$0xf]
  %v1383 = vld [vmem:[%s6 + $0x8] sm:$0xf]
  %v1384 = vld [vmem:[%s6 + $0xc] sm:$0xf]
  %v1385 = vld [vmem:[%s6 + $0x10] sm:$0xf]
  %v1386 = vld [vmem:[%s6 + $0x14] sm:$0xf]
  %v1387 = vld [vmem:[%s6 + $0x18] sm:$0xf]
  %v1388 = vld [vmem:[%s6 + $0x1c] sm:$0xf]
  %v1389 = vld [vmem:[%s6 + $0x20] sm:$0xf]
  %v1390 = vld [vmem:[%s6 + $0x24] sm:$0xf]
  %v1391 = vld [vmem:[%s6 + $0x28] sm:$0xf]
  %v1392 = vld [vmem:[%s6 + $0x2c] sm:$0xf]
  %v1393 = vld [vmem:[%s6 + $0x30] sm:$0xf]
  %v1394 = vld [vmem:[%s6 + $0x34] sm:$0xf]
  %v1395 = vld [vmem:[%s6 + $0x38] sm:$0xf]
  %v1396 = vld [vmem:[%s6 + $0x3c] sm:$0xf]
  %v1413 = vunpack.c.l.b16 %v1381
  %v1414 = vunpack.c.l.b16 %v1382
  %v1415 = vunpack.c.l.b16 %v1383
  %v1416 = vunpack.c.l.b16 %v1384
  %v1417 = vunpack.c.l.b16 %v1385
  %v1418 = vunpack.c.l.b16 %v1386
  %v1419 = vunpack.c.l.b16 %v1387
  %v1420 = vunpack.c.l.b16 %v1388
  %v1421 = vunpack.c.l.b16 %v1389
  %v1422 = vunpack.c.l.b16 %v1390
  %v1423 = vunpack.c.l.b16 %v1391
  %v1424 = vunpack.c.l.b16 %v1392
  %v1425 = vunpack.c.l.b16 %v1393
  %v1426 = vunpack.c.l.b16 %v1394
  %v1427 = vunpack.c.l.b16 %v1395
  %v1428 = vunpack.c.l.b16 %v1396
  %v1429 = vpack.c.b16 %v1414, %v1413
  %v1430 = vpack.c.b16 %v1416, %v1415
  %v1431 = vpack.c.b16 %v1418, %v1417
  %v1432 = vpack.c.b16 %v1420, %v1419
  %v1433 = vpack.c.b16 %v1422, %v1421
  %v1434 = vpack.c.b16 %v1424, %v1423
  %v1435 = vpack.c.b16 %v1426, %v1425
  %v1436 = vpack.c.b16 %v1428, %v1427
  %1445 = vmatprep.subr.bf16.mxu0 0
  %1446 = vmatpush1.bf16.msra.mxu0 %v1429
  %1447 = vmatprep.subr.bf16.mxu0 0
  %1448 = vmatpush1.bf16.msra.mxu0 %v1430
  %1449 = vmatprep.subr.bf16.mxu0 0
  %1450 = vmatpush1.bf16.msra.mxu0 %v1431
  %1451 = vmatprep.subr.bf16.mxu0 0
  %1452 = vmatpush1.bf16.msra.mxu0 %v1432
  %1453 = vmatprep.subr.bf16.mxu0 0
  %1454 = vmatpush1.bf16.msra.mxu0 %v1433
  %1455 = vmatprep.subr.bf16.mxu0 0
  %1456 = vmatpush1.bf16.msra.mxu0 %v1434
  %1457 = vmatprep.subr.bf16.mxu0 0
  %1458 = vmatpush1.bf16.msra.mxu0 %v1435
  %1459 = vmatprep.subr.bf16.mxu0 0
  %1460 = vmatpush1.bf16.msra.mxu0 %v1436
  %1461 = vmatprep.subr.bf16.mxu0 0
  %1462 = vmatpush1.bf16.msra.mxu0 0
  %1463 = vmatprep.subr.bf16.mxu0 0
  %1464 = vmatpush1.bf16.msra.mxu0 0
  %1465 = vmatprep.subr.bf16.mxu0 0
  %1466 = vmatpush1.bf16.msra.mxu0 0
  %1467 = vmatprep.subr.bf16.mxu0 0
  %1468 = vmatpush1.bf16.msra.mxu0 0
  %1469 = vmatprep.subr.bf16.mxu0 0
  %1470 = vmatpush1.bf16.msra.mxu0 0
  %1471 = vmatprep.subr.bf16.mxu0 0
  %1472 = vmatpush1.bf16.msra.mxu0 0
  %1473 = vmatprep.subr.bf16.mxu0 0
  %1474 = vmatpush1.bf16.msra.mxu0 0
  %1475 = vmatprep.subr.bf16.mxu0 0
  %1476 = vmatpush1.bf16.msra.mxu0 0
  %1477 = vmatprep.mubr.bf16.mxu0 0
  %1478 = vmatmul.mubr.bf16.gmra.mrb[0].mxu0 %v1380
  %v1479 = vpop.f32.mrb[0].mxu0
  %v1480 = vadd.f32 0.0, %v1479
  %v1481 = vpop.f32.mrb[0].mxu0
  %v1482 = vpop.f32.mrb[0].mxu0
  %v1483 = vpop.f32.mrb[0].mxu0
  %1484 = vdwg.mxu0
  %v1485 = vadd.f32 %v1378, %v1480
  %v1486 = vtanh.pop %v1485
  %v1487 = vsub.f32 %v1486, %v1221
  %v1488 = vmul.f32 %v1374, %v1487
  %v1489 = vadd.f32 %v1221, %v1488
  %1490 = vst [vmem:[#allocation2] sm:$0xff] %v1489
  %v1491 = vpack.c.bf16 %v1489, %v1489
  %s1492 = scalar_lea.vmem %s7, 12
  %1493 = vst [vmem:[%s1492] sm:$0xf] %v1491
  %v1494 = vld [vmem:[#allocation2] sm:$0xff]
  %s1495 = scalar_lea.vmem [#allocation3], 64
  %v1496 = vld [vmem:[%s1495] sm:$0xff]
  %v1497 = vld [vmem:[%s1495 + $0x8] sm:$0xff]
  %v1498 = vpack.c.bf16 %v1494, %v1494
  %v1499 = vld [vmem:[%s5] sm:$0xff]
  %v1500 = vld [vmem:[%s5 + $0x8] sm:$0xff]
  %v1501 = vld [vmem:[%s5 + $0x10] sm:$0xff]
  %v1502 = vld [vmem:[%s5 + $0x18] sm:$0xff]
  %v1503 = vld [vmem:[%s5 + $0x20] sm:$0xff]
  %v1504 = vld [vmem:[%s5 + $0x28] sm:$0xff]
  %v1505 = vld [vmem:[%s5 + $0x30] sm:$0xff]
  %v1506 = vld [vmem:[%s5 + $0x38] sm:$0xff]
  %v1507 = vld [vmem:[%s5 + $0x40] sm:$0xff]
  %v1508 = vld [vmem:[%s5 + $0x48] sm:$0xff]
  %v1509 = vld [vmem:[%s5 + $0x50] sm:$0xff]
  %v1510 = vld [vmem:[%s5 + $0x58] sm:$0xff]
  %v1511 = vld [vmem:[%s5 + $0x60] sm:$0xff]
  %v1512 = vld [vmem:[%s5 + $0x68] sm:$0xff]
  %v1513 = vld [vmem:[%s5 + $0x70] sm:$0xff]
  %v1514 = vld [vmem:[%s5 + $0x78] sm:$0xff]
  %v1531 = vunpack.c.l.b16 %v1499
  %v1532 = vunpack.c.h.b16 %v1499
  %v1533 = vunpack.c.l.b16 %v1500
  %v1534 = vunpack.c.h.b16 %v1500
  %v1535 = vunpack.c.l.b16 %v1501
  %v1536 = vunpack.c.h.b16 %v1501
  %v1537 = vunpack.c.l.b16 %v1502
  %v1538 = vunpack.c.h.b16 %v1502
  %v1539 = vunpack.c.l.b16 %v1503
  %v1540 = vunpack.c.h.b16 %v1503
  %v1541 = vunpack.c.l.b16 %v1504
  %v1542 = vunpack.c.h.b16 %v1504
  %v1543 = vunpack.c.l.b16 %v1505
  %v1544 = vunpack.c.h.b16 %v1505
  %v1545 = vunpack.c.l.b16 %v1506
  %v1546 = vunpack.c.h.b16 %v1506
  %v1547 = vunpack.c.l.b16 %v1507
  %v1548 = vunpack.c.h.b16 %v1507
  %v1549 = vunpack.c.l.b16 %v1508
  %v1550 = vunpack.c.h.b16 %v1508
  %v1551 = vunpack.c.l.b16 %v1509
  %v1552 = vunpack.c.h.b16 %v1509
  %v1553 = vunpack.c.l.b16 %v1510
  %v1554 = vunpack.c.h.b16 %v1510
  %v1555 = vunpack.c.l.b16 %v1511
  %v1556 = vunpack.c.h.b16 %v1511
  %v1557 = vunpack.c.l.b16 %v1512
  %v1558 = vunpack.c.h.b16 %v1512
  %v1559 = vunpack.c.l.b16 %v1513
  %v1560 = vunpack.c.h.b16 %v1513
  %v1561 = vunpack.c.l.b16 %v1514
  %v1562 = vunpack.c.h.b16 %v1514
  %v1563 = vpack.c.b16 %v1533, %v1531
  %v1564 = vpack.c.b16 %v1534, %v1532
  %v1565 = vpack.c.b16 %v1537, %v1535
  %v1566 = vpack.c.b16 %v1538, %v1536
  %v1567 = vpack.c.b16 %v1541, %v1539
  %v1568 = vpack.c.b16 %v1542, %v1540
  %v1569 = vpack.c.b16 %v1545, %v1543
  %v1570 = vpack.c.b16 %v1546, %v1544
  %v1571 = vpack.c.b16 %v1549, %v1547
  %v1572 = vpack.c.b16 %v1550, %v1548
  %v1573 = vpack.c.b16 %v1553, %v1551
  %v1574 = vpack.c.b16 %v1554, %v1552
  %v1575 = vpack.c.b16 %v1557, %v1555
  %v1576 = vpack.c.b16 %v1558, %v1556
  %v1577 = vpack.c.b16 %v1561, %v1559
  %v1578 = vpack.c.b16 %v1562, %v1560
  %1595 = vmatprep.subr.bf16.mxu0 %v1564
  %1596 = vmatpush1.bf16.msra.mxu0 %v1563
  %1597 = vmatprep.subr.bf16.mxu0 %v1566
  %1598 = vmatpush1.bf16.msra.mxu0 %v1565
  %1599 = vmatprep.subr.bf16.mxu0 %v1568
  %1600 = vmatpush1.bf16.msra.mxu0 %v1567
  %1601 = vmatprep.subr.bf16.mxu0 %v1570
  %1602 = vmatpush1.bf16.msra.mxu0 %v1569
  %1603 = vmatprep.subr.bf16.mxu0 %v1572
  %1604 = vmatpush1.bf16.msra.mxu0 %v1571
  %1605 = vmatprep.subr.bf16.mxu0 %v1574
  %1606 = vmatpush1.bf16.msra.mxu0 %v1573
  %1607 = vmatprep.subr.bf16.mxu0 %v1576
  %1608 = vmatpush1.bf16.msra.mxu0 %v1575
  %1609 = vmatprep.subr.bf16.mxu0 %v1578
  %1610 = vmatpush1.bf16.msra.mxu0 %v1577
  %1611 = vmatprep.subr.bf16.mxu0 0
  %1612 = vmatpush1.bf16.msra.mxu0 0
  %1613 = vmatprep.subr.bf16.mxu0 0
  %1614 = vmatpush1.bf16.msra.mxu0 0
  %1615 = vmatprep.subr.bf16.mxu0 0
  %1616 = vmatpush1.bf16.msra.mxu0 0
  %1617 = vmatprep.subr.bf16.mxu0 0
  %1618 = vmatpush1.bf16.msra.mxu0 0
  %1619 = vmatprep.subr.bf16.mxu0 0
  %1620 = vmatpush1.bf16.msra.mxu0 0
  %1621 = vmatprep.subr.bf16.mxu0 0
  %1622 = vmatpush1.bf16.msra.mxu0 0
  %1623 = vmatprep.subr.bf16.mxu0 0
  %1624 = vmatpush1.bf16.msra.mxu0 0
  %1625 = vmatprep.subr.bf16.mxu0 0
  %1626 = vmatpush1.bf16.msra.mxu0 0
  %1627 = vmatprep.mubr.bf16.mxu0 0
  %1628 = vmatmul.mubr.bf16.gmra.mrb[0].mxu0 %v1498
  %v1629 = vpop.f32.mrb[0].mxu0
  %v1630 = vadd.f32 0.0, %v1629
  %v1631 = vpop.f32.mrb[0].mxu0
  %v1632 = vadd.f32 0.0, %v1631
  %v1633 = vpop.f32.mrb[0].mxu0
  %v1634 = vpop.f32.mrb[0].mxu0
  %1635 = vdwg.mxu0
  %v1636 = vadd.f32 %v1496, %v1630
  %v1637 = vadd.f32 %v1497, %v1632
  %v1638 = vxor.u32 %v1636, 2147483648
  %v1639 = vxor.u32 %v1637, 2147483648
  %v1640 = vmul.f32 %v1638, 1.442695
  %v1641 = vpow.pop %v1640
  %v1642 = vmul.f32 %v1639, 1.442695
  %v1643 = vpow.pop %v1642
  %v1644 = vadd.f32 %v1641, 1.0
  %v1645 = vadd.f32 %v1643, 1.0
  %v1646 = vrcp.pop %v1644
  %v1647 = vmul.f32 1.0, %v1646
  %v1648 = vrcp.pop %v1645
  %v1649 = vmul.f32 1.0, %v1648
  %s1650 = scalar_lea.vmem [#allocation4], 32
  %v1651 = vld [vmem:[%s1650] sm:$0xff]
  %v1652 = vmul.f32 %v1649, %v1494
  %v1653 = vpack.c.bf16 %v1652, %v1652
  %v1654 = vld [vmem:[%s6] sm:$0xf]
  %v1655 = vld [vmem:[%s6 + $0x4] sm:$0xf]
  %v1656 = vld [vmem:[%s6 + $0x8] sm:$0xf]
  %v1657 = vld [vmem:[%s6 + $0xc] sm:$0xf]
  %v1658 = vld [vmem:[%s6 + $0x10] sm:$0xf]
  %v1659 = vld [vmem:[%s6 + $0x14] sm:$0xf]
  %v1660 = vld [vmem:[%s6 + $0x18] sm:$0xf]
  %v1661 = vld [vmem:[%s6 + $0x1c] sm:$0xf]
  %v1662 = vld [vmem:[%s6 + $0x20] sm:$0xf]
  %v1663 = vld [vmem:[%s6 + $0x24] sm:$0xf]
  %v1664 = vld [vmem:[%s6 + $0x28] sm:$0xf]
  %v1665 = vld [vmem:[%s6 + $0x2c] sm:$0xf]
  %v1666 = vld [vmem:[%s6 + $0x30] sm:$0xf]
  %v1667 = vld [vmem:[%s6 + $0x34] sm:$0xf]
  %v1668 = vld [vmem:[%s6 + $0x38] sm:$0xf]
  %v1669 = vld [vmem:[%s6 + $0x3c] sm:$0xf]
  %v1686 = vunpack.c.l.b16 %v1654
  %v1687 = vunpack.c.l.b16 %v1655
  %v1688 = vunpack.c.l.b16 %v1656
  %v1689 = vunpack.c.l.b16 %v1657
  %v1690 = vunpack.c.l.b16 %v1658
  %v1691 = vunpack.c.l.b16 %v1659
  %v1692 = vunpack.c.l.b16 %v1660
  %v1693 = vunpack.c.l.b16 %v1661
  %v1694 = vunpack.c.l.b16 %v1662
  %v1695 = vunpack.c.l.b16 %v1663
  %v1696 = vunpack.c.l.b16 %v1664
  %v1697 = vunpack.c.l.b16 %v1665
  %v1698 = vunpack.c.l.b16 %v1666
  %v1699 = vunpack.c.l.b16 %v1667
  %v1700 = vunpack.c.l.b16 %v1668
  %v1701 = vunpack.c.l.b16 %v1669
  %v1702 = vpack.c.b16 %v1687, %v1686
  %v1703 = vpack.c.b16 %v1689, %v1688
  %v1704 = vpack.c.b16 %v1691, %v1690
  %v1705 = vpack.c.b16 %v1693, %v1692
  %v1706 = vpack.c.b16 %v1695, %v1694
  %v1707 = vpack.c.b16 %v1697, %v1696
  %v1708 = vpack.c.b16 %v1699, %v1698
  %v1709 = vpack.c.b16 %v1701, %v1700
  %1718 = vmatprep.subr.bf16.mxu0 0
  %1719 = vmatpush1.bf16.msra.mxu0 %v1702
  %1720 = vmatprep.subr.bf16.mxu0 0
  %1721 = vmatpush1.bf16.msra.mxu0 %v1703
  %1722 = vmatprep.subr.bf16.mxu0 0
  %1723 = vmatpush1.bf16.msra.mxu0 %v1704
  %1724 = vmatprep.subr.bf16.mxu0 0
  %1725 = vmatpush1.bf16.msra.mxu0 %v1705
  %1726 = vmatprep.subr.bf16.mxu0 0
  %1727 = vmatpush1.bf16.msra.mxu0 %v1706
  %1728 = vmatprep.subr.bf16.mxu0 0
  %1729 = vmatpush1.bf16.msra.mxu0 %v1707
  %1730 = vmatprep.subr.bf16.mxu0 0
  %1731 = vmatpush1.bf16.msra.mxu0 %v1708
  %1732 = vmatprep.subr.bf16.mxu0 0
  %1733 = vmatpush1.bf16.msra.mxu0 %v1709
  %1734 = vmatprep.subr.bf16.mxu0 0
  %1735 = vmatpush1.bf16.msra.mxu0 0
  %1736 = vmatprep.subr.bf16.mxu0 0
  %1737 = vmatpush1.bf16.msra.mxu0 0
  %1738 = vmatprep.subr.bf16.mxu0 0
  %1739 = vmatpush1.bf16.msra.mxu0 0
  %1740 = vmatprep.subr.bf16.mxu0 0
  %1741 = vmatpush1.bf16.msra.mxu0 0
  %1742 = vmatprep.subr.bf16.mxu0 0
  %1743 = vmatpush1.bf16.msra.mxu0 0
  %1744 = vmatprep.subr.bf16.mxu0 0
  %1745 = vmatpush1.bf16.msra.mxu0 0
  %1746 = vmatprep.subr.bf16.mxu0 0
  %1747 = vmatpush1.bf16.msra.mxu0 0
  %1748 = vmatprep.subr.bf16.mxu0 0
  %1749 = vmatpush1.bf16.msra.mxu0 0
  %1750 = vmatprep.mubr.bf16.mxu0 0
  %1751 = vmatmul.mubr.bf16.gmra.mrb[0].mxu0 %v1653
  %v1752 = vpop.f32.mrb[0].mxu0
  %v1753 = vadd.f32 0.0, %v1752
  %v1754 = vpop.f32.mrb[0].mxu0
  %v1755 = vpop.f32.mrb[0].mxu0
  %v1756 = vpop.f32.mrb[0].mxu0
  %1757 = vdwg.mxu0
  %v1758 = vadd.f32 %v1651, %v1753
  %v1759 = vtanh.pop %v1758
  %v1760 = vsub.f32 %v1759, %v1494
  %v1761 = vmul.f32 %v1647, %v1760
  %v1762 = vadd.f32 %v1494, %v1761
  %1763 = vst [vmem:[#allocation2] sm:$0xff] %v1762
  %v1764 = vpack.c.bf16 %v1762, %v1762
  %s1765 = scalar_lea.vmem %s7, 16
  %1766 = vst [vmem:[%s1765] sm:$0xf] %v1764
  %v1767 = vld [vmem:[#allocation2] sm:$0xff]
  %s1768 = scalar_lea.vmem [#allocation3], 80
  %v1769 = vld [vmem:[%s1768] sm:$0xff]
  %v1770 = vld [vmem:[%s1768 + $0x8] sm:$0xff]
  %v1771 = vpack.c.bf16 %v1767, %v1767
  %v1772 = vld [vmem:[%s5] sm:$0xff]
  %v1773 = vld [vmem:[%s5 + $0x8] sm:$0xff]
  %v1774 = vld [vmem:[%s5 + $0x10] sm:$0xff]
  %v1775 = vld [vmem:[%s5 + $0x18] sm:$0xff]
  %v1776 = vld [vmem:[%s5 + $0x20] sm:$0xff]
  %v1777 = vld [vmem:[%s5 + $0x28] sm:$0xff]
  %v1778 = vld [vmem:[%s5 + $0x30] sm:$0xff]
  %v1779 = vld [vmem:[%s5 + $0x38] sm:$0xff]
  %v1780 = vld [vmem:[%s5 + $0x40] sm:$0xff]
  %v1781 = vld [vmem:[%s5 + $0x48] sm:$0xff]
  %v1782 = vld [vmem:[%s5 + $0x50] sm:$0xff]
  %v1783 = vld [vmem:[%s5 + $0x58] sm:$0xff]
  %v1784 = vld [vmem:[%s5 + $0x60] sm:$0xff]
  %v1785 = vld [vmem:[%s5 + $0x68] sm:$0xff]
  %v1786 = vld [vmem:[%s5 + $0x70] sm:$0xff]
  %v1787 = vld [vmem:[%s5 + $0x78] sm:$0xff]
  %v1804 = vunpack.c.l.b16 %v1772
  %v1805 = vunpack.c.h.b16 %v1772
  %v1806 = vunpack.c.l.b16 %v1773
  %v1807 = vunpack.c.h.b16 %v1773
  %v1808 = vunpack.c.l.b16 %v1774
  %v1809 = vunpack.c.h.b16 %v1774
  %v1810 = vunpack.c.l.b16 %v1775
  %v1811 = vunpack.c.h.b16 %v1775
  %v1812 = vunpack.c.l.b16 %v1776
  %v1813 = vunpack.c.h.b16 %v1776
  %v1814 = vunpack.c.l.b16 %v1777
  %v1815 = vunpack.c.h.b16 %v1777
  %v1816 = vunpack.c.l.b16 %v1778
  %v1817 = vunpack.c.h.b16 %v1778
  %v1818 = vunpack.c.l.b16 %v1779
  %v1819 = vunpack.c.h.b16 %v1779
  %v1820 = vunpack.c.l.b16 %v1780
  %v1821 = vunpack.c.h.b16 %v1780
  %v1822 = vunpack.c.l.b16 %v1781
  %v1823 = vunpack.c.h.b16 %v1781
  %v1824 = vunpack.c.l.b16 %v1782
  %v1825 = vunpack.c.h.b16 %v1782
  %v1826 = vunpack.c.l.b16 %v1783
  %v1827 = vunpack.c.h.b16 %v1783
  %v1828 = vunpack.c.l.b16 %v1784
  %v1829 = vunpack.c.h.b16 %v1784
  %v1830 = vunpack.c.l.b16 %v1785
  %v1831 = vunpack.c.h.b16 %v1785
  %v1832 = vunpack.c.l.b16 %v1786
  %v1833 = vunpack.c.h.b16 %v1786
  %v1834 = vunpack.c.l.b16 %v1787
  %v1835 = vunpack.c.h.b16 %v1787
  %v1836 = vpack.c.b16 %v1806, %v1804
  %v1837 = vpack.c.b16 %v1807, %v1805
  %v1838 = vpack.c.b16 %v1810, %v1808
  %v1839 = vpack.c.b16 %v1811, %v1809
  %v1840 = vpack.c.b16 %v1814, %v1812
  %v1841 = vpack.c.b16 %v1815, %v1813
  %v1842 = vpack.c.b16 %v1818, %v1816
  %v1843 = vpack.c.b16 %v1819, %v1817
  %v1844 = vpack.c.b16 %v1822, %v1820
  %v1845 = vpack.c.b16 %v1823, %v1821
  %v1846 = vpack.c.b16 %v1826, %v1824
  %v1847 = vpack.c.b16 %v1827, %v1825
  %v1848 = vpack.c.b16 %v1830, %v1828
  %v1849 = vpack.c.b16 %v1831, %v1829
  %v1850 = vpack.c.b16 %v1834, %v1832
  %v1851 = vpack.c.b16 %v1835, %v1833
  %1868 = vmatprep.subr.bf16.mxu0 %v1837
  %1869 = vmatpush1.bf16.msra.mxu0 %v1836
  %1870 = vmatprep.subr.bf16.mxu0 %v1839
  %1871 = vmatpush1.bf16.msra.mxu0 %v1838
  %1872 = vmatprep.subr.bf16.mxu0 %v1841
  %1873 = vmatpush1.bf16.msra.mxu0 %v1840
  %1874 = vmatprep.subr.bf16.mxu0 %v1843
  %1875 = vmatpush1.bf16.msra.mxu0 %v1842
  %1876 = vmatprep.subr.bf16.mxu0 %v1845
  %1877 = vmatpush1.bf16.msra.mxu0 %v1844
  %1878 = vmatprep.subr.bf16.mxu0 %v1847
  %1879 = vmatpush1.bf16.msra.mxu0 %v1846
  %1880 = vmatprep.subr.bf16.mxu0 %v1849
  %1881 = vmatpush1.bf16.msra.mxu0 %v1848
  %1882 = vmatprep.subr.bf16.mxu0 %v1851
  %1883 = vmatpush1.bf16.msra.mxu0 %v1850
  %1884 = vmatprep.subr.bf16.mxu0 0
  %1885 = vmatpush1.bf16.msra.mxu0 0
  %1886 = vmatprep.subr.bf16.mxu0 0
  %1887 = vmatpush1.bf16.msra.mxu0 0
  %1888 = vmatprep.subr.bf16.mxu0 0
  %1889 = vmatpush1.bf16.msra.mxu0 0
  %1890 = vmatprep.subr.bf16.mxu0 0
  %1891 = vmatpush1.bf16.msra.mxu0 0
  %1892 = vmatprep.subr.bf16.mxu0 0
  %1893 = vmatpush1.bf16.msra.mxu0 0
  %1894 = vmatprep.subr.bf16.mxu0 0
  %1895 = vmatpush1.bf16.msra.mxu0 0
  %1896 = vmatprep.subr.bf16.mxu0 0
  %1897 = vmatpush1.bf16.msra.mxu0 0
  %1898 = vmatprep.subr.bf16.mxu0 0
  %1899 = vmatpush1.bf16.msra.mxu0 0
  %1900 = vmatprep.mubr.bf16.mxu0 0
  %1901 = vmatmul.mubr.bf16.gmra.mrb[0].mxu0 %v1771
  %v1902 = vpop.f32.mrb[0].mxu0
  %v1903 = vadd.f32 0.0, %v1902
  %v1904 = vpop.f32.mrb[0].mxu0
  %v1905 = vadd.f32 0.0, %v1904
  %v1906 = vpop.f32.mrb[0].mxu0
  %v1907 = vpop.f32.mrb[0].mxu0
  %1908 = vdwg.mxu0
  %v1909 = vadd.f32 %v1769, %v1903
  %v1910 = vadd.f32 %v1770, %v1905
  %v1911 = vxor.u32 %v1909, 2147483648
  %v1912 = vxor.u32 %v1910, 2147483648
  %v1913 = vmul.f32 %v1911, 1.442695
  %v1914 = vpow.pop %v1913
  %v1915 = vmul.f32 %v1912, 1.442695
  %v1916 = vpow.pop %v1915
  %v1917 = vadd.f32 %v1914, 1.0
  %v1918 = vadd.f32 %v1916, 1.0
  %v1919 = vrcp.pop %v1917
  %v1920 = vmul.f32 1.0, %v1919
  %v1921 = vrcp.pop %v1918
  %v1922 = vmul.f32 1.0, %v1921
  %s1923 = scalar_lea.vmem [#allocation4], 40
  %v1924 = vld [vmem:[%s1923] sm:$0xff]
  %v1925 = vmul.f32 %v1922, %v1767
  %v1926 = vpack.c.bf16 %v1925, %v1925
  %v1927 = vld [vmem:[%s6] sm:$0xf]
  %v1928 = vld [vmem:[%s6 + $0x4] sm:$0xf]
  %v1929 = vld [vmem:[%s6 + $0x8] sm:$0xf]
  %v1930 = vld [vmem:[%s6 + $0xc] sm:$0xf]
  %v1931 = vld [vmem:[%s6 + $0x10] sm:$0xf]
  %v1932 = vld [vmem:[%s6 + $0x14] sm:$0xf]
  %v1933 = vld [vmem:[%s6 + $0x18] sm:$0xf]
  %v1934 = vld [vmem:[%s6 + $0x1c] sm:$0xf]
  %v1935 = vld [vmem:[%s6 + $0x20] sm:$0xf]
  %v1936 = vld [vmem:[%s6 + $0x24] sm:$0xf]
  %v1937 = vld [vmem:[%s6 + $0x28] sm:$0xf]
  %v1938 = vld [vmem:[%s6 + $0x2c] sm:$0xf]
  %v1939 = vld [vmem:[%s6 + $0x30] sm:$0xf]
  %v1940 = vld [vmem:[%s6 + $0x34] sm:$0xf]
  %v1941 = vld [vmem:[%s6 + $0x38] sm:$0xf]
  %v1942 = vld [vmem:[%s6 + $0x3c] sm:$0xf]
  %v1959 = vunpack.c.l.b16 %v1927
  %v1960 = vunpack.c.l.b16 %v1928
  %v1961 = vunpack.c.l.b16 %v1929
  %v1962 = vunpack.c.l.b16 %v1930
  %v1963 = vunpack.c.l.b16 %v1931
  %v1964 = vunpack.c.l.b16 %v1932
  %v1965 = vunpack.c.l.b16 %v1933
  %v1966 = vunpack.c.l.b16 %v1934
  %v1967 = vunpack.c.l.b16 %v1935
  %v1968 = vunpack.c.l.b16 %v1936
  %v1969 = vunpack.c.l.b16 %v1937
  %v1970 = vunpack.c.l.b16 %v1938
  %v1971 = vunpack.c.l.b16 %v1939
  %v1972 = vunpack.c.l.b16 %v1940
  %v1973 = vunpack.c.l.b16 %v1941
  %v1974 = vunpack.c.l.b16 %v1942
  %v1975 = vpack.c.b16 %v1960, %v1959
  %v1976 = vpack.c.b16 %v1962, %v1961
  %v1977 = vpack.c.b16 %v1964, %v1963
  %v1978 = vpack.c.b16 %v1966, %v1965
  %v1979 = vpack.c.b16 %v1968, %v1967
  %v1980 = vpack.c.b16 %v1970, %v1969
  %v1981 = vpack.c.b16 %v1972, %v1971
  %v1982 = vpack.c.b16 %v1974, %v1973
  %1991 = vmatprep.subr.bf16.mxu0 0
  %1992 = vmatpush1.bf16.msra.mxu0 %v1975
  %1993 = vmatprep.subr.bf16.mxu0 0
  %1994 = vmatpush1.bf16.msra.mxu0 %v1976
  %1995 = vmatprep.subr.bf16.mxu0 0
  %1996 = vmatpush1.bf16.msra.mxu0 %v1977
  %1997 = vmatprep.subr.bf16.mxu0 0
  %1998 = vmatpush1.bf16.msra.mxu0 %v1978
  %1999 = vmatprep.subr.bf16.mxu0 0
  %2000 = vmatpush1.bf16.msra.mxu0 %v1979
  %2001 = vmatprep.subr.bf16.mxu0 0
  %2002 = vmatpush1.bf16.msra.mxu0 %v1980
  %2003 = vmatprep.subr.bf16.mxu0 0
  %2004 = vmatpush1.bf16.msra.mxu0 %v1981
  %2005 = vmatprep.subr.bf16.mxu0 0
  %2006 = vmatpush1.bf16.msra.mxu0 %v1982
  %2007 = vmatprep.subr.bf16.mxu0 0
  %2008 = vmatpush1.bf16.msra.mxu0 0
  %2009 = vmatprep.subr.bf16.mxu0 0
  %2010 = vmatpush1.bf16.msra.mxu0 0
  %2011 = vmatprep.subr.bf16.mxu0 0
  %2012 = vmatpush1.bf16.msra.mxu0 0
  %2013 = vmatprep.subr.bf16.mxu0 0
  %2014 = vmatpush1.bf16.msra.mxu0 0
  %2015 = vmatprep.subr.bf16.mxu0 0
  %2016 = vmatpush1.bf16.msra.mxu0 0
  %2017 = vmatprep.subr.bf16.mxu0 0
  %2018 = vmatpush1.bf16.msra.mxu0 0
  %2019 = vmatprep.subr.bf16.mxu0 0
  %2020 = vmatpush1.bf16.msra.mxu0 0
  %2021 = vmatprep.subr.bf16.mxu0 0
  %2022 = vmatpush1.bf16.msra.mxu0 0
  %2023 = vmatprep.mubr.bf16.mxu0 0
  %2024 = vmatmul.mubr.bf16.gmra.mrb[0].mxu0 %v1926
  %v2025 = vpop.f32.mrb[0].mxu0
  %v2026 = vadd.f32 0.0, %v2025
  %v2027 = vpop.f32.mrb[0].mxu0
  %v2028 = vpop.f32.mrb[0].mxu0
  %v2029 = vpop.f32.mrb[0].mxu0
  %2030 = vdwg.mxu0
  %v2031 = vadd.f32 %v1924, %v2026
  %v2032 = vtanh.pop %v2031
  %v2033 = vsub.f32 %v2032, %v1767
  %v2034 = vmul.f32 %v1920, %v2033
  %v2035 = vadd.f32 %v1767, %v2034
  %2036 = vst [vmem:[#allocation2] sm:$0xff] %v2035
  %v2037 = vpack.c.bf16 %v2035, %v2035
  %s2038 = scalar_lea.vmem %s7, 20
  %2039 = vst [vmem:[%s2038] sm:$0xf] %v2037
  %v2040 = vld [vmem:[#allocation2] sm:$0xff]
  %s2041 = scalar_lea.vmem [#allocation3], 96
  %v2042 = vld [vmem:[%s2041] sm:$0xff]
  %v2043 = vld [vmem:[%s2041 + $0x8] sm:$0xff]
  %v2044 = vpack.c.bf16 %v2040, %v2040
  %v2045 = vld [vmem:[%s5] sm:$0xff]
  %v2046 = vld [vmem:[%s5 + $0x8] sm:$0xff]
  %v2047 = vld [vmem:[%s5 + $0x10] sm:$0xff]
  %v2048 = vld [vmem:[%s5 + $0x18] sm:$0xff]
  %v2049 = vld [vmem:[%s5 + $0x20] sm:$0xff]
  %v2050 = vld [vmem:[%s5 + $0x28] sm:$0xff]
  %v2051 = vld [vmem:[%s5 + $0x30] sm:$0xff]
  %v2052 = vld [vmem:[%s5 + $0x38] sm:$0xff]
  %v2053 = vld [vmem:[%s5 + $0x40] sm:$0xff]
  %v2054 = vld [vmem:[%s5 + $0x48] sm:$0xff]
  %v2055 = vld [vmem:[%s5 + $0x50] sm:$0xff]
  %v2056 = vld [vmem:[%s5 + $0x58] sm:$0xff]
  %v2057 = vld [vmem:[%s5 + $0x60] sm:$0xff]
  %v2058 = vld [vmem:[%s5 + $0x68] sm:$0xff]
  %v2059 = vld [vmem:[%s5 + $0x70] sm:$0xff]
  %v2060 = vld [vmem:[%s5 + $0x78] sm:$0xff]
  %v2077 = vunpack.c.l.b16 %v2045
  %v2078 = vunpack.c.h.b16 %v2045
  %v2079 = vunpack.c.l.b16 %v2046
  %v2080 = vunpack.c.h.b16 %v2046
  %v2081 = vunpack.c.l.b16 %v2047
  %v2082 = vunpack.c.h.b16 %v2047
  %v2083 = vunpack.c.l.b16 %v2048
  %v2084 = vunpack.c.h.b16 %v2048
  %v2085 = vunpack.c.l.b16 %v2049
  %v2086 = vunpack.c.h.b16 %v2049
  %v2087 = vunpack.c.l.b16 %v2050
  %v2088 = vunpack.c.h.b16 %v2050
  %v2089 = vunpack.c.l.b16 %v2051
  %v2090 = vunpack.c.h.b16 %v2051
  %v2091 = vunpack.c.l.b16 %v2052
  %v2092 = vunpack.c.h.b16 %v2052
  %v2093 = vunpack.c.l.b16 %v2053
  %v2094 = vunpack.c.h.b16 %v2053
  %v2095 = vunpack.c.l.b16 %v2054
  %v2096 = vunpack.c.h.b16 %v2054
  %v2097 = vunpack.c.l.b16 %v2055
  %v2098 = vunpack.c.h.b16 %v2055
  %v2099 = vunpack.c.l.b16 %v2056
  %v2100 = vunpack.c.h.b16 %v2056
  %v2101 = vunpack.c.l.b16 %v2057
  %v2102 = vunpack.c.h.b16 %v2057
  %v2103 = vunpack.c.l.b16 %v2058
  %v2104 = vunpack.c.h.b16 %v2058
  %v2105 = vunpack.c.l.b16 %v2059
  %v2106 = vunpack.c.h.b16 %v2059
  %v2107 = vunpack.c.l.b16 %v2060
  %v2108 = vunpack.c.h.b16 %v2060
  %v2109 = vpack.c.b16 %v2079, %v2077
  %v2110 = vpack.c.b16 %v2080, %v2078
  %v2111 = vpack.c.b16 %v2083, %v2081
  %v2112 = vpack.c.b16 %v2084, %v2082
  %v2113 = vpack.c.b16 %v2087, %v2085
  %v2114 = vpack.c.b16 %v2088, %v2086
  %v2115 = vpack.c.b16 %v2091, %v2089
  %v2116 = vpack.c.b16 %v2092, %v2090
  %v2117 = vpack.c.b16 %v2095, %v2093
  %v2118 = vpack.c.b16 %v2096, %v2094
  %v2119 = vpack.c.b16 %v2099, %v2097
  %v2120 = vpack.c.b16 %v2100, %v2098
  %v2121 = vpack.c.b16 %v2103, %v2101
  %v2122 = vpack.c.b16 %v2104, %v2102
  %v2123 = vpack.c.b16 %v2107, %v2105
  %v2124 = vpack.c.b16 %v2108, %v2106
  %2141 = vmatprep.subr.bf16.mxu0 %v2110
  %2142 = vmatpush1.bf16.msra.mxu0 %v2109
  %2143 = vmatprep.subr.bf16.mxu0 %v2112
  %2144 = vmatpush1.bf16.msra.mxu0 %v2111
  %2145 = vmatprep.subr.bf16.mxu0 %v2114
  %2146 = vmatpush1.bf16.msra.mxu0 %v2113
  %2147 = vmatprep.subr.bf16.mxu0 %v2116
  %2148 = vmatpush1.bf16.msra.mxu0 %v2115
  %2149 = vmatprep.subr.bf16.mxu0 %v2118
  %2150 = vmatpush1.bf16.msra.mxu0 %v2117
  %2151 = vmatprep.subr.bf16.mxu0 %v2120
  %2152 = vmatpush1.bf16.msra.mxu0 %v2119
  %2153 = vmatprep.subr.bf16.mxu0 %v2122
  %2154 = vmatpush1.bf16.msra.mxu0 %v2121
  %2155 = vmatprep.subr.bf16.mxu0 %v2124
  %2156 = vmatpush1.bf16.msra.mxu0 %v2123
  %2157 = vmatprep.subr.bf16.mxu0 0
  %2158 = vmatpush1.bf16.msra.mxu0 0
  %2159 = vmatprep.subr.bf16.mxu0 0
  %2160 = vmatpush1.bf16.msra.mxu0 0
  %2161 = vmatprep.subr.bf16.mxu0 0
  %2162 = vmatpush1.bf16.msra.mxu0 0
  %2163 = vmatprep.subr.bf16.mxu0 0
  %2164 = vmatpush1.bf16.msra.mxu0 0
  %2165 = vmatprep.subr.bf16.mxu0 0
  %2166 = vmatpush1.bf16.msra.mxu0 0
  %2167 = vmatprep.subr.bf16.mxu0 0
  %2168 = vmatpush1.bf16.msra.mxu0 0
  %2169 = vmatprep.subr.bf16.mxu0 0
  %2170 = vmatpush1.bf16.msra.mxu0 0
  %2171 = vmatprep.subr.bf16.mxu0 0
  %2172 = vmatpush1.bf16.msra.mxu0 0
  %2173 = vmatprep.mubr.bf16.mxu0 0
  %2174 = vmatmul.mubr.bf16.gmra.mrb[0].mxu0 %v2044
  %v2175 = vpop.f32.mrb[0].mxu0
  %v2176 = vadd.f32 0.0, %v2175
  %v2177 = vpop.f32.mrb[0].mxu0
  %v2178 = vadd.f32 0.0, %v2177
  %v2179 = vpop.f32.mrb[0].mxu0
  %v2180 = vpop.f32.mrb[0].mxu0
  %2181 = vdwg.mxu0
  %v2182 = vadd.f32 %v2042, %v2176
  %v2183 = vadd.f32 %v2043, %v2178
  %v2184 = vxor.u32 %v2182, 2147483648
  %v2185 = vxor.u32 %v2183, 2147483648
  %v2186 = vmul.f32 %v2184, 1.442695
  %v2187 = vpow.pop %v2186
  %v2188 = vmul.f32 %v2185, 1.442695
  %v2189 = vpow.pop %v2188
  %v2190 = vadd.f32 %v2187, 1.0
  %v2191 = vadd.f32 %v2189, 1.0
  %v2192 = vrcp.pop %v2190
  %v2193 = vmul.f32 1.0, %v2192
  %v2194 = vrcp.pop %v2191
  %v2195 = vmul.f32 1.0, %v2194
  %s2196 = scalar_lea.vmem [#allocation4], 48
  %v2197 = vld [vmem:[%s2196] sm:$0xff]
  %v2198 = vmul.f32 %v2195, %v2040
  %v2199 = vpack.c.bf16 %v2198, %v2198
  %v2200 = vld [vmem:[%s6] sm:$0xf]
  %v2201 = vld [vmem:[%s6 + $0x4] sm:$0xf]
  %v2202 = vld [vmem:[%s6 + $0x8] sm:$0xf]
  %v2203 = vld [vmem:[%s6 + $0xc] sm:$0xf]
  %v2204 = vld [vmem:[%s6 + $0x10] sm:$0xf]
  %v2205 = vld [vmem:[%s6 + $0x14] sm:$0xf]
  %v2206 = vld [vmem:[%s6 + $0x18] sm:$0xf]
  %v2207 = vld [vmem:[%s6 + $0x1c] sm:$0xf]
  %v2208 = vld [vmem:[%s6 + $0x20] sm:$0xf]
  %v2209 = vld [vmem:[%s6 + $0x24] sm:$0xf]
  %v2210 = vld [vmem:[%s6 + $0x28] sm:$0xf]
  %v2211 = vld [vmem:[%s6 + $0x2c] sm:$0xf]
  %v2212 = vld [vmem:[%s6 + $0x30] sm:$0xf]
  %v2213 = vld [vmem:[%s6 + $0x34] sm:$0xf]
  %v2214 = vld [vmem:[%s6 + $0x38] sm:$0xf]
  %v2215 = vld [vmem:[%s6 + $0x3c] sm:$0xf]
  %v2232 = vunpack.c.l.b16 %v2200
  %v2233 = vunpack.c.l.b16 %v2201
  %v2234 = vunpack.c.l.b16 %v2202
  %v2235 = vunpack.c.l.b16 %v2203
  %v2236 = vunpack.c.l.b16 %v2204
  %v2237 = vunpack.c.l.b16 %v2205
  %v2238 = vunpack.c.l.b16 %v2206
  %v2239 = vunpack.c.l.b16 %v2207
  %v2240 = vunpack.c.l.b16 %v2208
  %v2241 = vunpack.c.l.b16 %v2209
  %v2242 = vunpack.c.l.b16 %v2210
  %v2243 = vunpack.c.l.b16 %v2211
  %v2244 = vunpack.c.l.b16 %v2212
  %v2245 = vunpack.c.l.b16 %v2213
  %v2246 = vunpack.c.l.b16 %v2214
  %v2247 = vunpack.c.l.b16 %v2215
  %v2248 = vpack.c.b16 %v2233, %v2232
  %v2249 = vpack.c.b16 %v2235, %v2234
  %v2250 = vpack.c.b16 %v2237, %v2236
  %v2251 = vpack.c.b16 %v2239, %v2238
  %v2252 = vpack.c.b16 %v2241, %v2240
  %v2253 = vpack.c.b16 %v2243, %v2242
  %v2254 = vpack.c.b16 %v2245, %v2244
  %v2255 = vpack.c.b16 %v2247, %v2246
  %2264 = vmatprep.subr.bf16.mxu0 0
  %2265 = vmatpush1.bf16.msra.mxu0 %v2248
  %2266 = vmatprep.subr.bf16.mxu0 0
  %2267 = vmatpush1.bf16.msra.mxu0 %v2249
  %2268 = vmatprep.subr.bf16.mxu0 0
  %2269 = vmatpush1.bf16.msra.mxu0 %v2250
  %2270 = vmatprep.subr.bf16.mxu0 0
  %2271 = vmatpush1.bf16.msra.mxu0 %v2251
  %2272 = vmatprep.subr.bf16.mxu0 0
  %2273 = vmatpush1.bf16.msra.mxu0 %v2252
  %2274 = vmatprep.subr.bf16.mxu0 0
  %2275 = vmatpush1.bf16.msra.mxu0 %v2253
  %2276 = vmatprep.subr.bf16.mxu0 0
  %2277 = vmatpush1.bf16.msra.mxu0 %v2254
  %2278 = vmatprep.subr.bf16.mxu0 0
  %2279 = vmatpush1.bf16.msra.mxu0 %v2255
  %2280 = vmatprep.subr.bf16.mxu0 0
  %2281 = vmatpush1.bf16.msra.mxu0 0
  %2282 = vmatprep.subr.bf16.mxu0 0
  %2283 = vmatpush1.bf16.msra.mxu0 0
  %2284 = vmatprep.subr.bf16.mxu0 0
  %2285 = vmatpush1.bf16.msra.mxu0 0
  %2286 = vmatprep.subr.bf16.mxu0 0
  %2287 = vmatpush1.bf16.msra.mxu0 0
  %2288 = vmatprep.subr.bf16.mxu0 0
  %2289 = vmatpush1.bf16.msra.mxu0 0
  %2290 = vmatprep.subr.bf16.mxu0 0
  %2291 = vmatpush1.bf16.msra.mxu0 0
  %2292 = vmatprep.subr.bf16.mxu0 0
  %2293 = vmatpush1.bf16.msra.mxu0 0
  %2294 = vmatprep.subr.bf16.mxu0 0
  %2295 = vmatpush1.bf16.msra.mxu0 0
  %2296 = vmatprep.mubr.bf16.mxu0 0
  %2297 = vmatmul.mubr.bf16.gmra.mrb[0].mxu0 %v2199
  %v2298 = vpop.f32.mrb[0].mxu0
  %v2299 = vadd.f32 0.0, %v2298
  %v2300 = vpop.f32.mrb[0].mxu0
  %v2301 = vpop.f32.mrb[0].mxu0
  %v2302 = vpop.f32.mrb[0].mxu0
  %2303 = vdwg.mxu0
  %v2304 = vadd.f32 %v2197, %v2299
  %v2305 = vtanh.pop %v2304
  %v2306 = vsub.f32 %v2305, %v2040
  %v2307 = vmul.f32 %v2193, %v2306
  %v2308 = vadd.f32 %v2040, %v2307
  %2309 = vst [vmem:[#allocation2] sm:$0xff] %v2308
  %v2310 = vpack.c.bf16 %v2308, %v2308
  %s2311 = scalar_lea.vmem %s7, 24
  %2312 = vst [vmem:[%s2311] sm:$0xf] %v2310
  %v2313 = vld [vmem:[#allocation2] sm:$0xff]
  %s2314 = scalar_lea.vmem [#allocation3], 112
  %v2315 = vld [vmem:[%s2314] sm:$0xff]
  %v2316 = vld [vmem:[%s2314 + $0x8] sm:$0xff]
  %v2317 = vpack.c.bf16 %v2313, %v2313
  %v2318 = vld [vmem:[%s5] sm:$0xff]
  %v2319 = vld [vmem:[%s5 + $0x8] sm:$0xff]
  %v2320 = vld [vmem:[%s5 + $0x10] sm:$0xff]
  %v2321 = vld [vmem:[%s5 + $0x18] sm:$0xff]
  %v2322 = vld [vmem:[%s5 + $0x20] sm:$0xff]
  %v2323 = vld [vmem:[%s5 + $0x28] sm:$0xff]
  %v2324 = vld [vmem:[%s5 + $0x30] sm:$0xff]
  %v2325 = vld [vmem:[%s5 + $0x38] sm:$0xff]
  %v2326 = vld [vmem:[%s5 + $0x40] sm:$0xff]
  %v2327 = vld [vmem:[%s5 + $0x48] sm:$0xff]
  %v2328 = vld [vmem:[%s5 + $0x50] sm:$0xff]
  %v2329 = vld [vmem:[%s5 + $0x58] sm:$0xff]
  %v2330 = vld [vmem:[%s5 + $0x60] sm:$0xff]
  %v2331 = vld [vmem:[%s5 + $0x68] sm:$0xff]
  %v2332 = vld [vmem:[%s5 + $0x70] sm:$0xff]
  %v2333 = vld [vmem:[%s5 + $0x78] sm:$0xff]
  %v2350 = vunpack.c.l.b16 %v2318
  %v2351 = vunpack.c.h.b16 %v2318
  %v2352 = vunpack.c.l.b16 %v2319
  %v2353 = vunpack.c.h.b16 %v2319
  %v2354 = vunpack.c.l.b16 %v2320
  %v2355 = vunpack.c.h.b16 %v2320
  %v2356 = vunpack.c.l.b16 %v2321
  %v2357 = vunpack.c.h.b16 %v2321
  %v2358 = vunpack.c.l.b16 %v2322
  %v2359 = vunpack.c.h.b16 %v2322
  %v2360 = vunpack.c.l.b16 %v2323
  %v2361 = vunpack.c.h.b16 %v2323
  %v2362 = vunpack.c.l.b16 %v2324
  %v2363 = vunpack.c.h.b16 %v2324
  %v2364 = vunpack.c.l.b16 %v2325
  %v2365 = vunpack.c.h.b16 %v2325
  %v2366 = vunpack.c.l.b16 %v2326
  %v2367 = vunpack.c.h.b16 %v2326
  %v2368 = vunpack.c.l.b16 %v2327
  %v2369 = vunpack.c.h.b16 %v2327
  %v2370 = vunpack.c.l.b16 %v2328
  %v2371 = vunpack.c.h.b16 %v2328
  %v2372 = vunpack.c.l.b16 %v2329
  %v2373 = vunpack.c.h.b16 %v2329
  %v2374 = vunpack.c.l.b16 %v2330
  %v2375 = vunpack.c.h.b16 %v2330
  %v2376 = vunpack.c.l.b16 %v2331
  %v2377 = vunpack.c.h.b16 %v2331
  %v2378 = vunpack.c.l.b16 %v2332
  %v2379 = vunpack.c.h.b16 %v2332
  %v2380 = vunpack.c.l.b16 %v2333
  %v2381 = vunpack.c.h.b16 %v2333
  %v2382 = vpack.c.b16 %v2352, %v2350
  %v2383 = vpack.c.b16 %v2353, %v2351
  %v2384 = vpack.c.b16 %v2356, %v2354
  %v2385 = vpack.c.b16 %v2357, %v2355
  %v2386 = vpack.c.b16 %v2360, %v2358
  %v2387 = vpack.c.b16 %v2361, %v2359
  %v2388 = vpack.c.b16 %v2364, %v2362
  %v2389 = vpack.c.b16 %v2365, %v2363
  %v2390 = vpack.c.b16 %v2368, %v2366
  %v2391 = vpack.c.b16 %v2369, %v2367
  %v2392 = vpack.c.b16 %v2372, %v2370
  %v2393 = vpack.c.b16 %v2373, %v2371
  %v2394 = vpack.c.b16 %v2376, %v2374
  %v2395 = vpack.c.b16 %v2377, %v2375
  %v2396 = vpack.c.b16 %v2380, %v2378
  %v2397 = vpack.c.b16 %v2381, %v2379
  %2414 = vmatprep.subr.bf16.mxu0 %v2383
  %2415 = vmatpush1.bf16.msra.mxu0 %v2382
  %2416 = vmatprep.subr.bf16.mxu0 %v2385
  %2417 = vmatpush1.bf16.msra.mxu0 %v2384
  %2418 = vmatprep.subr.bf16.mxu0 %v2387
  %2419 = vmatpush1.bf16.msra.mxu0 %v2386
  %2420 = vmatprep.subr.bf16.mxu0 %v2389
  %2421 = vmatpush1.bf16.msra.mxu0 %v2388
  %2422 = vmatprep.subr.bf16.mxu0 %v2391
  %2423 = vmatpush1.bf16.msra.mxu0 %v2390
  %2424 = vmatprep.subr.bf16.mxu0 %v2393
  %2425 = vmatpush1.bf16.msra.mxu0 %v2392
  %2426 = vmatprep.subr.bf16.mxu0 %v2395
  %2427 = vmatpush1.bf16.msra.mxu0 %v2394
  %2428 = vmatprep.subr.bf16.mxu0 %v2397
  %2429 = vmatpush1.bf16.msra.mxu0 %v2396
  %2430 = vmatprep.subr.bf16.mxu0 0
  %2431 = vmatpush1.bf16.msra.mxu0 0
  %2432 = vmatprep.subr.bf16.mxu0 0
  %2433 = vmatpush1.bf16.msra.mxu0 0
  %2434 = vmatprep.subr.bf16.mxu0 0
  %2435 = vmatpush1.bf16.msra.mxu0 0
  %2436 = vmatprep.subr.bf16.mxu0 0
  %2437 = vmatpush1.bf16.msra.mxu0 0
  %2438 = vmatprep.subr.bf16.mxu0 0
  %2439 = vmatpush1.bf16.msra.mxu0 0
  %2440 = vmatprep.subr.bf16.mxu0 0
  %2441 = vmatpush1.bf16.msra.mxu0 0
  %2442 = vmatprep.subr.bf16.mxu0 0
  %2443 = vmatpush1.bf16.msra.mxu0 0
  %2444 = vmatprep.subr.bf16.mxu0 0
  %2445 = vmatpush1.bf16.msra.mxu0 0
  %2446 = vmatprep.mubr.bf16.mxu0 0
  %2447 = vmatmul.mubr.bf16.gmra.mrb[0].mxu0 %v2317
  %v2448 = vpop.f32.mrb[0].mxu0
  %v2449 = vadd.f32 0.0, %v2448
  %v2450 = vpop.f32.mrb[0].mxu0
  %v2451 = vadd.f32 0.0, %v2450
  %v2452 = vpop.f32.mrb[0].mxu0
  %v2453 = vpop.f32.mrb[0].mxu0
  %2454 = vdwg.mxu0
  %v2455 = vadd.f32 %v2315, %v2449
  %v2456 = vadd.f32 %v2316, %v2451
  %v2457 = vxor.u32 %v2455, 2147483648
  %v2458 = vxor.u32 %v2456, 2147483648
  %v2459 = vmul.f32 %v2457, 1.442695
  %v2460 = vpow.pop %v2459
  %v2461 = vmul.f32 %v2458, 1.442695
  %v2462 = vpow.pop %v2461
  %v2463 = vadd.f32 %v2460, 1.0
  %v2464 = vadd.f32 %v2462, 1.0
  %v2465 = vrcp.pop %v2463
  %v2466 = vmul.f32 1.0, %v2465
  %v2467 = vrcp.pop %v2464
  %v2468 = vmul.f32 1.0, %v2467
  %s2469 = scalar_lea.vmem [#allocation4], 56
  %v2470 = vld [vmem:[%s2469] sm:$0xff]
  %v2471 = vmul.f32 %v2468, %v2313
  %v2472 = vpack.c.bf16 %v2471, %v2471
  %v2473 = vld [vmem:[%s6] sm:$0xf]
  %v2474 = vld [vmem:[%s6 + $0x4] sm:$0xf]
  %v2475 = vld [vmem:[%s6 + $0x8] sm:$0xf]
  %v2476 = vld [vmem:[%s6 + $0xc] sm:$0xf]
  %v2477 = vld [vmem:[%s6 + $0x10] sm:$0xf]
  %v2478 = vld [vmem:[%s6 + $0x14] sm:$0xf]
  %v2479 = vld [vmem:[%s6 + $0x18] sm:$0xf]
  %v2480 = vld [vmem:[%s6 + $0x1c] sm:$0xf]
  %v2481 = vld [vmem:[%s6 + $0x20] sm:$0xf]
  %v2482 = vld [vmem:[%s6 + $0x24] sm:$0xf]
  %v2483 = vld [vmem:[%s6 + $0x28] sm:$0xf]
  %v2484 = vld [vmem:[%s6 + $0x2c] sm:$0xf]
  %v2485 = vld [vmem:[%s6 + $0x30] sm:$0xf]
  %v2486 = vld [vmem:[%s6 + $0x34] sm:$0xf]
  %v2487 = vld [vmem:[%s6 + $0x38] sm:$0xf]
  %v2488 = vld [vmem:[%s6 + $0x3c] sm:$0xf]
  %v2505 = vunpack.c.l.b16 %v2473
  %v2506 = vunpack.c.l.b16 %v2474
  %v2507 = vunpack.c.l.b16 %v2475
  %v2508 = vunpack.c.l.b16 %v2476
  %v2509 = vunpack.c.l.b16 %v2477
  %v2510 = vunpack.c.l.b16 %v2478
  %v2511 = vunpack.c.l.b16 %v2479
  %v2512 = vunpack.c.l.b16 %v2480
  %v2513 = vunpack.c.l.b16 %v2481
  %v2514 = vunpack.c.l.b16 %v2482
  %v2515 = vunpack.c.l.b16 %v2483
  %v2516 = vunpack.c.l.b16 %v2484
  %v2517 = vunpack.c.l.b16 %v2485
  %v2518 = vunpack.c.l.b16 %v2486
  %v2519 = vunpack.c.l.b16 %v2487
  %v2520 = vunpack.c.l.b16 %v2488
  %v2521 = vpack.c.b16 %v2506, %v2505
  %v2522 = vpack.c.b16 %v2508, %v2507
  %v2523 = vpack.c.b16 %v2510, %v2509
  %v2524 = vpack.c.b16 %v2512, %v2511
  %v2525 = vpack.c.b16 %v2514, %v2513
  %v2526 = vpack.c.b16 %v2516, %v2515
  %v2527 = vpack.c.b16 %v2518, %v2517
  %v2528 = vpack.c.b16 %v2520, %v2519
  %2537 = vmatprep.subr.bf16.mxu0 0
  %2538 = vmatpush1.bf16.msra.mxu0 %v2521
  %2539 = vmatprep.subr.bf16.mxu0 0
  %2540 = vmatpush1.bf16.msra.mxu0 %v2522
  %2541 = vmatprep.subr.bf16.mxu0 0
  %2542 = vmatpush1.bf16.msra.mxu0 %v2523
  %2543 = vmatprep.subr.bf16.mxu0 0
  %2544 = vmatpush1.bf16.msra.mxu0 %v2524
  %2545 = vmatprep.subr.bf16.mxu0 0
  %2546 = vmatpush1.bf16.msra.mxu0 %v2525
  %2547 = vmatprep.subr.bf16.mxu0 0
  %2548 = vmatpush1.bf16.msra.mxu0 %v2526
  %2549 = vmatprep.subr.bf16.mxu0 0
  %2550 = vmatpush1.bf16.msra.mxu0 %v2527
  %2551 = vmatprep.subr.bf16.mxu0 0
  %2552 = vmatpush1.bf16.msra.mxu0 %v2528
  %2553 = vmatprep.subr.bf16.mxu0 0
  %2554 = vmatpush1.bf16.msra.mxu0 0
  %2555 = vmatprep.subr.bf16.mxu0 0
  %2556 = vmatpush1.bf16.msra.mxu0 0
  %2557 = vmatprep.subr.bf16.mxu0 0
  %2558 = vmatpush1.bf16.msra.mxu0 0
  %2559 = vmatprep.subr.bf16.mxu0 0
  %2560 = vmatpush1.bf16.msra.mxu0 0
  %2561 = vmatprep.subr.bf16.mxu0 0
  %2562 = vmatpush1.bf16.msra.mxu0 0
  %2563 = vmatprep.subr.bf16.mxu0 0
  %2564 = vmatpush1.bf16.msra.mxu0 0
  %2565 = vmatprep.subr.bf16.mxu0 0
  %2566 = vmatpush1.bf16.msra.mxu0 0
  %2567 = vmatprep.subr.bf16.mxu0 0
  %2568 = vmatpush1.bf16.msra.mxu0 0
  %2569 = vmatprep.mubr.bf16.mxu0 0
  %2570 = vmatmul.mubr.bf16.gmra.mrb[0].mxu0 %v2472
  %v2571 = vpop.f32.mrb[0].mxu0
  %v2572 = vadd.f32 0.0, %v2571
  %v2573 = vpop.f32.mrb[0].mxu0
  %v2574 = vpop.f32.mrb[0].mxu0
  %v2575 = vpop.f32.mrb[0].mxu0
  %2576 = vdwg.mxu0
  %v2577 = vadd.f32 %v2470, %v2572
  %v2578 = vtanh.pop %v2577
  %v2579 = vsub.f32 %v2578, %v2313
  %v2580 = vmul.f32 %v2466, %v2579
  %v2581 = vadd.f32 %v2313, %v2580
  %2582 = vst [vmem:[#allocation2] sm:$0xff] %v2581
  %v2583 = vpack.c.bf16 %v2581, %v2581
  %s2584 = scalar_lea.vmem %s7, 28
  %2585 = vst [vmem:[%s2584] sm:$0xf] %v2583
  // Predicated region
  $region34: #{char_gru_forward.5} parent=0 // pred_check
    _
  $region35: #{char_gru_forward.5} parent=0 // pred_check_branch
    %2587 = sbr.rel (0) target = $region37
  $region36: #{char_gru_forward.5} parent=0 // pred_region
    _
  $region37: #{char_gru_forward.5} parent=0 // pred_fallthru
    _
  // Predicated region
  $region38: #{char_gru_forward.5} parent=0 // pred_check
    _
  $region39: #{char_gru_forward.5} parent=0 // pred_check_branch
    %2589 = sbr.rel (0) target = $region41
  $region40: #{char_gru_forward.5} parent=0 // pred_region
    _
  $region41: #{char_gru_forward.5} parent=0 // pred_fallthru
    _

</llo_original>
